<compile_context>
chip_gen: v7x
topology: tpu7x:2x2x1
jax: 0.10.0
libtpu: 0.0.40
codegen_flags: <defaults>
</compile_context>

<pallas_src>
import math
import functools

import jax
import jax.numpy as jnp
from jax.experimental import pallas as pl
from jax.experimental.pallas import tpu as pltpu


def _gru_stack_kernel(*refs, T, B, H, HP, depth):
    """Fused forward for a `depth`-layer GRU stack (PyTorch gate order [r,z,n]).

    refs layout (n_in = 1 + 4*depth):
      refs[0]            : x        (T*B, D_in)      bf16  (time-major flattened)
      refs[1 + 4*l + 0]  : W_ih^T   (K_l, 3*HP)      bf16  layer 0: VMEM block
                                                           layer>0: raw HBM (pl.ANY)
      refs[1 + 4*l + 1]  : W_hh^T   (H,  3*HP)       bf16  layer 0: VMEM block
                                                           layer>0: raw HBM (pl.ANY)
      refs[1 + 4*l + 2]  : bias_x   (1,   3*HP)      f32   (b_ih + b_hh folded for r,z)
      refs[1 + 4*l + 3]  : bias_hn  (1,   HP)        f32   (n-gate hidden bias)
      refs[n_in]         : out      (depth, T*B, HP) f32
      refs[n_in+1:]      : scratch: per layer l>=1 (wih_buf, whh_buf) VMEM bf16,
                           then one DMA semaphore array (depth-1, 2).
    """
    n_in = 1 + 4 * depth
    x_ref = refs[0]
    out_ref = refs[n_in]
    scratch = refs[n_in + 1:]
    sem = scratch[-1] if depth > 1 else None

    # Kick off weight DMAs for layers >= 1 so they overlap layer-0 compute.
    for l in range(1, depth):
        wih_hbm = refs[1 + 4 * l + 0]
        whh_hbm = refs[1 + 4 * l + 1]
        wih_buf = scratch[2 * (l - 1) + 0]
        whh_buf = scratch[2 * (l - 1) + 1]
        pltpu.make_async_copy(wih_hbm, wih_buf, sem.at[l - 1, 0]).start()
        pltpu.make_async_copy(whh_hbm, whh_buf, sem.at[l - 1, 1]).start()

    cur_in = x_ref[...]                                   # (T*B, K) bf16
    for l in range(depth):
        bx_ref = refs[1 + 4 * l + 2]
        bhn_ref = refs[1 + 4 * l + 3]

        if l == 0:
            wih = refs[1 + 4 * l + 0][...]                # (K0, 3*HP) bf16 (VMEM block)
            whh = refs[1 + 4 * l + 1][...]                # (H,  3*HP) bf16
        else:
            wih_hbm = refs[1 + 4 * l + 0]
            whh_hbm = refs[1 + 4 * l + 1]
            wih_buf = scratch[2 * (l - 1) + 0]
            whh_buf = scratch[2 * (l - 1) + 1]
            # Wait for the background DMAs issued at kernel entry.
            pltpu.make_async_copy(wih_hbm, wih_buf, sem.at[l - 1, 0]).wait()
            pltpu.make_async_copy(whh_hbm, whh_buf, sem.at[l - 1, 1]).wait()
            wih = wih_buf[...]                            # (HP, 3*HP) bf16
            whh = whh_buf[...]                            # (H,  3*HP) bf16

        # Hoisted input projection: one big MXU matmul per layer, f32 accumulate.
        gx = jnp.dot(cur_in, wih,
                     preferred_element_type=jnp.float32) + bx_ref[...]   # (T*B, 3*HP)

        # Hoist the (1,HP)->(B,HP) broadcast out of the unrolled time loop.
        bhn_b = jnp.broadcast_to(bhn_ref[...], (B, HP))   # (B, HP) f32

        h = jnp.zeros((B, HP), jnp.float32)
        h_list = []
        for t in range(T):                                # T=8: fully unrolled
            gx_t = gx[t * B:(t + 1) * B, :]               # (B, 3*HP), gates 128-aligned
            # Recurrent matmul with K=H (padded h lanes are zero -> not needed).
            gh = jnp.dot(h[:, :H].astype(jnp.bfloat16), whh,
                         preferred_element_type=jnp.float32)             # (B, 3*HP)
            r = jax.nn.sigmoid(gx_t[:, 0 * HP:1 * HP] + gh[:, 0 * HP:1 * HP])
            z = jax.nn.sigmoid(gx_t[:, 1 * HP:2 * HP] + gh[:, 1 * HP:2 * HP])
            n = jnp.tanh(gx_t[:, 2 * HP:3 * HP] + r * (gh[:, 2 * HP:3 * HP] + bhn_b))
            h = n + z * (h - n)                           # == (1-z)*n + z*h, f32 carry
            h_list.append(h)

        # One full, (8,128)-aligned slab store per layer, off the serial chain.
        layer_out = jnp.concatenate(h_list, axis=0)       # (T*B, HP) f32
        out_ref[l, :, :] = layer_out
        # Feed next layer from registers (no out_ref read-back).
        cur_in = layer_out.astype(jnp.bfloat16)           # (T*B, HP) bf16


def _prep_layer(p, H, HP, k_pad):
    """Transpose + gate-pad one layer's PyTorch-layout GRU parameters."""
    w_ih = p["w_ih"].astype(jnp.float32)                  # (3H, K)
    w_hh = p["w_hh"].astype(jnp.float32)                  # (3H, H)
    b_ih = p["b_ih"].astype(jnp.float32)                  # (3H,)
    b_hh = p["b_hh"].astype(jnp.float32)                  # (3H,)
    K = w_ih.shape[1]

    wih_t = jnp.zeros((k_pad, 3 * HP), jnp.float32)
    whh_t = jnp.zeros((H, 3 * HP), jnp.float32)           # contraction dim kept at H
    bx = jnp.zeros((1, 3 * HP), jnp.float32)
    bhn = jnp.zeros((1, HP), jnp.float32)
    for g in range(3):                                    # gates [r, z, n]
        wih_t = wih_t.at[:K, g * HP:g * HP + H].set(w_ih[g * H:(g + 1) * H, :].T)
        whh_t = whh_t.at[:, g * HP:g * HP + H].set(w_hh[g * H:(g + 1) * H, :].T)
    # Fold b_ih + b_hh for r,z into the hoisted input-projection bias;
    # keep only the n-gate hidden bias inside the recurrence.
    bx = bx.at[0, 0 * HP:0 * HP + H].set(b_ih[0:H] + b_hh[0:H])
    bx = bx.at[0, 1 * HP:1 * HP + H].set(b_ih[H:2 * H] + b_hh[H:2 * H])
    bx = bx.at[0, 2 * HP:2 * HP + H].set(b_ih[2 * H:3 * H])
    bhn = bhn.at[0, :H].set(b_hh[2 * H:3 * H])
    return (wih_t.astype(jnp.bfloat16), whh_t.astype(jnp.bfloat16), bx, bhn)


def gru_stack_forward(params, x):
    """GRUStack.forward: returns stacked per-layer outputs, shape (depth, B, T, H)."""
    B, T, D_in = x.shape
    depth = len(params)
    H = params[0]["w_hh"].shape[1]
    HP = ((H + 127) // 128) * 128                         # pad each gate to full lane width

    # Time-major flatten so the input projection is a single (T*B, K) matmul.
    x_tb = jnp.transpose(x, (1, 0, 2)).reshape(T * B, D_in).astype(jnp.bfloat16)

    inputs = [x_tb]
    in_specs = [pl.BlockSpec((T * B, D_in), lambda i: (0, 0))]
    for l, p in enumerate(params):
        k_pad = D_in if l == 0 else HP                    # layer>0 consumes the padded hidden
        wih_t, whh_t, bx, bhn = _prep_layer(p, H, HP, k_pad)
        inputs += [wih_t, whh_t, bx, bhn]
        if l == 0:
            # Layer-0 weights needed immediately -> normal BlockSpec (prologue DMA).
            in_specs += [
                pl.BlockSpec((k_pad, 3 * HP), lambda i: (0, 0)),
                pl.BlockSpec((H, 3 * HP), lambda i: (0, 0)),
            ]
        else:
            # Later layers' weights stay in HBM; kernel overlaps their DMA
            # with layer-0 compute via make_async_copy into VMEM scratch.
            in_specs += [
                pl.BlockSpec(memory_space=pl.ANY),
                pl.BlockSpec(memory_space=pl.ANY),
            ]
        in_specs += [
            pl.BlockSpec((1, 3 * HP), lambda i: (0, 0)),
            pl.BlockSpec((1, HP), lambda i: (0, 0)),
        ]

    scratch_shapes = []
    for _ in range(1, depth):
        scratch_shapes += [pltpu.VMEM((HP, 3 * HP), jnp.bfloat16),
                           pltpu.VMEM((H, 3 * HP), jnp.bfloat16)]
    if depth > 1:
        scratch_shapes += [pltpu.SemaphoreType.DMA((depth - 1, 2))]

    kernel = functools.partial(_gru_stack_kernel, T=T, B=B, H=H, HP=HP, depth=depth)

    out_padded = pl.pallas_call(
        kernel,
        out_shape=jax.ShapeDtypeStruct((depth, T * B, HP), jnp.float32),
        grid_spec=pltpu.PrefetchScalarGridSpec(
            num_scalar_prefetch=0,
            grid=(1,),                                    # whole stack in one invocation
            in_specs=in_specs,
            out_specs=pl.BlockSpec((depth, T * B, HP), lambda i: (0, 0, 0)),
            scratch_shapes=scratch_shapes,
        ),
        compiler_params=pltpu.CompilerParams(
            dimension_semantics=("arbitrary",),
            # Footprint < 1 MiB; re-derive VMEM budget before scaling H/T/depth
            # (no-pipelining design keeps everything resident simultaneously).
        ),
    )(*inputs)

    out = out_padded[:, :, :H].reshape(depth, T, B, H)    # drop gate padding
    return jnp.transpose(out, (0, 2, 1, 3))               # (depth, B, T, H)


# ----------------------------------------------------------------------------
# Parameter init (PyTorch nn.GRU shapes / init range) and pure-JAX reference.
# ----------------------------------------------------------------------------

def init_gru_params(key, size_in, size):
    k = 1.0 / math.sqrt(size)
    k1, k2, k3, k4 = jax.random.split(key, 4)
    return {
        "w_ih": jax.random.uniform(k1, (3 * size, size_in), jnp.float32, -k, k),
        "w_hh": jax.random.uniform(k2, (3 * size, size), jnp.float32, -k, k),
        "b_ih": jax.random.uniform(k3, (3 * size,), jnp.float32, -k, k),
        "b_hh": jax.random.uniform(k4, (3 * size,), jnp.float32, -k, k),
    }


def init_gru_stack_params(key, size_in, size, depth):
    keys = jax.random.split(key, depth)
    params = [init_gru_params(keys[0], size_in, size)]
    for i in range(1, depth):
        params.append(init_gru_params(keys[i], size, size))
    return params


def _gru_layer_ref(x, p):
    B, T, _ = x.shape
    H = p["w_hh"].shape[1]
    h = jnp.zeros((B, H), jnp.float32)
    outs = []
    for t in range(T):
        gx = x[:, t, :] @ p["w_ih"].T + p["b_ih"]
        gh = h @ p["w_hh"].T + p["b_hh"]
        r = jax.nn.sigmoid(gx[:, :H] + gh[:, :H])
        z = jax.nn.sigmoid(gx[:, H:2 * H] + gh[:, H:2 * H])
        n = jnp.tanh(gx[:, 2 * H:] + r * gh[:, 2 * H:])
        h = (1.0 - z) * n + z * h
        outs.append(h)
    return jnp.stack(outs, axis=1)                        # (B, T, H)


def gru_stack_ref(params, x):
    hidden = []
    cur = x
    for p in params:
        cur = _gru_layer_ref(cur, p)
        hidden.append(cur)
    return jnp.stack(hidden)                              # (depth, B, T, H)


if __name__ == "__main__":
    # Small shapes consistent with the module: batch=2, seq=8, size_in=16,
    # hidden size=32, depth=3.
    B, T, SIZE_IN, SIZE, DEPTH = 2, 8, 16, 32, 3

    root = jax.random.PRNGKey(0)
    kx, kp = jax.random.split(root)
    x = jax.random.normal(kx, (B, T, SIZE_IN), dtype=jnp.float32)
    params = init_gru_stack_params(kp, SIZE_IN, SIZE, DEPTH)

    out = jax.jit(gru_stack_forward)(params, x)
    out = jax.block_until_ready(out)
    assert out.shape == (DEPTH, B, T, SIZE), out.shape

    # Correctness check vs. pure-JAX f32 reference (bf16 matmul operands -> loose tol).
    ref = gru_stack_ref(params, x)
    err = float(jnp.max(jnp.abs(out - ref)))
    assert err < 5e-2, f"max abs error vs reference: {err}"

    print("KERNEL_OK")
</pallas_src>

<mosaic_0001>
module attributes {stable_mosaic.version = 11 : i64} {
  func.func @_gru_stack_kernel(%arg0: i32, %arg1: memref<16x16xbf16, #tpu.memory_space<vmem>>, %arg2: memref<16x384xbf16, #tpu.memory_space<vmem>>, %arg3: memref<32x384xbf16, #tpu.memory_space<vmem>>, %arg4: memref<1x384xf32, #tpu.memory_space<vmem>>, %arg5: memref<1x128xf32, #tpu.memory_space<vmem>>, %arg6: memref<128x384xbf16, #tpu.memory_space<any>>, %arg7: memref<32x384xbf16, #tpu.memory_space<any>>, %arg8: memref<1x384xf32, #tpu.memory_space<vmem>>, %arg9: memref<1x128xf32, #tpu.memory_space<vmem>>, %arg10: memref<128x384xbf16, #tpu.memory_space<any>>, %arg11: memref<32x384xbf16, #tpu.memory_space<any>>, %arg12: memref<1x384xf32, #tpu.memory_space<vmem>>, %arg13: memref<1x128xf32, #tpu.memory_space<vmem>>, %arg14: memref<3x16x128xf32, #tpu.memory_space<vmem>>, %arg15: memref<128x384xbf16, #tpu.memory_space<vmem>>, %arg16: memref<32x384xbf16, #tpu.memory_space<vmem>>, %arg17: memref<128x384xbf16, #tpu.memory_space<vmem>>, %arg18: memref<32x384xbf16, #tpu.memory_space<vmem>>, %arg19: memref<2x2x!tpu.dma_semaphore, #tpu.memory_space<semaphore_mem>>) attributes {dimension_semantics = [#tpu.dimension_semantics<arbitrary>], iteration_bounds = array<i64: 1>, scalar_prefetch = 0 : i64, scratch_operands = 5 : i64, tpu.core_type = #tpu.core_type<tc>, window_params = [{pipeline_mode = #tpu.pipeline_mode<synchronous>, transform_indices = @transform_0, window_bounds = array<i64: 16, 16>}, {pipeline_mode = #tpu.pipeline_mode<synchronous>, transform_indices = @transform_1, window_bounds = array<i64: 16, 384>}, {pipeline_mode = #tpu.pipeline_mode<synchronous>, transform_indices = @transform_2, window_bounds = array<i64: 32, 384>}, {pipeline_mode = #tpu.pipeline_mode<synchronous>, transform_indices = @transform_3, window_bounds = array<i64: 1, 384>}, {pipeline_mode = #tpu.pipeline_mode<synchronous>, transform_indices = @transform_4, window_bounds = array<i64: 1, 128>}, {}, {}, {pipeline_mode = #tpu.pipeline_mode<synchronous>, transform_indices = @transform_7, window_bounds = array<i64: 1, 384>}, {pipeline_mode = #tpu.pipeline_mode<synchronous>, transform_indices = @transform_8, window_bounds = array<i64: 1, 128>}, {}, {}, {pipeline_mode = #tpu.pipeline_mode<synchronous>, transform_indices = @transform_11, window_bounds = array<i64: 1, 384>}, {pipeline_mode = #tpu.pipeline_mode<synchronous>, transform_indices = @transform_12, window_bounds = array<i64: 1, 128>}, {pipeline_mode = #tpu.pipeline_mode<synchronous>, transform_indices = @transform_13, window_bounds = array<i64: 3, 16, 128>}]} {
    %c0_i32 = arith.constant 0 : i32
    %c0_i32_0 = arith.constant 0 : i32
    %0 = tpu.memref_slice %arg19[%c0_i32, %c0_i32_0] : memref<2x2x!tpu.dma_semaphore, #tpu.memory_space<semaphore_mem>> -> memref<1x1x!tpu.dma_semaphore, #tpu.memory_space<semaphore_mem>>
    %1 = tpu.memref_squeeze %0 : memref<1x1x!tpu.dma_semaphore, #tpu.memory_space<semaphore_mem>> -> memref<!tpu.dma_semaphore, #tpu.memory_space<semaphore_mem>>
    tpu.enqueue_dma source(%arg6 : memref<128x384xbf16, #tpu.memory_space<any>>) target(%arg15 : memref<128x384xbf16, #tpu.memory_space<vmem>>) target_semaphore(%1 : memref<!tpu.dma_semaphore, #tpu.memory_space<semaphore_mem>>)
    %c0_i32_1 = arith.constant 0 : i32
    %c1_i32 = arith.constant 1 : i32
    %2 = tpu.memref_slice %arg19[%c0_i32_1, %c1_i32] : memref<2x2x!tpu.dma_semaphore, #tpu.memory_space<semaphore_mem>> -> memref<1x1x!tpu.dma_semaphore, #tpu.memory_space<semaphore_mem>>
    %3 = tpu.memref_squeeze %2 : memref<1x1x!tpu.dma_semaphore, #tpu.memory_space<semaphore_mem>> -> memref<!tpu.dma_semaphore, #tpu.memory_space<semaphore_mem>>
    tpu.enqueue_dma source(%arg7 : memref<32x384xbf16, #tpu.memory_space<any>>) target(%arg16 : memref<32x384xbf16, #tpu.memory_space<vmem>>) target_semaphore(%3 : memref<!tpu.dma_semaphore, #tpu.memory_space<semaphore_mem>>)
    %c1_i32_2 = arith.constant 1 : i32
    %c0_i32_3 = arith.constant 0 : i32
    %4 = tpu.memref_slice %arg19[%c1_i32_2, %c0_i32_3] : memref<2x2x!tpu.dma_semaphore, #tpu.memory_space<semaphore_mem>> -> memref<1x1x!tpu.dma_semaphore, #tpu.memory_space<semaphore_mem>>
    %5 = tpu.memref_squeeze %4 : memref<1x1x!tpu.dma_semaphore, #tpu.memory_space<semaphore_mem>> -> memref<!tpu.dma_semaphore, #tpu.memory_space<semaphore_mem>>
    tpu.enqueue_dma source(%arg10 : memref<128x384xbf16, #tpu.memory_space<any>>) target(%arg17 : memref<128x384xbf16, #tpu.memory_space<vmem>>) target_semaphore(%5 : memref<!tpu.dma_semaphore, #tpu.memory_space<semaphore_mem>>)
    %c1_i32_4 = arith.constant 1 : i32
    %c1_i32_5 = arith.constant 1 : i32
    %6 = tpu.memref_slice %arg19[%c1_i32_4, %c1_i32_5] : memref<2x2x!tpu.dma_semaphore, #tpu.memory_space<semaphore_mem>> -> memref<1x1x!tpu.dma_semaphore, #tpu.memory_space<semaphore_mem>>
    %7 = tpu.memref_squeeze %6 : memref<1x1x!tpu.dma_semaphore, #tpu.memory_space<semaphore_mem>> -> memref<!tpu.dma_semaphore, #tpu.memory_space<semaphore_mem>>
    tpu.enqueue_dma source(%arg11 : memref<32x384xbf16, #tpu.memory_space<any>>) target(%arg18 : memref<32x384xbf16, #tpu.memory_space<vmem>>) target_semaphore(%7 : memref<!tpu.dma_semaphore, #tpu.memory_space<semaphore_mem>>)
    %c0 = arith.constant 0 : index
    %c0_6 = arith.constant 0 : index
    %8 = vector.load %arg1[%c0, %c0_6] : memref<16x16xbf16, #tpu.memory_space<vmem>>, vector<16x16xbf16>
    %c0_7 = arith.constant 0 : index
    %c0_8 = arith.constant 0 : index
    %9 = vector.load %arg2[%c0_7, %c0_8] : memref<16x384xbf16, #tpu.memory_space<vmem>>, vector<16x384xbf16>
    %c0_9 = arith.constant 0 : index
    %c0_10 = arith.constant 0 : index
    %10 = vector.load %arg3[%c0_9, %c0_10] : memref<32x384xbf16, #tpu.memory_space<vmem>>, vector<32x384xbf16>
    %cst = arith.constant dense<0.000000e+00> : vector<16x384xf32>
    %11 = tpu.matmul %8, %9, %cst {dimension_numbers = #tpu.dot_dimension_numbers<[1], [0], [0], [1], [0, 0, 1, 1], [], []>} : vector<16x16xbf16>, vector<16x384xbf16>, vector<16x384xf32> -> vector<16x384xf32>
    %c0_11 = arith.constant 0 : index
    %c0_12 = arith.constant 0 : index
    %12 = vector.load %arg4[%c0_11, %c0_12] : memref<1x384xf32, #tpu.memory_space<vmem>>, vector<1x384xf32>
    %13 = vector.broadcast %12 : vector<1x384xf32> to vector<16x384xf32>
    %14 = arith.addf %11, %13 : vector<16x384xf32>
    %c0_13 = arith.constant 0 : index
    %c0_14 = arith.constant 0 : index
    %15 = vector.load %arg5[%c0_13, %c0_14] : memref<1x128xf32, #tpu.memory_space<vmem>>, vector<1x128xf32>
    %16 = vector.shape_cast %15 : vector<1x128xf32> to vector<1x128xf32>
    %17 = vector.broadcast %16 : vector<1x128xf32> to vector<2x128xf32>
    %cst_15 = arith.constant 0.000000e+00 : f32
    %18 = vector.broadcast %cst_15 : f32 to vector<2x128xf32>
    %19 = vector.extract_strided_slice %14 {offsets = [0, 0], sizes = [2, 384], strides = [1, 1]} : vector<16x384xf32> to vector<2x384xf32>
    %20 = vector.extract_strided_slice %18 {offsets = [0, 0], sizes = [2, 32], strides = [1, 1]} : vector<2x128xf32> to vector<2x32xf32>
    %21 = arith.truncf %20 : vector<2x32xf32> to vector<2x32xbf16>
    %cst_16 = arith.constant dense<0.000000e+00> : vector<2x384xf32>
    %22 = tpu.matmul %21, %10, %cst_16 {dimension_numbers = #tpu.dot_dimension_numbers<[1], [0], [0], [1], [0, 0, 1, 1], [], []>} : vector<2x32xbf16>, vector<32x384xbf16>, vector<2x384xf32> -> vector<2x384xf32>
    %23 = vector.extract_strided_slice %19 {offsets = [0, 0], sizes = [2, 128], strides = [1, 1]} : vector<2x384xf32> to vector<2x128xf32>
    %24 = vector.extract_strided_slice %22 {offsets = [0, 0], sizes = [2, 128], strides = [1, 1]} : vector<2x384xf32> to vector<2x128xf32>
    %25 = arith.addf %23, %24 : vector<2x128xf32>
    %26 = arith.negf %25 : vector<2x128xf32>
    %27 = math.exp %26 : vector<2x128xf32>
    %cst_17 = arith.constant 1.000000e+00 : f32
    %28 = vector.broadcast %cst_17 : f32 to vector<2x128xf32>
    %29 = arith.addf %28, %27 : vector<2x128xf32>
    %30 = arith.divf %28, %29 : vector<2x128xf32>
    %31 = vector.extract_strided_slice %19 {offsets = [0, 128], sizes = [2, 128], strides = [1, 1]} : vector<2x384xf32> to vector<2x128xf32>
    %32 = vector.extract_strided_slice %22 {offsets = [0, 128], sizes = [2, 128], strides = [1, 1]} : vector<2x384xf32> to vector<2x128xf32>
    %33 = arith.addf %31, %32 : vector<2x128xf32>
    %34 = arith.negf %33 : vector<2x128xf32>
    %35 = math.exp %34 : vector<2x128xf32>
    %cst_18 = arith.constant 1.000000e+00 : f32
    %36 = vector.broadcast %cst_18 : f32 to vector<2x128xf32>
    %37 = arith.addf %36, %35 : vector<2x128xf32>
    %38 = arith.divf %36, %37 : vector<2x128xf32>
    %39 = vector.extract_strided_slice %19 {offsets = [0, 256], sizes = [2, 128], strides = [1, 1]} : vector<2x384xf32> to vector<2x128xf32>
    %40 = vector.extract_strided_slice %22 {offsets = [0, 256], sizes = [2, 128], strides = [1, 1]} : vector<2x384xf32> to vector<2x128xf32>
    %41 = arith.addf %40, %17 : vector<2x128xf32>
    %42 = arith.mulf %30, %41 : vector<2x128xf32>
    %43 = arith.addf %39, %42 : vector<2x128xf32>
    %44 = math.tanh %43 : vector<2x128xf32>
    %45 = arith.subf %18, %44 : vector<2x128xf32>
    %46 = arith.mulf %38, %45 : vector<2x128xf32>
    %47 = arith.addf %44, %46 : vector<2x128xf32>
    %48 = vector.extract_strided_slice %14 {offsets = [2, 0], sizes = [2, 384], strides = [1, 1]} : vector<16x384xf32> to vector<2x384xf32>
    %49 = vector.extract_strided_slice %47 {offsets = [0, 0], sizes = [2, 32], strides = [1, 1]} : vector<2x128xf32> to vector<2x32xf32>
    %50 = arith.truncf %49 : vector<2x32xf32> to vector<2x32xbf16>
    %cst_19 = arith.constant dense<0.000000e+00> : vector<2x384xf32>
    %51 = tpu.matmul %50, %10, %cst_19 {dimension_numbers = #tpu.dot_dimension_numbers<[1], [0], [0], [1], [0, 0, 1, 1], [], []>} : vector<2x32xbf16>, vector<32x384xbf16>, vector<2x384xf32> -> vector<2x384xf32>
    %52 = vector.extract_strided_slice %48 {offsets = [0, 0], sizes = [2, 128], strides = [1, 1]} : vector<2x384xf32> to vector<2x128xf32>
    %53 = vector.extract_strided_slice %51 {offsets = [0, 0], sizes = [2, 128], strides = [1, 1]} : vector<2x384xf32> to vector<2x128xf32>
    %54 = arith.addf %52, %53 : vector<2x128xf32>
    %55 = arith.negf %54 : vector<2x128xf32>
    %56 = math.exp %55 : vector<2x128xf32>
    %cst_20 = arith.constant 1.000000e+00 : f32
    %57 = vector.broadcast %cst_20 : f32 to vector<2x128xf32>
    %58 = arith.addf %57, %56 : vector<2x128xf32>
    %59 = arith.divf %57, %58 : vector<2x128xf32>
    %60 = vector.extract_strided_slice %48 {offsets = [0, 128], sizes = [2, 128], strides = [1, 1]} : vector<2x384xf32> to vector<2x128xf32>
    %61 = vector.extract_strided_slice %51 {offsets = [0, 128], sizes = [2, 128], strides = [1, 1]} : vector<2x384xf32> to vector<2x128xf32>
    %62 = arith.addf %60, %61 : vector<2x128xf32>
    %63 = arith.negf %62 : vector<2x128xf32>
    %64 = math.exp %63 : vector<2x128xf32>
    %cst_21 = arith.constant 1.000000e+00 : f32
    %65 = vector.broadcast %cst_21 : f32 to vector<2x128xf32>
    %66 = arith.addf %65, %64 : vector<2x128xf32>
    %67 = arith.divf %65, %66 : vector<2x128xf32>
    %68 = vector.extract_strided_slice %48 {offsets = [0, 256], sizes = [2, 128], strides = [1, 1]} : vector<2x384xf32> to vector<2x128xf32>
    %69 = vector.extract_strided_slice %51 {offsets = [0, 256], sizes = [2, 128], strides = [1, 1]} : vector<2x384xf32> to vector<2x128xf32>
    %70 = arith.addf %69, %17 : vector<2x128xf32>
    %71 = arith.mulf %59, %70 : vector<2x128xf32>
    %72 = arith.addf %68, %71 : vector<2x128xf32>
    %73 = math.tanh %72 : vector<2x128xf32>
    %74 = arith.subf %47, %73 : vector<2x128xf32>
    %75 = arith.mulf %67, %74 : vector<2x128xf32>
    %76 = arith.addf %73, %75 : vector<2x128xf32>
    %77 = vector.extract_strided_slice %14 {offsets = [4, 0], sizes = [2, 384], strides = [1, 1]} : vector<16x384xf32> to vector<2x384xf32>
    %78 = vector.extract_strided_slice %76 {offsets = [0, 0], sizes = [2, 32], strides = [1, 1]} : vector<2x128xf32> to vector<2x32xf32>
    %79 = arith.truncf %78 : vector<2x32xf32> to vector<2x32xbf16>
    %cst_22 = arith.constant dense<0.000000e+00> : vector<2x384xf32>
    %80 = tpu.matmul %79, %10, %cst_22 {dimension_numbers = #tpu.dot_dimension_numbers<[1], [0], [0], [1], [0, 0, 1, 1], [], []>} : vector<2x32xbf16>, vector<32x384xbf16>, vector<2x384xf32> -> vector<2x384xf32>
    %81 = vector.extract_strided_slice %77 {offsets = [0, 0], sizes = [2, 128], strides = [1, 1]} : vector<2x384xf32> to vector<2x128xf32>
    %82 = vector.extract_strided_slice %80 {offsets = [0, 0], sizes = [2, 128], strides = [1, 1]} : vector<2x384xf32> to vector<2x128xf32>
    %83 = arith.addf %81, %82 : vector<2x128xf32>
    %84 = arith.negf %83 : vector<2x128xf32>
    %85 = math.exp %84 : vector<2x128xf32>
    %cst_23 = arith.constant 1.000000e+00 : f32
    %86 = vector.broadcast %cst_23 : f32 to vector<2x128xf32>
    %87 = arith.addf %86, %85 : vector<2x128xf32>
    %88 = arith.divf %86, %87 : vector<2x128xf32>
    %89 = vector.extract_strided_slice %77 {offsets = [0, 128], sizes = [2, 128], strides = [1, 1]} : vector<2x384xf32> to vector<2x128xf32>
    %90 = vector.extract_strided_slice %80 {offsets = [0, 128], sizes = [2, 128], strides = [1, 1]} : vector<2x384xf32> to vector<2x128xf32>
    %91 = arith.addf %89, %90 : vector<2x128xf32>
    %92 = arith.negf %91 : vector<2x128xf32>
    %93 = math.exp %92 : vector<2x128xf32>
    %cst_24 = arith.constant 1.000000e+00 : f32
    %94 = vector.broadcast %cst_24 : f32 to vector<2x128xf32>
    %95 = arith.addf %94, %93 : vector<2x128xf32>
    %96 = arith.divf %94, %95 : vector<2x128xf32>
    %97 = vector.extract_strided_slice %77 {offsets = [0, 256], sizes = [2, 128], strides = [1, 1]} : vector<2x384xf32> to vector<2x128xf32>
    %98 = vector.extract_strided_slice %80 {offsets = [0, 256], sizes = [2, 128], strides = [1, 1]} : vector<2x384xf32> to vector<2x128xf32>
    %99 = arith.addf %98, %17 : vector<2x128xf32>
    %100 = arith.mulf %88, %99 : vector<2x128xf32>
    %101 = arith.addf %97, %100 : vector<2x128xf32>
    %102 = math.tanh %101 : vector<2x128xf32>
    %103 = arith.subf %76, %102 : vector<2x128xf32>
    %104 = arith.mulf %96, %103 : vector<2x128xf32>
    %105 = arith.addf %102, %104 : vector<2x128xf32>
    %106 = vector.extract_strided_slice %14 {offsets = [6, 0], sizes = [2, 384], strides = [1, 1]} : vector<16x384xf32> to vector<2x384xf32>
    %107 = vector.extract_strided_slice %105 {offsets = [0, 0], sizes = [2, 32], strides = [1, 1]} : vector<2x128xf32> to vector<2x32xf32>
    %108 = arith.truncf %107 : vector<2x32xf32> to vector<2x32xbf16>
    %cst_25 = arith.constant dense<0.000000e+00> : vector<2x384xf32>
    %109 = tpu.matmul %108, %10, %cst_25 {dimension_numbers = #tpu.dot_dimension_numbers<[1], [0], [0], [1], [0, 0, 1, 1], [], []>} : vector<2x32xbf16>, vector<32x384xbf16>, vector<2x384xf32> -> vector<2x384xf32>
    %110 = vector.extract_strided_slice %106 {offsets = [0, 0], sizes = [2, 128], strides = [1, 1]} : vector<2x384xf32> to vector<2x128xf32>
    %111 = vector.extract_strided_slice %109 {offsets = [0, 0], sizes = [2, 128], strides = [1, 1]} : vector<2x384xf32> to vector<2x128xf32>
    %112 = arith.addf %110, %111 : vector<2x128xf32>
    %113 = arith.negf %112 : vector<2x128xf32>
    %114 = math.exp %113 : vector<2x128xf32>
    %cst_26 = arith.constant 1.000000e+00 : f32
    %115 = vector.broadcast %cst_26 : f32 to vector<2x128xf32>
    %116 = arith.addf %115, %114 : vector<2x128xf32>
    %117 = arith.divf %115, %116 : vector<2x128xf32>
    %118 = vector.extract_strided_slice %106 {offsets = [0, 128], sizes = [2, 128], strides = [1, 1]} : vector<2x384xf32> to vector<2x128xf32>
    %119 = vector.extract_strided_slice %109 {offsets = [0, 128], sizes = [2, 128], strides = [1, 1]} : vector<2x384xf32> to vector<2x128xf32>
    %120 = arith.addf %118, %119 : vector<2x128xf32>
    %121 = arith.negf %120 : vector<2x128xf32>
    %122 = math.exp %121 : vector<2x128xf32>
    %cst_27 = arith.constant 1.000000e+00 : f32
    %123 = vector.broadcast %cst_27 : f32 to vector<2x128xf32>
    %124 = arith.addf %123, %122 : vector<2x128xf32>
    %125 = arith.divf %123, %124 : vector<2x128xf32>
    %126 = vector.extract_strided_slice %106 {offsets = [0, 256], sizes = [2, 128], strides = [1, 1]} : vector<2x384xf32> to vector<2x128xf32>
    %127 = vector.extract_strided_slice %109 {offsets = [0, 256], sizes = [2, 128], strides = [1, 1]} : vector<2x384xf32> to vector<2x128xf32>
    %128 = arith.addf %127, %17 : vector<2x128xf32>
    %129 = arith.mulf %117, %128 : vector<2x128xf32>
    %130 = arith.addf %126, %129 : vector<2x128xf32>
    %131 = math.tanh %130 : vector<2x128xf32>
    %132 = arith.subf %105, %131 : vector<2x128xf32>
    %133 = arith.mulf %125, %132 : vector<2x128xf32>
    %134 = arith.addf %131, %133 : vector<2x128xf32>
    %135 = vector.extract_strided_slice %14 {offsets = [8, 0], sizes = [2, 384], strides = [1, 1]} : vector<16x384xf32> to vector<2x384xf32>
    %136 = vector.extract_strided_slice %134 {offsets = [0, 0], sizes = [2, 32], strides = [1, 1]} : vector<2x128xf32> to vector<2x32xf32>
    %137 = arith.truncf %136 : vector<2x32xf32> to vector<2x32xbf16>
    %cst_28 = arith.constant dense<0.000000e+00> : vector<2x384xf32>
    %138 = tpu.matmul %137, %10, %cst_28 {dimension_numbers = #tpu.dot_dimension_numbers<[1], [0], [0], [1], [0, 0, 1, 1], [], []>} : vector<2x32xbf16>, vector<32x384xbf16>, vector<2x384xf32> -> vector<2x384xf32>
    %139 = vector.extract_strided_slice %135 {offsets = [0, 0], sizes = [2, 128], strides = [1, 1]} : vector<2x384xf32> to vector<2x128xf32>
    %140 = vector.extract_strided_slice %138 {offsets = [0, 0], sizes = [2, 128], strides = [1, 1]} : vector<2x384xf32> to vector<2x128xf32>
    %141 = arith.addf %139, %140 : vector<2x128xf32>
    %142 = arith.negf %141 : vector<2x128xf32>
    %143 = math.exp %142 : vector<2x128xf32>
    %cst_29 = arith.constant 1.000000e+00 : f32
    %144 = vector.broadcast %cst_29 : f32 to vector<2x128xf32>
    %145 = arith.addf %144, %143 : vector<2x128xf32>
    %146 = arith.divf %144, %145 : vector<2x128xf32>
    %147 = vector.extract_strided_slice %135 {offsets = [0, 128], sizes = [2, 128], strides = [1, 1]} : vector<2x384xf32> to vector<2x128xf32>
    %148 = vector.extract_strided_slice %138 {offsets = [0, 128], sizes = [2, 128], strides = [1, 1]} : vector<2x384xf32> to vector<2x128xf32>
    %149 = arith.addf %147, %148 : vector<2x128xf32>
    %150 = arith.negf %149 : vector<2x128xf32>
    %151 = math.exp %150 : vector<2x128xf32>
    %cst_30 = arith.constant 1.000000e+00 : f32
    %152 = vector.broadcast %cst_30 : f32 to vector<2x128xf32>
    %153 = arith.addf %152, %151 : vector<2x128xf32>
    %154 = arith.divf %152, %153 : vector<2x128xf32>
    %155 = vector.extract_strided_slice %135 {offsets = [0, 256], sizes = [2, 128], strides = [1, 1]} : vector<2x384xf32> to vector<2x128xf32>
    %156 = vector.extract_strided_slice %138 {offsets = [0, 256], sizes = [2, 128], strides = [1, 1]} : vector<2x384xf32> to vector<2x128xf32>
    %157 = arith.addf %156, %17 : vector<2x128xf32>
    %158 = arith.mulf %146, %157 : vector<2x128xf32>
    %159 = arith.addf %155, %158 : vector<2x128xf32>
    %160 = math.tanh %159 : vector<2x128xf32>
    %161 = arith.subf %134, %160 : vector<2x128xf32>
    %162 = arith.mulf %154, %161 : vector<2x128xf32>
    %163 = arith.addf %160, %162 : vector<2x128xf32>
    %164 = vector.extract_strided_slice %14 {offsets = [10, 0], sizes = [2, 384], strides = [1, 1]} : vector<16x384xf32> to vector<2x384xf32>
    %165 = vector.extract_strided_slice %163 {offsets = [0, 0], sizes = [2, 32], strides = [1, 1]} : vector<2x128xf32> to vector<2x32xf32>
    %166 = arith.truncf %165 : vector<2x32xf32> to vector<2x32xbf16>
    %cst_31 = arith.constant dense<0.000000e+00> : vector<2x384xf32>
    %167 = tpu.matmul %166, %10, %cst_31 {dimension_numbers = #tpu.dot_dimension_numbers<[1], [0], [0], [1], [0, 0, 1, 1], [], []>} : vector<2x32xbf16>, vector<32x384xbf16>, vector<2x384xf32> -> vector<2x384xf32>
    %168 = vector.extract_strided_slice %164 {offsets = [0, 0], sizes = [2, 128], strides = [1, 1]} : vector<2x384xf32> to vector<2x128xf32>
    %169 = vector.extract_strided_slice %167 {offsets = [0, 0], sizes = [2, 128], strides = [1, 1]} : vector<2x384xf32> to vector<2x128xf32>
    %170 = arith.addf %168, %169 : vector<2x128xf32>
    %171 = arith.negf %170 : vector<2x128xf32>
    %172 = math.exp %171 : vector<2x128xf32>
    %cst_32 = arith.constant 1.000000e+00 : f32
    %173 = vector.broadcast %cst_32 : f32 to vector<2x128xf32>
    %174 = arith.addf %173, %172 : vector<2x128xf32>
    %175 = arith.divf %173, %174 : vector<2x128xf32>
    %176 = vector.extract_strided_slice %164 {offsets = [0, 128], sizes = [2, 128], strides = [1, 1]} : vector<2x384xf32> to vector<2x128xf32>
    %177 = vector.extract_strided_slice %167 {offsets = [0, 128], sizes = [2, 128], strides = [1, 1]} : vector<2x384xf32> to vector<2x128xf32>
    %178 = arith.addf %176, %177 : vector<2x128xf32>
    %179 = arith.negf %178 : vector<2x128xf32>
    %180 = math.exp %179 : vector<2x128xf32>
    %cst_33 = arith.constant 1.000000e+00 : f32
    %181 = vector.broadcast %cst_33 : f32 to vector<2x128xf32>
    %182 = arith.addf %181, %180 : vector<2x128xf32>
    %183 = arith.divf %181, %182 : vector<2x128xf32>
    %184 = vector.extract_strided_slice %164 {offsets = [0, 256], sizes = [2, 128], strides = [1, 1]} : vector<2x384xf32> to vector<2x128xf32>
    %185 = vector.extract_strided_slice %167 {offsets = [0, 256], sizes = [2, 128], strides = [1, 1]} : vector<2x384xf32> to vector<2x128xf32>
    %186 = arith.addf %185, %17 : vector<2x128xf32>
    %187 = arith.mulf %175, %186 : vector<2x128xf32>
    %188 = arith.addf %184, %187 : vector<2x128xf32>
    %189 = math.tanh %188 : vector<2x128xf32>
    %190 = arith.subf %163, %189 : vector<2x128xf32>
    %191 = arith.mulf %183, %190 : vector<2x128xf32>
    %192 = arith.addf %189, %191 : vector<2x128xf32>
    %193 = vector.extract_strided_slice %14 {offsets = [12, 0], sizes = [2, 384], strides = [1, 1]} : vector<16x384xf32> to vector<2x384xf32>
    %194 = vector.extract_strided_slice %192 {offsets = [0, 0], sizes = [2, 32], strides = [1, 1]} : vector<2x128xf32> to vector<2x32xf32>
    %195 = arith.truncf %194 : vector<2x32xf32> to vector<2x32xbf16>
    %cst_34 = arith.constant dense<0.000000e+00> : vector<2x384xf32>
    %196 = tpu.matmul %195, %10, %cst_34 {dimension_numbers = #tpu.dot_dimension_numbers<[1], [0], [0], [1], [0, 0, 1, 1], [], []>} : vector<2x32xbf16>, vector<32x384xbf16>, vector<2x384xf32> -> vector<2x384xf32>
    %197 = vector.extract_strided_slice %193 {offsets = [0, 0], sizes = [2, 128], strides = [1, 1]} : vector<2x384xf32> to vector<2x128xf32>
    %198 = vector.extract_strided_slice %196 {offsets = [0, 0], sizes = [2, 128], strides = [1, 1]} : vector<2x384xf32> to vector<2x128xf32>
    %199 = arith.addf %197, %198 : vector<2x128xf32>
    %200 = arith.negf %199 : vector<2x128xf32>
    %201 = math.exp %200 : vector<2x128xf32>
    %cst_35 = arith.constant 1.000000e+00 : f32
    %202 = vector.broadcast %cst_35 : f32 to vector<2x128xf32>
    %203 = arith.addf %202, %201 : vector<2x128xf32>
    %204 = arith.divf %202, %203 : vector<2x128xf32>
    %205 = vector.extract_strided_slice %193 {offsets = [0, 128], sizes = [2, 128], strides = [1, 1]} : vector<2x384xf32> to vector<2x128xf32>
    %206 = vector.extract_strided_slice %196 {offsets = [0, 128], sizes = [2, 128], strides = [1, 1]} : vector<2x384xf32> to vector<2x128xf32>
    %207 = arith.addf %205, %206 : vector<2x128xf32>
    %208 = arith.negf %207 : vector<2x128xf32>
    %209 = math.exp %208 : vector<2x128xf32>
    %cst_36 = arith.constant 1.000000e+00 : f32
    %210 = vector.broadcast %cst_36 : f32 to vector<2x128xf32>
    %211 = arith.addf %210, %209 : vector<2x128xf32>
    %212 = arith.divf %210, %211 : vector<2x128xf32>
    %213 = vector.extract_strided_slice %193 {offsets = [0, 256], sizes = [2, 128], strides = [1, 1]} : vector<2x384xf32> to vector<2x128xf32>
    %214 = vector.extract_strided_slice %196 {offsets = [0, 256], sizes = [2, 128], strides = [1, 1]} : vector<2x384xf32> to vector<2x128xf32>
    %215 = arith.addf %214, %17 : vector<2x128xf32>
    %216 = arith.mulf %204, %215 : vector<2x128xf32>
    %217 = arith.addf %213, %216 : vector<2x128xf32>
    %218 = math.tanh %217 : vector<2x128xf32>
    %219 = arith.subf %192, %218 : vector<2x128xf32>
    %220 = arith.mulf %212, %219 : vector<2x128xf32>
    %221 = arith.addf %218, %220 : vector<2x128xf32>
    %222 = vector.extract_strided_slice %14 {offsets = [14, 0], sizes = [2, 384], strides = [1, 1]} : vector<16x384xf32> to vector<2x384xf32>
    %223 = vector.extract_strided_slice %221 {offsets = [0, 0], sizes = [2, 32], strides = [1, 1]} : vector<2x128xf32> to vector<2x32xf32>
    %224 = arith.truncf %223 : vector<2x32xf32> to vector<2x32xbf16>
    %cst_37 = arith.constant dense<0.000000e+00> : vector<2x384xf32>
    %225 = tpu.matmul %224, %10, %cst_37 {dimension_numbers = #tpu.dot_dimension_numbers<[1], [0], [0], [1], [0, 0, 1, 1], [], []>} : vector<2x32xbf16>, vector<32x384xbf16>, vector<2x384xf32> -> vector<2x384xf32>
    %226 = vector.extract_strided_slice %222 {offsets = [0, 0], sizes = [2, 128], strides = [1, 1]} : vector<2x384xf32> to vector<2x128xf32>
    %227 = vector.extract_strided_slice %225 {offsets = [0, 0], sizes = [2, 128], strides = [1, 1]} : vector<2x384xf32> to vector<2x128xf32>
    %228 = arith.addf %226, %227 : vector<2x128xf32>
    %229 = arith.negf %228 : vector<2x128xf32>
    %230 = math.exp %229 : vector<2x128xf32>
    %cst_38 = arith.constant 1.000000e+00 : f32
    %231 = vector.broadcast %cst_38 : f32 to vector<2x128xf32>
    %232 = arith.addf %231, %230 : vector<2x128xf32>
    %233 = arith.divf %231, %232 : vector<2x128xf32>
    %234 = vector.extract_strided_slice %222 {offsets = [0, 128], sizes = [2, 128], strides = [1, 1]} : vector<2x384xf32> to vector<2x128xf32>
    %235 = vector.extract_strided_slice %225 {offsets = [0, 128], sizes = [2, 128], strides = [1, 1]} : vector<2x384xf32> to vector<2x128xf32>
    %236 = arith.addf %234, %235 : vector<2x128xf32>
    %237 = arith.negf %236 : vector<2x128xf32>
    %238 = math.exp %237 : vector<2x128xf32>
    %cst_39 = arith.constant 1.000000e+00 : f32
    %239 = vector.broadcast %cst_39 : f32 to vector<2x128xf32>
    %240 = arith.addf %239, %238 : vector<2x128xf32>
    %241 = arith.divf %239, %240 : vector<2x128xf32>
    %242 = vector.extract_strided_slice %222 {offsets = [0, 256], sizes = [2, 128], strides = [1, 1]} : vector<2x384xf32> to vector<2x128xf32>
    %243 = vector.extract_strided_slice %225 {offsets = [0, 256], sizes = [2, 128], strides = [1, 1]} : vector<2x384xf32> to vector<2x128xf32>
    %244 = arith.addf %243, %17 : vector<2x128xf32>
    %245 = arith.mulf %233, %244 : vector<2x128xf32>
    %246 = arith.addf %242, %245 : vector<2x128xf32>
    %247 = math.tanh %246 : vector<2x128xf32>
    %248 = arith.subf %221, %247 : vector<2x128xf32>
    %249 = arith.mulf %241, %248 : vector<2x128xf32>
    %250 = arith.addf %247, %249 : vector<2x128xf32>
    %251 = tpu.concatenate %47, %76, %105, %134, %163, %192, %221, %250 in 0 : vector<2x128xf32>, vector<2x128xf32>, vector<2x128xf32>, vector<2x128xf32>, vector<2x128xf32>, vector<2x128xf32>, vector<2x128xf32>, vector<2x128xf32> -> vector<16x128xf32>
    %c0_40 = arith.constant 0 : index
    %c0_41 = arith.constant 0 : index
    %c0_42 = arith.constant 0 : index
    %252 = vector.load %arg14[%c0_40, %c0_41, %c0_42] : memref<3x16x128xf32, #tpu.memory_space<vmem>>, vector<1x16x128xf32>
    %253 = vector.shape_cast %252 : vector<1x16x128xf32> to vector<16x128xf32>
    %254 = vector.shape_cast %251 : vector<16x128xf32> to vector<1x16x128xf32>
    tpu.vector_store %arg14[%c0_40, %c0_41, %c0_42], %254 {strides = array<i32>} : memref<3x16x128xf32, #tpu.memory_space<vmem>>, vector<1x16x128xf32>,
    %255 = arith.truncf %251 : vector<16x128xf32> to vector<16x128xbf16>
    %c0_i32_43 = arith.constant 0 : i32
    %c0_i32_44 = arith.constant 0 : i32
    %256 = tpu.memref_slice %arg19[%c0_i32_43, %c0_i32_44] : memref<2x2x!tpu.dma_semaphore, #tpu.memory_space<semaphore_mem>> -> memref<1x1x!tpu.dma_semaphore, #tpu.memory_space<semaphore_mem>>
    %257 = tpu.memref_squeeze %256 : memref<1x1x!tpu.dma_semaphore, #tpu.memory_space<semaphore_mem>> -> memref<!tpu.dma_semaphore, #tpu.memory_space<semaphore_mem>>
    tpu.wait_dma2 semaphore(%257 : memref<!tpu.dma_semaphore, #tpu.memory_space<semaphore_mem>>) src(%arg6 : memref<128x384xbf16, #tpu.memory_space<any>>) dst(%arg15 : memref<128x384xbf16, #tpu.memory_space<vmem>>)
    %c0_i32_45 = arith.constant 0 : i32
    %c1_i32_46 = arith.constant 1 : i32
    %258 = tpu.memref_slice %arg19[%c0_i32_45, %c1_i32_46] : memref<2x2x!tpu.dma_semaphore, #tpu.memory_space<semaphore_mem>> -> memref<1x1x!tpu.dma_semaphore, #tpu.memory_space<semaphore_mem>>
    %259 = tpu.memref_squeeze %258 : memref<1x1x!tpu.dma_semaphore, #tpu.memory_space<semaphore_mem>> -> memref<!tpu.dma_semaphore, #tpu.memory_space<semaphore_mem>>
    tpu.wait_dma2 semaphore(%259 : memref<!tpu.dma_semaphore, #tpu.memory_space<semaphore_mem>>) src(%arg7 : memref<32x384xbf16, #tpu.memory_space<any>>) dst(%arg16 : memref<32x384xbf16, #tpu.memory_space<vmem>>)
    %c0_47 = arith.constant 0 : index
    %c0_48 = arith.constant 0 : index
    %260 = vector.load %arg15[%c0_47, %c0_48] : memref<128x384xbf16, #tpu.memory_space<vmem>>, vector<128x384xbf16>
    %c0_49 = arith.constant 0 : index
    %c0_50 = arith.constant 0 : index
    %261 = vector.load %arg16[%c0_49, %c0_50] : memref<32x384xbf16, #tpu.memory_space<vmem>>, vector<32x384xbf16>
    %cst_51 = arith.constant dense<0.000000e+00> : vector<16x384xf32>
    %262 = tpu.matmul %255, %260, %cst_51 {dimension_numbers = #tpu.dot_dimension_numbers<[1], [0], [0], [1], [0, 0, 1, 1], [], []>} : vector<16x128xbf16>, vector<128x384xbf16>, vector<16x384xf32> -> vector<16x384xf32>
    %c0_52 = arith.constant 0 : index
    %c0_53 = arith.constant 0 : index
    %263 = vector.load %arg8[%c0_52, %c0_53] : memref<1x384xf32, #tpu.memory_space<vmem>>, vector<1x384xf32>
    %264 = vector.broadcast %263 : vector<1x384xf32> to vector<16x384xf32>
    %265 = arith.addf %262, %264 : vector<16x384xf32>
    %c0_54 = arith.constant 0 : index
    %c0_55 = arith.constant 0 : index
    %266 = vector.load %arg9[%c0_54, %c0_55] : memref<1x128xf32, #tpu.memory_space<vmem>>, vector<1x128xf32>
    %267 = vector.shape_cast %266 : vector<1x128xf32> to vector<1x128xf32>
    %268 = vector.broadcast %267 : vector<1x128xf32> to vector<2x128xf32>
    %cst_56 = arith.constant 0.000000e+00 : f32
    %269 = vector.broadcast %cst_56 : f32 to vector<2x128xf32>
    %270 = vector.extract_strided_slice %265 {offsets = [0, 0], sizes = [2, 384], strides = [1, 1]} : vector<16x384xf32> to vector<2x384xf32>
    %271 = vector.extract_strided_slice %269 {offsets = [0, 0], sizes = [2, 32], strides = [1, 1]} : vector<2x128xf32> to vector<2x32xf32>
    %272 = arith.truncf %271 : vector<2x32xf32> to vector<2x32xbf16>
    %cst_57 = arith.constant dense<0.000000e+00> : vector<2x384xf32>
    %273 = tpu.matmul %272, %261, %cst_57 {dimension_numbers = #tpu.dot_dimension_numbers<[1], [0], [0], [1], [0, 0, 1, 1], [], []>} : vector<2x32xbf16>, vector<32x384xbf16>, vector<2x384xf32> -> vector<2x384xf32>
    %274 = vector.extract_strided_slice %270 {offsets = [0, 0], sizes = [2, 128], strides = [1, 1]} : vector<2x384xf32> to vector<2x128xf32>
    %275 = vector.extract_strided_slice %273 {offsets = [0, 0], sizes = [2, 128], strides = [1, 1]} : vector<2x384xf32> to vector<2x128xf32>
    %276 = arith.addf %274, %275 : vector<2x128xf32>
    %277 = arith.negf %276 : vector<2x128xf32>
    %278 = math.exp %277 : vector<2x128xf32>
    %cst_58 = arith.constant 1.000000e+00 : f32
    %279 = vector.broadcast %cst_58 : f32 to vector<2x128xf32>
    %280 = arith.addf %279, %278 : vector<2x128xf32>
    %281 = arith.divf %279, %280 : vector<2x128xf32>
    %282 = vector.extract_strided_slice %270 {offsets = [0, 128], sizes = [2, 128], strides = [1, 1]} : vector<2x384xf32> to vector<2x128xf32>
    %283 = vector.extract_strided_slice %273 {offsets = [0, 128], sizes = [2, 128], strides = [1, 1]} : vector<2x384xf32> to vector<2x128xf32>
    %284 = arith.addf %282, %283 : vector<2x128xf32>
    %285 = arith.negf %284 : vector<2x128xf32>
    %286 = math.exp %285 : vector<2x128xf32>
    %cst_59 = arith.constant 1.000000e+00 : f32
    %287 = vector.broadcast %cst_59 : f32 to vector<2x128xf32>
    %288 = arith.addf %287, %286 : vector<2x128xf32>
    %289 = arith.divf %287, %288 : vector<2x128xf32>
    %290 = vector.extract_strided_slice %270 {offsets = [0, 256], sizes = [2, 128], strides = [1, 1]} : vector<2x384xf32> to vector<2x128xf32>
    %291 = vector.extract_strided_slice %273 {offsets = [0, 256], sizes = [2, 128], strides = [1, 1]} : vector<2x384xf32> to vector<2x128xf32>
    %292 = arith.addf %291, %268 : vector<2x128xf32>
    %293 = arith.mulf %281, %292 : vector<2x128xf32>
    %294 = arith.addf %290, %293 : vector<2x128xf32>
    %295 = math.tanh %294 : vector<2x128xf32>
    %296 = arith.subf %269, %295 : vector<2x128xf32>
    %297 = arith.mulf %289, %296 : vector<2x128xf32>
    %298 = arith.addf %295, %297 : vector<2x128xf32>
    %299 = vector.extract_strided_slice %265 {offsets = [2, 0], sizes = [2, 384], strides = [1, 1]} : vector<16x384xf32> to vector<2x384xf32>
    %300 = vector.extract_strided_slice %298 {offsets = [0, 0], sizes = [2, 32], strides = [1, 1]} : vector<2x128xf32> to vector<2x32xf32>
    %301 = arith.truncf %300 : vector<2x32xf32> to vector<2x32xbf16>
    %cst_60 = arith.constant dense<0.000000e+00> : vector<2x384xf32>
    %302 = tpu.matmul %301, %261, %cst_60 {dimension_numbers = #tpu.dot_dimension_numbers<[1], [0], [0], [1], [0, 0, 1, 1], [], []>} : vector<2x32xbf16>, vector<32x384xbf16>, vector<2x384xf32> -> vector<2x384xf32>
    %303 = vector.extract_strided_slice %299 {offsets = [0, 0], sizes = [2, 128], strides = [1, 1]} : vector<2x384xf32> to vector<2x128xf32>
    %304 = vector.extract_strided_slice %302 {offsets = [0, 0], sizes = [2, 128], strides = [1, 1]} : vector<2x384xf32> to vector<2x128xf32>
    %305 = arith.addf %303, %304 : vector<2x128xf32>
    %306 = arith.negf %305 : vector<2x128xf32>
    %307 = math.exp %306 : vector<2x128xf32>
    %cst_61 = arith.constant 1.000000e+00 : f32
    %308 = vector.broadcast %cst_61 : f32 to vector<2x128xf32>
    %309 = arith.addf %308, %307 : vector<2x128xf32>
    %310 = arith.divf %308, %309 : vector<2x128xf32>
    %311 = vector.extract_strided_slice %299 {offsets = [0, 128], sizes = [2, 128], strides = [1, 1]} : vector<2x384xf32> to vector<2x128xf32>
    %312 = vector.extract_strided_slice %302 {offsets = [0, 128], sizes = [2, 128], strides = [1, 1]} : vector<2x384xf32> to vector<2x128xf32>
    %313 = arith.addf %311, %312 : vector<2x128xf32>
    %314 = arith.negf %313 : vector<2x128xf32>
    %315 = math.exp %314 : vector<2x128xf32>
    %cst_62 = arith.constant 1.000000e+00 : f32
    %316 = vector.broadcast %cst_62 : f32 to vector<2x128xf32>
    %317 = arith.addf %316, %315 : vector<2x128xf32>
    %318 = arith.divf %316, %317 : vector<2x128xf32>
    %319 = vector.extract_strided_slice %299 {offsets = [0, 256], sizes = [2, 128], strides = [1, 1]} : vector<2x384xf32> to vector<2x128xf32>
    %320 = vector.extract_strided_slice %302 {offsets = [0, 256], sizes = [2, 128], strides = [1, 1]} : vector<2x384xf32> to vector<2x128xf32>
    %321 = arith.addf %320, %268 : vector<2x128xf32>
    %322 = arith.mulf %310, %321 : vector<2x128xf32>
    %323 = arith.addf %319, %322 : vector<2x128xf32>
    %324 = math.tanh %323 : vector<2x128xf32>
    %325 = arith.subf %298, %324 : vector<2x128xf32>
    %326 = arith.mulf %318, %325 : vector<2x128xf32>
    %327 = arith.addf %324, %326 : vector<2x128xf32>
    %328 = vector.extract_strided_slice %265 {offsets = [4, 0], sizes = [2, 384], strides = [1, 1]} : vector<16x384xf32> to vector<2x384xf32>
    %329 = vector.extract_strided_slice %327 {offsets = [0, 0], sizes = [2, 32], strides = [1, 1]} : vector<2x128xf32> to vector<2x32xf32>
    %330 = arith.truncf %329 : vector<2x32xf32> to vector<2x32xbf16>
    %cst_63 = arith.constant dense<0.000000e+00> : vector<2x384xf32>
    %331 = tpu.matmul %330, %261, %cst_63 {dimension_numbers = #tpu.dot_dimension_numbers<[1], [0], [0], [1], [0, 0, 1, 1], [], []>} : vector<2x32xbf16>, vector<32x384xbf16>, vector<2x384xf32> -> vector<2x384xf32>
    %332 = vector.extract_strided_slice %328 {offsets = [0, 0], sizes = [2, 128], strides = [1, 1]} : vector<2x384xf32> to vector<2x128xf32>
    %333 = vector.extract_strided_slice %331 {offsets = [0, 0], sizes = [2, 128], strides = [1, 1]} : vector<2x384xf32> to vector<2x128xf32>
    %334 = arith.addf %332, %333 : vector<2x128xf32>
    %335 = arith.negf %334 : vector<2x128xf32>
    %336 = math.exp %335 : vector<2x128xf32>
    %cst_64 = arith.constant 1.000000e+00 : f32
    %337 = vector.broadcast %cst_64 : f32 to vector<2x128xf32>
    %338 = arith.addf %337, %336 : vector<2x128xf32>
    %339 = arith.divf %337, %338 : vector<2x128xf32>
    %340 = vector.extract_strided_slice %328 {offsets = [0, 128], sizes = [2, 128], strides = [1, 1]} : vector<2x384xf32> to vector<2x128xf32>
    %341 = vector.extract_strided_slice %331 {offsets = [0, 128], sizes = [2, 128], strides = [1, 1]} : vector<2x384xf32> to vector<2x128xf32>
    %342 = arith.addf %340, %341 : vector<2x128xf32>
    %343 = arith.negf %342 : vector<2x128xf32>
    %344 = math.exp %343 : vector<2x128xf32>
    %cst_65 = arith.constant 1.000000e+00 : f32
    %345 = vector.broadcast %cst_65 : f32 to vector<2x128xf32>
    %346 = arith.addf %345, %344 : vector<2x128xf32>
    %347 = arith.divf %345, %346 : vector<2x128xf32>
    %348 = vector.extract_strided_slice %328 {offsets = [0, 256], sizes = [2, 128], strides = [1, 1]} : vector<2x384xf32> to vector<2x128xf32>
    %349 = vector.extract_strided_slice %331 {offsets = [0, 256], sizes = [2, 128], strides = [1, 1]} : vector<2x384xf32> to vector<2x128xf32>
    %350 = arith.addf %349, %268 : vector<2x128xf32>
    %351 = arith.mulf %339, %350 : vector<2x128xf32>
    %352 = arith.addf %348, %351 : vector<2x128xf32>
    %353 = math.tanh %352 : vector<2x128xf32>
    %354 = arith.subf %327, %353 : vector<2x128xf32>
    %355 = arith.mulf %347, %354 : vector<2x128xf32>
    %356 = arith.addf %353, %355 : vector<2x128xf32>
    %357 = vector.extract_strided_slice %265 {offsets = [6, 0], sizes = [2, 384], strides = [1, 1]} : vector<16x384xf32> to vector<2x384xf32>
    %358 = vector.extract_strided_slice %356 {offsets = [0, 0], sizes = [2, 32], strides = [1, 1]} : vector<2x128xf32> to vector<2x32xf32>
    %359 = arith.truncf %358 : vector<2x32xf32> to vector<2x32xbf16>
    %cst_66 = arith.constant dense<0.000000e+00> : vector<2x384xf32>
    %360 = tpu.matmul %359, %261, %cst_66 {dimension_numbers = #tpu.dot_dimension_numbers<[1], [0], [0], [1], [0, 0, 1, 1], [], []>} : vector<2x32xbf16>, vector<32x384xbf16>, vector<2x384xf32> -> vector<2x384xf32>
    %361 = vector.extract_strided_slice %357 {offsets = [0, 0], sizes = [2, 128], strides = [1, 1]} : vector<2x384xf32> to vector<2x128xf32>
    %362 = vector.extract_strided_slice %360 {offsets = [0, 0], sizes = [2, 128], strides = [1, 1]} : vector<2x384xf32> to vector<2x128xf32>
    %363 = arith.addf %361, %362 : vector<2x128xf32>
    %364 = arith.negf %363 : vector<2x128xf32>
    %365 = math.exp %364 : vector<2x128xf32>
    %cst_67 = arith.constant 1.000000e+00 : f32
    %366 = vector.broadcast %cst_67 : f32 to vector<2x128xf32>
    %367 = arith.addf %366, %365 : vector<2x128xf32>
    %368 = arith.divf %366, %367 : vector<2x128xf32>
    %369 = vector.extract_strided_slice %357 {offsets = [0, 128], sizes = [2, 128], strides = [1, 1]} : vector<2x384xf32> to vector<2x128xf32>
    %370 = vector.extract_strided_slice %360 {offsets = [0, 128], sizes = [2, 128], strides = [1, 1]} : vector<2x384xf32> to vector<2x128xf32>
    %371 = arith.addf %369, %370 : vector<2x128xf32>
    %372 = arith.negf %371 : vector<2x128xf32>
    %373 = math.exp %372 : vector<2x128xf32>
    %cst_68 = arith.constant 1.000000e+00 : f32
    %374 = vector.broadcast %cst_68 : f32 to vector<2x128xf32>
    %375 = arith.addf %374, %373 : vector<2x128xf32>
    %376 = arith.divf %374, %375 : vector<2x128xf32>
    %377 = vector.extract_strided_slice %357 {offsets = [0, 256], sizes = [2, 128], strides = [1, 1]} : vector<2x384xf32> to vector<2x128xf32>
    %378 = vector.extract_strided_slice %360 {offsets = [0, 256], sizes = [2, 128], strides = [1, 1]} : vector<2x384xf32> to vector<2x128xf32>
    %379 = arith.addf %378, %268 : vector<2x128xf32>
    %380 = arith.mulf %368, %379 : vector<2x128xf32>
    %381 = arith.addf %377, %380 : vector<2x128xf32>
    %382 = math.tanh %381 : vector<2x128xf32>
    %383 = arith.subf %356, %382 : vector<2x128xf32>
    %384 = arith.mulf %376, %383 : vector<2x128xf32>
    %385 = arith.addf %382, %384 : vector<2x128xf32>
    %386 = vector.extract_strided_slice %265 {offsets = [8, 0], sizes = [2, 384], strides = [1, 1]} : vector<16x384xf32> to vector<2x384xf32>
    %387 = vector.extract_strided_slice %385 {offsets = [0, 0], sizes = [2, 32], strides = [1, 1]} : vector<2x128xf32> to vector<2x32xf32>
    %388 = arith.truncf %387 : vector<2x32xf32> to vector<2x32xbf16>
    %cst_69 = arith.constant dense<0.000000e+00> : vector<2x384xf32>
    %389 = tpu.matmul %388, %261, %cst_69 {dimension_numbers = #tpu.dot_dimension_numbers<[1], [0], [0], [1], [0, 0, 1, 1], [], []>} : vector<2x32xbf16>, vector<32x384xbf16>, vector<2x384xf32> -> vector<2x384xf32>
    %390 = vector.extract_strided_slice %386 {offsets = [0, 0], sizes = [2, 128], strides = [1, 1]} : vector<2x384xf32> to vector<2x128xf32>
    %391 = vector.extract_strided_slice %389 {offsets = [0, 0], sizes = [2, 128], strides = [1, 1]} : vector<2x384xf32> to vector<2x128xf32>
    %392 = arith.addf %390, %391 : vector<2x128xf32>
    %393 = arith.negf %392 : vector<2x128xf32>
    %394 = math.exp %393 : vector<2x128xf32>
    %cst_70 = arith.constant 1.000000e+00 : f32
    %395 = vector.broadcast %cst_70 : f32 to vector<2x128xf32>
    %396 = arith.addf %395, %394 : vector<2x128xf32>
    %397 = arith.divf %395, %396 : vector<2x128xf32>
    %398 = vector.extract_strided_slice %386 {offsets = [0, 128], sizes = [2, 128], strides = [1, 1]} : vector<2x384xf32> to vector<2x128xf32>
    %399 = vector.extract_strided_slice %389 {offsets = [0, 128], sizes = [2, 128], strides = [1, 1]} : vector<2x384xf32> to vector<2x128xf32>
    %400 = arith.addf %398, %399 : vector<2x128xf32>
    %401 = arith.negf %400 : vector<2x128xf32>
    %402 = math.exp %401 : vector<2x128xf32>
    %cst_71 = arith.constant 1.000000e+00 : f32
    %403 = vector.broadcast %cst_71 : f32 to vector<2x128xf32>
    %404 = arith.addf %403, %402 : vector<2x128xf32>
    %405 = arith.divf %403, %404 : vector<2x128xf32>
    %406 = vector.extract_strided_slice %386 {offsets = [0, 256], sizes = [2, 128], strides = [1, 1]} : vector<2x384xf32> to vector<2x128xf32>
    %407 = vector.extract_strided_slice %389 {offsets = [0, 256], sizes = [2, 128], strides = [1, 1]} : vector<2x384xf32> to vector<2x128xf32>
    %408 = arith.addf %407, %268 : vector<2x128xf32>
    %409 = arith.mulf %397, %408 : vector<2x128xf32>
    %410 = arith.addf %406, %409 : vector<2x128xf32>
    %411 = math.tanh %410 : vector<2x128xf32>
    %412 = arith.subf %385, %411 : vector<2x128xf32>
    %413 = arith.mulf %405, %412 : vector<2x128xf32>
    %414 = arith.addf %411, %413 : vector<2x128xf32>
    %415 = vector.extract_strided_slice %265 {offsets = [10, 0], sizes = [2, 384], strides = [1, 1]} : vector<16x384xf32> to vector<2x384xf32>
    %416 = vector.extract_strided_slice %414 {offsets = [0, 0], sizes = [2, 32], strides = [1, 1]} : vector<2x128xf32> to vector<2x32xf32>
    %417 = arith.truncf %416 : vector<2x32xf32> to vector<2x32xbf16>
    %cst_72 = arith.constant dense<0.000000e+00> : vector<2x384xf32>
    %418 = tpu.matmul %417, %261, %cst_72 {dimension_numbers = #tpu.dot_dimension_numbers<[1], [0], [0], [1], [0, 0, 1, 1], [], []>} : vector<2x32xbf16>, vector<32x384xbf16>, vector<2x384xf32> -> vector<2x384xf32>
    %419 = vector.extract_strided_slice %415 {offsets = [0, 0], sizes = [2, 128], strides = [1, 1]} : vector<2x384xf32> to vector<2x128xf32>
    %420 = vector.extract_strided_slice %418 {offsets = [0, 0], sizes = [2, 128], strides = [1, 1]} : vector<2x384xf32> to vector<2x128xf32>
    %421 = arith.addf %419, %420 : vector<2x128xf32>
    %422 = arith.negf %421 : vector<2x128xf32>
    %423 = math.exp %422 : vector<2x128xf32>
    %cst_73 = arith.constant 1.000000e+00 : f32
    %424 = vector.broadcast %cst_73 : f32 to vector<2x128xf32>
    %425 = arith.addf %424, %423 : vector<2x128xf32>
    %426 = arith.divf %424, %425 : vector<2x128xf32>
    %427 = vector.extract_strided_slice %415 {offsets = [0, 128], sizes = [2, 128], strides = [1, 1]} : vector<2x384xf32> to vector<2x128xf32>
    %428 = vector.extract_strided_slice %418 {offsets = [0, 128], sizes = [2, 128], strides = [1, 1]} : vector<2x384xf32> to vector<2x128xf32>
    %429 = arith.addf %427, %428 : vector<2x128xf32>
    %430 = arith.negf %429 : vector<2x128xf32>
    %431 = math.exp %430 : vector<2x128xf32>
    %cst_74 = arith.constant 1.000000e+00 : f32
    %432 = vector.broadcast %cst_74 : f32 to vector<2x128xf32>
    %433 = arith.addf %432, %431 : vector<2x128xf32>
    %434 = arith.divf %432, %433 : vector<2x128xf32>
    %435 = vector.extract_strided_slice %415 {offsets = [0, 256], sizes = [2, 128], strides = [1, 1]} : vector<2x384xf32> to vector<2x128xf32>
    %436 = vector.extract_strided_slice %418 {offsets = [0, 256], sizes = [2, 128], strides = [1, 1]} : vector<2x384xf32> to vector<2x128xf32>
    %437 = arith.addf %436, %268 : vector<2x128xf32>
    %438 = arith.mulf %426, %437 : vector<2x128xf32>
    %439 = arith.addf %435, %438 : vector<2x128xf32>
    %440 = math.tanh %439 : vector<2x128xf32>
    %441 = arith.subf %414, %440 : vector<2x128xf32>
    %442 = arith.mulf %434, %441 : vector<2x128xf32>
    %443 = arith.addf %440, %442 : vector<2x128xf32>
    %444 = vector.extract_strided_slice %265 {offsets = [12, 0], sizes = [2, 384], strides = [1, 1]} : vector<16x384xf32> to vector<2x384xf32>
    %445 = vector.extract_strided_slice %443 {offsets = [0, 0], sizes = [2, 32], strides = [1, 1]} : vector<2x128xf32> to vector<2x32xf32>
    %446 = arith.truncf %445 : vector<2x32xf32> to vector<2x32xbf16>
    %cst_75 = arith.constant dense<0.000000e+00> : vector<2x384xf32>
    %447 = tpu.matmul %446, %261, %cst_75 {dimension_numbers = #tpu.dot_dimension_numbers<[1], [0], [0], [1], [0, 0, 1, 1], [], []>} : vector<2x32xbf16>, vector<32x384xbf16>, vector<2x384xf32> -> vector<2x384xf32>
    %448 = vector.extract_strided_slice %444 {offsets = [0, 0], sizes = [2, 128], strides = [1, 1]} : vector<2x384xf32> to vector<2x128xf32>
    %449 = vector.extract_strided_slice %447 {offsets = [0, 0], sizes = [2, 128], strides = [1, 1]} : vector<2x384xf32> to vector<2x128xf32>
    %450 = arith.addf %448, %449 : vector<2x128xf32>
    %451 = arith.negf %450 : vector<2x128xf32>
    %452 = math.exp %451 : vector<2x128xf32>
    %cst_76 = arith.constant 1.000000e+00 : f32
    %453 = vector.broadcast %cst_76 : f32 to vector<2x128xf32>
    %454 = arith.addf %453, %452 : vector<2x128xf32>
    %455 = arith.divf %453, %454 : vector<2x128xf32>
    %456 = vector.extract_strided_slice %444 {offsets = [0, 128], sizes = [2, 128], strides = [1, 1]} : vector<2x384xf32> to vector<2x128xf32>
    %457 = vector.extract_strided_slice %447 {offsets = [0, 128], sizes = [2, 128], strides = [1, 1]} : vector<2x384xf32> to vector<2x128xf32>
    %458 = arith.addf %456, %457 : vector<2x128xf32>
    %459 = arith.negf %458 : vector<2x128xf32>
    %460 = math.exp %459 : vector<2x128xf32>
    %cst_77 = arith.constant 1.000000e+00 : f32
    %461 = vector.broadcast %cst_77 : f32 to vector<2x128xf32>
    %462 = arith.addf %461, %460 : vector<2x128xf32>
    %463 = arith.divf %461, %462 : vector<2x128xf32>
    %464 = vector.extract_strided_slice %444 {offsets = [0, 256], sizes = [2, 128], strides = [1, 1]} : vector<2x384xf32> to vector<2x128xf32>
    %465 = vector.extract_strided_slice %447 {offsets = [0, 256], sizes = [2, 128], strides = [1, 1]} : vector<2x384xf32> to vector<2x128xf32>
    %466 = arith.addf %465, %268 : vector<2x128xf32>
    %467 = arith.mulf %455, %466 : vector<2x128xf32>
    %468 = arith.addf %464, %467 : vector<2x128xf32>
    %469 = math.tanh %468 : vector<2x128xf32>
    %470 = arith.subf %443, %469 : vector<2x128xf32>
    %471 = arith.mulf %463, %470 : vector<2x128xf32>
    %472 = arith.addf %469, %471 : vector<2x128xf32>
    %473 = vector.extract_strided_slice %265 {offsets = [14, 0], sizes = [2, 384], strides = [1, 1]} : vector<16x384xf32> to vector<2x384xf32>
    %474 = vector.extract_strided_slice %472 {offsets = [0, 0], sizes = [2, 32], strides = [1, 1]} : vector<2x128xf32> to vector<2x32xf32>
    %475 = arith.truncf %474 : vector<2x32xf32> to vector<2x32xbf16>
    %cst_78 = arith.constant dense<0.000000e+00> : vector<2x384xf32>
    %476 = tpu.matmul %475, %261, %cst_78 {dimension_numbers = #tpu.dot_dimension_numbers<[1], [0], [0], [1], [0, 0, 1, 1], [], []>} : vector<2x32xbf16>, vector<32x384xbf16>, vector<2x384xf32> -> vector<2x384xf32>
    %477 = vector.extract_strided_slice %473 {offsets = [0, 0], sizes = [2, 128], strides = [1, 1]} : vector<2x384xf32> to vector<2x128xf32>
    %478 = vector.extract_strided_slice %476 {offsets = [0, 0], sizes = [2, 128], strides = [1, 1]} : vector<2x384xf32> to vector<2x128xf32>
    %479 = arith.addf %477, %478 : vector<2x128xf32>
    %480 = arith.negf %479 : vector<2x128xf32>
    %481 = math.exp %480 : vector<2x128xf32>
    %cst_79 = arith.constant 1.000000e+00 : f32
    %482 = vector.broadcast %cst_79 : f32 to vector<2x128xf32>
    %483 = arith.addf %482, %481 : vector<2x128xf32>
    %484 = arith.divf %482, %483 : vector<2x128xf32>
    %485 = vector.extract_strided_slice %473 {offsets = [0, 128], sizes = [2, 128], strides = [1, 1]} : vector<2x384xf32> to vector<2x128xf32>
    %486 = vector.extract_strided_slice %476 {offsets = [0, 128], sizes = [2, 128], strides = [1, 1]} : vector<2x384xf32> to vector<2x128xf32>
    %487 = arith.addf %485, %486 : vector<2x128xf32>
    %488 = arith.negf %487 : vector<2x128xf32>
    %489 = math.exp %488 : vector<2x128xf32>
    %cst_80 = arith.constant 1.000000e+00 : f32
    %490 = vector.broadcast %cst_80 : f32 to vector<2x128xf32>
    %491 = arith.addf %490, %489 : vector<2x128xf32>
    %492 = arith.divf %490, %491 : vector<2x128xf32>
    %493 = vector.extract_strided_slice %473 {offsets = [0, 256], sizes = [2, 128], strides = [1, 1]} : vector<2x384xf32> to vector<2x128xf32>
    %494 = vector.extract_strided_slice %476 {offsets = [0, 256], sizes = [2, 128], strides = [1, 1]} : vector<2x384xf32> to vector<2x128xf32>
    %495 = arith.addf %494, %268 : vector<2x128xf32>
    %496 = arith.mulf %484, %495 : vector<2x128xf32>
    %497 = arith.addf %493, %496 : vector<2x128xf32>
    %498 = math.tanh %497 : vector<2x128xf32>
    %499 = arith.subf %472, %498 : vector<2x128xf32>
    %500 = arith.mulf %492, %499 : vector<2x128xf32>
    %501 = arith.addf %498, %500 : vector<2x128xf32>
    %502 = tpu.concatenate %298, %327, %356, %385, %414, %443, %472, %501 in 0 : vector<2x128xf32>, vector<2x128xf32>, vector<2x128xf32>, vector<2x128xf32>, vector<2x128xf32>, vector<2x128xf32>, vector<2x128xf32>, vector<2x128xf32> -> vector<16x128xf32>
    %c1 = arith.constant 1 : index
    %c0_81 = arith.constant 0 : index
    %c0_82 = arith.constant 0 : index
    %503 = vector.load %arg14[%c1, %c0_81, %c0_82] : memref<3x16x128xf32, #tpu.memory_space<vmem>>, vector<1x16x128xf32>
    %504 = vector.shape_cast %503 : vector<1x16x128xf32> to vector<16x128xf32>
    %505 = vector.shape_cast %502 : vector<16x128xf32> to vector<1x16x128xf32>
    tpu.vector_store %arg14[%c1, %c0_81, %c0_82], %505 {strides = array<i32>} : memref<3x16x128xf32, #tpu.memory_space<vmem>>, vector<1x16x128xf32>,
    %506 = arith.truncf %502 : vector<16x128xf32> to vector<16x128xbf16>
    %c1_i32_83 = arith.constant 1 : i32
    %c0_i32_84 = arith.constant 0 : i32
    %507 = tpu.memref_slice %arg19[%c1_i32_83, %c0_i32_84] : memref<2x2x!tpu.dma_semaphore, #tpu.memory_space<semaphore_mem>> -> memref<1x1x!tpu.dma_semaphore, #tpu.memory_space<semaphore_mem>>
    %508 = tpu.memref_squeeze %507 : memref<1x1x!tpu.dma_semaphore, #tpu.memory_space<semaphore_mem>> -> memref<!tpu.dma_semaphore, #tpu.memory_space<semaphore_mem>>
    tpu.wait_dma2 semaphore(%508 : memref<!tpu.dma_semaphore, #tpu.memory_space<semaphore_mem>>) src(%arg10 : memref<128x384xbf16, #tpu.memory_space<any>>) dst(%arg17 : memref<128x384xbf16, #tpu.memory_space<vmem>>)
    %c1_i32_85 = arith.constant 1 : i32
    %c1_i32_86 = arith.constant 1 : i32
    %509 = tpu.memref_slice %arg19[%c1_i32_85, %c1_i32_86] : memref<2x2x!tpu.dma_semaphore, #tpu.memory_space<semaphore_mem>> -> memref<1x1x!tpu.dma_semaphore, #tpu.memory_space<semaphore_mem>>
    %510 = tpu.memref_squeeze %509 : memref<1x1x!tpu.dma_semaphore, #tpu.memory_space<semaphore_mem>> -> memref<!tpu.dma_semaphore, #tpu.memory_space<semaphore_mem>>
    tpu.wait_dma2 semaphore(%510 : memref<!tpu.dma_semaphore, #tpu.memory_space<semaphore_mem>>) src(%arg11 : memref<32x384xbf16, #tpu.memory_space<any>>) dst(%arg18 : memref<32x384xbf16, #tpu.memory_space<vmem>>)
    %c0_87 = arith.constant 0 : index
    %c0_88 = arith.constant 0 : index
    %511 = vector.load %arg17[%c0_87, %c0_88] : memref<128x384xbf16, #tpu.memory_space<vmem>>, vector<128x384xbf16>
    %c0_89 = arith.constant 0 : index
    %c0_90 = arith.constant 0 : index
    %512 = vector.load %arg18[%c0_89, %c0_90] : memref<32x384xbf16, #tpu.memory_space<vmem>>, vector<32x384xbf16>
    %cst_91 = arith.constant dense<0.000000e+00> : vector<16x384xf32>
    %513 = tpu.matmul %506, %511, %cst_91 {dimension_numbers = #tpu.dot_dimension_numbers<[1], [0], [0], [1], [0, 0, 1, 1], [], []>} : vector<16x128xbf16>, vector<128x384xbf16>, vector<16x384xf32> -> vector<16x384xf32>
    %c0_92 = arith.constant 0 : index
    %c0_93 = arith.constant 0 : index
    %514 = vector.load %arg12[%c0_92, %c0_93] : memref<1x384xf32, #tpu.memory_space<vmem>>, vector<1x384xf32>
    %515 = vector.broadcast %514 : vector<1x384xf32> to vector<16x384xf32>
    %516 = arith.addf %513, %515 : vector<16x384xf32>
    %c0_94 = arith.constant 0 : index
    %c0_95 = arith.constant 0 : index
    %517 = vector.load %arg13[%c0_94, %c0_95] : memref<1x128xf32, #tpu.memory_space<vmem>>, vector<1x128xf32>
    %518 = vector.shape_cast %517 : vector<1x128xf32> to vector<1x128xf32>
    %519 = vector.broadcast %518 : vector<1x128xf32> to vector<2x128xf32>
    %cst_96 = arith.constant 0.000000e+00 : f32
    %520 = vector.broadcast %cst_96 : f32 to vector<2x128xf32>
    %521 = vector.extract_strided_slice %516 {offsets = [0, 0], sizes = [2, 384], strides = [1, 1]} : vector<16x384xf32> to vector<2x384xf32>
    %522 = vector.extract_strided_slice %520 {offsets = [0, 0], sizes = [2, 32], strides = [1, 1]} : vector<2x128xf32> to vector<2x32xf32>
    %523 = arith.truncf %522 : vector<2x32xf32> to vector<2x32xbf16>
    %cst_97 = arith.constant dense<0.000000e+00> : vector<2x384xf32>
    %524 = tpu.matmul %523, %512, %cst_97 {dimension_numbers = #tpu.dot_dimension_numbers<[1], [0], [0], [1], [0, 0, 1, 1], [], []>} : vector<2x32xbf16>, vector<32x384xbf16>, vector<2x384xf32> -> vector<2x384xf32>
    %525 = vector.extract_strided_slice %521 {offsets = [0, 0], sizes = [2, 128], strides = [1, 1]} : vector<2x384xf32> to vector<2x128xf32>
    %526 = vector.extract_strided_slice %524 {offsets = [0, 0], sizes = [2, 128], strides = [1, 1]} : vector<2x384xf32> to vector<2x128xf32>
    %527 = arith.addf %525, %526 : vector<2x128xf32>
    %528 = arith.negf %527 : vector<2x128xf32>
    %529 = math.exp %528 : vector<2x128xf32>
    %cst_98 = arith.constant 1.000000e+00 : f32
    %530 = vector.broadcast %cst_98 : f32 to vector<2x128xf32>
    %531 = arith.addf %530, %529 : vector<2x128xf32>
    %532 = arith.divf %530, %531 : vector<2x128xf32>
    %533 = vector.extract_strided_slice %521 {offsets = [0, 128], sizes = [2, 128], strides = [1, 1]} : vector<2x384xf32> to vector<2x128xf32>
    %534 = vector.extract_strided_slice %524 {offsets = [0, 128], sizes = [2, 128], strides = [1, 1]} : vector<2x384xf32> to vector<2x128xf32>
    %535 = arith.addf %533, %534 : vector<2x128xf32>
    %536 = arith.negf %535 : vector<2x128xf32>
    %537 = math.exp %536 : vector<2x128xf32>
    %cst_99 = arith.constant 1.000000e+00 : f32
    %538 = vector.broadcast %cst_99 : f32 to vector<2x128xf32>
    %539 = arith.addf %538, %537 : vector<2x128xf32>
    %540 = arith.divf %538, %539 : vector<2x128xf32>
    %541 = vector.extract_strided_slice %521 {offsets = [0, 256], sizes = [2, 128], strides = [1, 1]} : vector<2x384xf32> to vector<2x128xf32>
    %542 = vector.extract_strided_slice %524 {offsets = [0, 256], sizes = [2, 128], strides = [1, 1]} : vector<2x384xf32> to vector<2x128xf32>
    %543 = arith.addf %542, %519 : vector<2x128xf32>
    %544 = arith.mulf %532, %543 : vector<2x128xf32>
    %545 = arith.addf %541, %544 : vector<2x128xf32>
    %546 = math.tanh %545 : vector<2x128xf32>
    %547 = arith.subf %520, %546 : vector<2x128xf32>
    %548 = arith.mulf %540, %547 : vector<2x128xf32>
    %549 = arith.addf %546, %548 : vector<2x128xf32>
    %550 = vector.extract_strided_slice %516 {offsets = [2, 0], sizes = [2, 384], strides = [1, 1]} : vector<16x384xf32> to vector<2x384xf32>
    %551 = vector.extract_strided_slice %549 {offsets = [0, 0], sizes = [2, 32], strides = [1, 1]} : vector<2x128xf32> to vector<2x32xf32>
    %552 = arith.truncf %551 : vector<2x32xf32> to vector<2x32xbf16>
    %cst_100 = arith.constant dense<0.000000e+00> : vector<2x384xf32>
    %553 = tpu.matmul %552, %512, %cst_100 {dimension_numbers = #tpu.dot_dimension_numbers<[1], [0], [0], [1], [0, 0, 1, 1], [], []>} : vector<2x32xbf16>, vector<32x384xbf16>, vector<2x384xf32> -> vector<2x384xf32>
    %554 = vector.extract_strided_slice %550 {offsets = [0, 0], sizes = [2, 128], strides = [1, 1]} : vector<2x384xf32> to vector<2x128xf32>
    %555 = vector.extract_strided_slice %553 {offsets = [0, 0], sizes = [2, 128], strides = [1, 1]} : vector<2x384xf32> to vector<2x128xf32>
    %556 = arith.addf %554, %555 : vector<2x128xf32>
    %557 = arith.negf %556 : vector<2x128xf32>
    %558 = math.exp %557 : vector<2x128xf32>
    %cst_101 = arith.constant 1.000000e+00 : f32
    %559 = vector.broadcast %cst_101 : f32 to vector<2x128xf32>
    %560 = arith.addf %559, %558 : vector<2x128xf32>
    %561 = arith.divf %559, %560 : vector<2x128xf32>
    %562 = vector.extract_strided_slice %550 {offsets = [0, 128], sizes = [2, 128], strides = [1, 1]} : vector<2x384xf32> to vector<2x128xf32>
    %563 = vector.extract_strided_slice %553 {offsets = [0, 128], sizes = [2, 128], strides = [1, 1]} : vector<2x384xf32> to vector<2x128xf32>
    %564 = arith.addf %562, %563 : vector<2x128xf32>
    %565 = arith.negf %564 : vector<2x128xf32>
    %566 = math.exp %565 : vector<2x128xf32>
    %cst_102 = arith.constant 1.000000e+00 : f32
    %567 = vector.broadcast %cst_102 : f32 to vector<2x128xf32>
    %568 = arith.addf %567, %566 : vector<2x128xf32>
    %569 = arith.divf %567, %568 : vector<2x128xf32>
    %570 = vector.extract_strided_slice %550 {offsets = [0, 256], sizes = [2, 128], strides = [1, 1]} : vector<2x384xf32> to vector<2x128xf32>
    %571 = vector.extract_strided_slice %553 {offsets = [0, 256], sizes = [2, 128], strides = [1, 1]} : vector<2x384xf32> to vector<2x128xf32>
    %572 = arith.addf %571, %519 : vector<2x128xf32>
    %573 = arith.mulf %561, %572 : vector<2x128xf32>
    %574 = arith.addf %570, %573 : vector<2x128xf32>
    %575 = math.tanh %574 : vector<2x128xf32>
    %576 = arith.subf %549, %575 : vector<2x128xf32>
    %577 = arith.mulf %569, %576 : vector<2x128xf32>
    %578 = arith.addf %575, %577 : vector<2x128xf32>
    %579 = vector.extract_strided_slice %516 {offsets = [4, 0], sizes = [2, 384], strides = [1, 1]} : vector<16x384xf32> to vector<2x384xf32>
    %580 = vector.extract_strided_slice %578 {offsets = [0, 0], sizes = [2, 32], strides = [1, 1]} : vector<2x128xf32> to vector<2x32xf32>
    %581 = arith.truncf %580 : vector<2x32xf32> to vector<2x32xbf16>
    %cst_103 = arith.constant dense<0.000000e+00> : vector<2x384xf32>
    %582 = tpu.matmul %581, %512, %cst_103 {dimension_numbers = #tpu.dot_dimension_numbers<[1], [0], [0], [1], [0, 0, 1, 1], [], []>} : vector<2x32xbf16>, vector<32x384xbf16>, vector<2x384xf32> -> vector<2x384xf32>
    %583 = vector.extract_strided_slice %579 {offsets = [0, 0], sizes = [2, 128], strides = [1, 1]} : vector<2x384xf32> to vector<2x128xf32>
    %584 = vector.extract_strided_slice %582 {offsets = [0, 0], sizes = [2, 128], strides = [1, 1]} : vector<2x384xf32> to vector<2x128xf32>
    %585 = arith.addf %583, %584 : vector<2x128xf32>
    %586 = arith.negf %585 : vector<2x128xf32>
    %587 = math.exp %586 : vector<2x128xf32>
    %cst_104 = arith.constant 1.000000e+00 : f32
    %588 = vector.broadcast %cst_104 : f32 to vector<2x128xf32>
    %589 = arith.addf %588, %587 : vector<2x128xf32>
    %590 = arith.divf %588, %589 : vector<2x128xf32>
    %591 = vector.extract_strided_slice %579 {offsets = [0, 128], sizes = [2, 128], strides = [1, 1]} : vector<2x384xf32> to vector<2x128xf32>
    %592 = vector.extract_strided_slice %582 {offsets = [0, 128], sizes = [2, 128], strides = [1, 1]} : vector<2x384xf32> to vector<2x128xf32>
    %593 = arith.addf %591, %592 : vector<2x128xf32>
    %594 = arith.negf %593 : vector<2x128xf32>
    %595 = math.exp %594 : vector<2x128xf32>
    %cst_105 = arith.constant 1.000000e+00 : f32
    %596 = vector.broadcast %cst_105 : f32 to vector<2x128xf32>
    %597 = arith.addf %596, %595 : vector<2x128xf32>
    %598 = arith.divf %596, %597 : vector<2x128xf32>
    %599 = vector.extract_strided_slice %579 {offsets = [0, 256], sizes = [2, 128], strides = [1, 1]} : vector<2x384xf32> to vector<2x128xf32>
    %600 = vector.extract_strided_slice %582 {offsets = [0, 256], sizes = [2, 128], strides = [1, 1]} : vector<2x384xf32> to vector<2x128xf32>
    %601 = arith.addf %600, %519 : vector<2x128xf32>
    %602 = arith.mulf %590, %601 : vector<2x128xf32>
    %603 = arith.addf %599, %602 : vector<2x128xf32>
    %604 = math.tanh %603 : vector<2x128xf32>
    %605 = arith.subf %578, %604 : vector<2x128xf32>
    %606 = arith.mulf %598, %605 : vector<2x128xf32>
    %607 = arith.addf %604, %606 : vector<2x128xf32>
    %608 = vector.extract_strided_slice %516 {offsets = [6, 0], sizes = [2, 384], strides = [1, 1]} : vector<16x384xf32> to vector<2x384xf32>
    %609 = vector.extract_strided_slice %607 {offsets = [0, 0], sizes = [2, 32], strides = [1, 1]} : vector<2x128xf32> to vector<2x32xf32>
    %610 = arith.truncf %609 : vector<2x32xf32> to vector<2x32xbf16>
    %cst_106 = arith.constant dense<0.000000e+00> : vector<2x384xf32>
    %611 = tpu.matmul %610, %512, %cst_106 {dimension_numbers = #tpu.dot_dimension_numbers<[1], [0], [0], [1], [0, 0, 1, 1], [], []>} : vector<2x32xbf16>, vector<32x384xbf16>, vector<2x384xf32> -> vector<2x384xf32>
    %612 = vector.extract_strided_slice %608 {offsets = [0, 0], sizes = [2, 128], strides = [1, 1]} : vector<2x384xf32> to vector<2x128xf32>
    %613 = vector.extract_strided_slice %611 {offsets = [0, 0], sizes = [2, 128], strides = [1, 1]} : vector<2x384xf32> to vector<2x128xf32>
    %614 = arith.addf %612, %613 : vector<2x128xf32>
    %615 = arith.negf %614 : vector<2x128xf32>
    %616 = math.exp %615 : vector<2x128xf32>
    %cst_107 = arith.constant 1.000000e+00 : f32
    %617 = vector.broadcast %cst_107 : f32 to vector<2x128xf32>
    %618 = arith.addf %617, %616 : vector<2x128xf32>
    %619 = arith.divf %617, %618 : vector<2x128xf32>
    %620 = vector.extract_strided_slice %608 {offsets = [0, 128], sizes = [2, 128], strides = [1, 1]} : vector<2x384xf32> to vector<2x128xf32>
    %621 = vector.extract_strided_slice %611 {offsets = [0, 128], sizes = [2, 128], strides = [1, 1]} : vector<2x384xf32> to vector<2x128xf32>
    %622 = arith.addf %620, %621 : vector<2x128xf32>
    %623 = arith.negf %622 : vector<2x128xf32>
    %624 = math.exp %623 : vector<2x128xf32>
    %cst_108 = arith.constant 1.000000e+00 : f32
    %625 = vector.broadcast %cst_108 : f32 to vector<2x128xf32>
    %626 = arith.addf %625, %624 : vector<2x128xf32>
    %627 = arith.divf %625, %626 : vector<2x128xf32>
    %628 = vector.extract_strided_slice %608 {offsets = [0, 256], sizes = [2, 128], strides = [1, 1]} : vector<2x384xf32> to vector<2x128xf32>
    %629 = vector.extract_strided_slice %611 {offsets = [0, 256], sizes = [2, 128], strides = [1, 1]} : vector<2x384xf32> to vector<2x128xf32>
    %630 = arith.addf %629, %519 : vector<2x128xf32>
    %631 = arith.mulf %619, %630 : vector<2x128xf32>
    %632 = arith.addf %628, %631 : vector<2x128xf32>
    %633 = math.tanh %632 : vector<2x128xf32>
    %634 = arith.subf %607, %633 : vector<2x128xf32>
    %635 = arith.mulf %627, %634 : vector<2x128xf32>
    %636 = arith.addf %633, %635 : vector<2x128xf32>
    %637 = vector.extract_strided_slice %516 {offsets = [8, 0], sizes = [2, 384], strides = [1, 1]} : vector<16x384xf32> to vector<2x384xf32>
    %638 = vector.extract_strided_slice %636 {offsets = [0, 0], sizes = [2, 32], strides = [1, 1]} : vector<2x128xf32> to vector<2x32xf32>
    %639 = arith.truncf %638 : vector<2x32xf32> to vector<2x32xbf16>
    %cst_109 = arith.constant dense<0.000000e+00> : vector<2x384xf32>
    %640 = tpu.matmul %639, %512, %cst_109 {dimension_numbers = #tpu.dot_dimension_numbers<[1], [0], [0], [1], [0, 0, 1, 1], [], []>} : vector<2x32xbf16>, vector<32x384xbf16>, vector<2x384xf32> -> vector<2x384xf32>
    %641 = vector.extract_strided_slice %637 {offsets = [0, 0], sizes = [2, 128], strides = [1, 1]} : vector<2x384xf32> to vector<2x128xf32>
    %642 = vector.extract_strided_slice %640 {offsets = [0, 0], sizes = [2, 128], strides = [1, 1]} : vector<2x384xf32> to vector<2x128xf32>
    %643 = arith.addf %641, %642 : vector<2x128xf32>
    %644 = arith.negf %643 : vector<2x128xf32>
    %645 = math.exp %644 : vector<2x128xf32>
    %cst_110 = arith.constant 1.000000e+00 : f32
    %646 = vector.broadcast %cst_110 : f32 to vector<2x128xf32>
    %647 = arith.addf %646, %645 : vector<2x128xf32>
    %648 = arith.divf %646, %647 : vector<2x128xf32>
    %649 = vector.extract_strided_slice %637 {offsets = [0, 128], sizes = [2, 128], strides = [1, 1]} : vector<2x384xf32> to vector<2x128xf32>
    %650 = vector.extract_strided_slice %640 {offsets = [0, 128], sizes = [2, 128], strides = [1, 1]} : vector<2x384xf32> to vector<2x128xf32>
    %651 = arith.addf %649, %650 : vector<2x128xf32>
    %652 = arith.negf %651 : vector<2x128xf32>
    %653 = math.exp %652 : vector<2x128xf32>
    %cst_111 = arith.constant 1.000000e+00 : f32
    %654 = vector.broadcast %cst_111 : f32 to vector<2x128xf32>
    %655 = arith.addf %654, %653 : vector<2x128xf32>
    %656 = arith.divf %654, %655 : vector<2x128xf32>
    %657 = vector.extract_strided_slice %637 {offsets = [0, 256], sizes = [2, 128], strides = [1, 1]} : vector<2x384xf32> to vector<2x128xf32>
    %658 = vector.extract_strided_slice %640 {offsets = [0, 256], sizes = [2, 128], strides = [1, 1]} : vector<2x384xf32> to vector<2x128xf32>
    %659 = arith.addf %658, %519 : vector<2x128xf32>
    %660 = arith.mulf %648, %659 : vector<2x128xf32>
    %661 = arith.addf %657, %660 : vector<2x128xf32>
    %662 = math.tanh %661 : vector<2x128xf32>
    %663 = arith.subf %636, %662 : vector<2x128xf32>
    %664 = arith.mulf %656, %663 : vector<2x128xf32>
    %665 = arith.addf %662, %664 : vector<2x128xf32>
    %666 = vector.extract_strided_slice %516 {offsets = [10, 0], sizes = [2, 384], strides = [1, 1]} : vector<16x384xf32> to vector<2x384xf32>
    %667 = vector.extract_strided_slice %665 {offsets = [0, 0], sizes = [2, 32], strides = [1, 1]} : vector<2x128xf32> to vector<2x32xf32>
    %668 = arith.truncf %667 : vector<2x32xf32> to vector<2x32xbf16>
    %cst_112 = arith.constant dense<0.000000e+00> : vector<2x384xf32>
    %669 = tpu.matmul %668, %512, %cst_112 {dimension_numbers = #tpu.dot_dimension_numbers<[1], [0], [0], [1], [0, 0, 1, 1], [], []>} : vector<2x32xbf16>, vector<32x384xbf16>, vector<2x384xf32> -> vector<2x384xf32>
    %670 = vector.extract_strided_slice %666 {offsets = [0, 0], sizes = [2, 128], strides = [1, 1]} : vector<2x384xf32> to vector<2x128xf32>
    %671 = vector.extract_strided_slice %669 {offsets = [0, 0], sizes = [2, 128], strides = [1, 1]} : vector<2x384xf32> to vector<2x128xf32>
    %672 = arith.addf %670, %671 : vector<2x128xf32>
    %673 = arith.negf %672 : vector<2x128xf32>
    %674 = math.exp %673 : vector<2x128xf32>
    %cst_113 = arith.constant 1.000000e+00 : f32
    %675 = vector.broadcast %cst_113 : f32 to vector<2x128xf32>
    %676 = arith.addf %675, %674 : vector<2x128xf32>
    %677 = arith.divf %675, %676 : vector<2x128xf32>
    %678 = vector.extract_strided_slice %666 {offsets = [0, 128], sizes = [2, 128], strides = [1, 1]} : vector<2x384xf32> to vector<2x128xf32>
    %679 = vector.extract_strided_slice %669 {offsets = [0, 128], sizes = [2, 128], strides = [1, 1]} : vector<2x384xf32> to vector<2x128xf32>
    %680 = arith.addf %678, %679 : vector<2x128xf32>
    %681 = arith.negf %680 : vector<2x128xf32>
    %682 = math.exp %681 : vector<2x128xf32>
    %cst_114 = arith.constant 1.000000e+00 : f32
    %683 = vector.broadcast %cst_114 : f32 to vector<2x128xf32>
    %684 = arith.addf %683, %682 : vector<2x128xf32>
    %685 = arith.divf %683, %684 : vector<2x128xf32>
    %686 = vector.extract_strided_slice %666 {offsets = [0, 256], sizes = [2, 128], strides = [1, 1]} : vector<2x384xf32> to vector<2x128xf32>
    %687 = vector.extract_strided_slice %669 {offsets = [0, 256], sizes = [2, 128], strides = [1, 1]} : vector<2x384xf32> to vector<2x128xf32>
    %688 = arith.addf %687, %519 : vector<2x128xf32>
    %689 = arith.mulf %677, %688 : vector<2x128xf32>
    %690 = arith.addf %686, %689 : vector<2x128xf32>
    %691 = math.tanh %690 : vector<2x128xf32>
    %692 = arith.subf %665, %691 : vector<2x128xf32>
    %693 = arith.mulf %685, %692 : vector<2x128xf32>
    %694 = arith.addf %691, %693 : vector<2x128xf32>
    %695 = vector.extract_strided_slice %516 {offsets = [12, 0], sizes = [2, 384], strides = [1, 1]} : vector<16x384xf32> to vector<2x384xf32>
    %696 = vector.extract_strided_slice %694 {offsets = [0, 0], sizes = [2, 32], strides = [1, 1]} : vector<2x128xf32> to vector<2x32xf32>
    %697 = arith.truncf %696 : vector<2x32xf32> to vector<2x32xbf16>
    %cst_115 = arith.constant dense<0.000000e+00> : vector<2x384xf32>
    %698 = tpu.matmul %697, %512, %cst_115 {dimension_numbers = #tpu.dot_dimension_numbers<[1], [0], [0], [1], [0, 0, 1, 1], [], []>} : vector<2x32xbf16>, vector<32x384xbf16>, vector<2x384xf32> -> vector<2x384xf32>
    %699 = vector.extract_strided_slice %695 {offsets = [0, 0], sizes = [2, 128], strides = [1, 1]} : vector<2x384xf32> to vector<2x128xf32>
    %700 = vector.extract_strided_slice %698 {offsets = [0, 0], sizes = [2, 128], strides = [1, 1]} : vector<2x384xf32> to vector<2x128xf32>
    %701 = arith.addf %699, %700 : vector<2x128xf32>
    %702 = arith.negf %701 : vector<2x128xf32>
    %703 = math.exp %702 : vector<2x128xf32>
    %cst_116 = arith.constant 1.000000e+00 : f32
    %704 = vector.broadcast %cst_116 : f32 to vector<2x128xf32>
    %705 = arith.addf %704, %703 : vector<2x128xf32>
    %706 = arith.divf %704, %705 : vector<2x128xf32>
    %707 = vector.extract_strided_slice %695 {offsets = [0, 128], sizes = [2, 128], strides = [1, 1]} : vector<2x384xf32> to vector<2x128xf32>
    %708 = vector.extract_strided_slice %698 {offsets = [0, 128], sizes = [2, 128], strides = [1, 1]} : vector<2x384xf32> to vector<2x128xf32>
    %709 = arith.addf %707, %708 : vector<2x128xf32>
    %710 = arith.negf %709 : vector<2x128xf32>
    %711 = math.exp %710 : vector<2x128xf32>
    %cst_117 = arith.constant 1.000000e+00 : f32
    %712 = vector.broadcast %cst_117 : f32 to vector<2x128xf32>
    %713 = arith.addf %712, %711 : vector<2x128xf32>
    %714 = arith.divf %712, %713 : vector<2x128xf32>
    %715 = vector.extract_strided_slice %695 {offsets = [0, 256], sizes = [2, 128], strides = [1, 1]} : vector<2x384xf32> to vector<2x128xf32>
    %716 = vector.extract_strided_slice %698 {offsets = [0, 256], sizes = [2, 128], strides = [1, 1]} : vector<2x384xf32> to vector<2x128xf32>
    %717 = arith.addf %716, %519 : vector<2x128xf32>
    %718 = arith.mulf %706, %717 : vector<2x128xf32>
    %719 = arith.addf %715, %718 : vector<2x128xf32>
    %720 = math.tanh %719 : vector<2x128xf32>
    %721 = arith.subf %694, %720 : vector<2x128xf32>
    %722 = arith.mulf %714, %721 : vector<2x128xf32>
    %723 = arith.addf %720, %722 : vector<2x128xf32>
    %724 = vector.extract_strided_slice %516 {offsets = [14, 0], sizes = [2, 384], strides = [1, 1]} : vector<16x384xf32> to vector<2x384xf32>
    %725 = vector.extract_strided_slice %723 {offsets = [0, 0], sizes = [2, 32], strides = [1, 1]} : vector<2x128xf32> to vector<2x32xf32>
    %726 = arith.truncf %725 : vector<2x32xf32> to vector<2x32xbf16>
    %cst_118 = arith.constant dense<0.000000e+00> : vector<2x384xf32>
    %727 = tpu.matmul %726, %512, %cst_118 {dimension_numbers = #tpu.dot_dimension_numbers<[1], [0], [0], [1], [0, 0, 1, 1], [], []>} : vector<2x32xbf16>, vector<32x384xbf16>, vector<2x384xf32> -> vector<2x384xf32>
    %728 = vector.extract_strided_slice %724 {offsets = [0, 0], sizes = [2, 128], strides = [1, 1]} : vector<2x384xf32> to vector<2x128xf32>
    %729 = vector.extract_strided_slice %727 {offsets = [0, 0], sizes = [2, 128], strides = [1, 1]} : vector<2x384xf32> to vector<2x128xf32>
    %730 = arith.addf %728, %729 : vector<2x128xf32>
    %731 = arith.negf %730 : vector<2x128xf32>
    %732 = math.exp %731 : vector<2x128xf32>
    %cst_119 = arith.constant 1.000000e+00 : f32
    %733 = vector.broadcast %cst_119 : f32 to vector<2x128xf32>
    %734 = arith.addf %733, %732 : vector<2x128xf32>
    %735 = arith.divf %733, %734 : vector<2x128xf32>
    %736 = vector.extract_strided_slice %724 {offsets = [0, 128], sizes = [2, 128], strides = [1, 1]} : vector<2x384xf32> to vector<2x128xf32>
    %737 = vector.extract_strided_slice %727 {offsets = [0, 128], sizes = [2, 128], strides = [1, 1]} : vector<2x384xf32> to vector<2x128xf32>
    %738 = arith.addf %736, %737 : vector<2x128xf32>
    %739 = arith.negf %738 : vector<2x128xf32>
    %740 = math.exp %739 : vector<2x128xf32>
    %cst_120 = arith.constant 1.000000e+00 : f32
    %741 = vector.broadcast %cst_120 : f32 to vector<2x128xf32>
    %742 = arith.addf %741, %740 : vector<2x128xf32>
    %743 = arith.divf %741, %742 : vector<2x128xf32>
    %744 = vector.extract_strided_slice %724 {offsets = [0, 256], sizes = [2, 128], strides = [1, 1]} : vector<2x384xf32> to vector<2x128xf32>
    %745 = vector.extract_strided_slice %727 {offsets = [0, 256], sizes = [2, 128], strides = [1, 1]} : vector<2x384xf32> to vector<2x128xf32>
    %746 = arith.addf %745, %519 : vector<2x128xf32>
    %747 = arith.mulf %735, %746 : vector<2x128xf32>
    %748 = arith.addf %744, %747 : vector<2x128xf32>
    %749 = math.tanh %748 : vector<2x128xf32>
    %750 = arith.subf %723, %749 : vector<2x128xf32>
    %751 = arith.mulf %743, %750 : vector<2x128xf32>
    %752 = arith.addf %749, %751 : vector<2x128xf32>
    %753 = tpu.concatenate %549, %578, %607, %636, %665, %694, %723, %752 in 0 : vector<2x128xf32>, vector<2x128xf32>, vector<2x128xf32>, vector<2x128xf32>, vector<2x128xf32>, vector<2x128xf32>, vector<2x128xf32>, vector<2x128xf32> -> vector<16x128xf32>
    %c2 = arith.constant 2 : index
    %c0_121 = arith.constant 0 : index
    %c0_122 = arith.constant 0 : index
    %754 = vector.load %arg14[%c2, %c0_121, %c0_122] : memref<3x16x128xf32, #tpu.memory_space<vmem>>, vector<1x16x128xf32>
    %755 = vector.shape_cast %754 : vector<1x16x128xf32> to vector<16x128xf32>
    %756 = vector.shape_cast %753 : vector<16x128xf32> to vector<1x16x128xf32>
    tpu.vector_store %arg14[%c2, %c0_121, %c0_122], %756 {strides = array<i32>} : memref<3x16x128xf32, #tpu.memory_space<vmem>>, vector<1x16x128xf32>,
    return
  }
  func.func @transform_0(%arg0: i32) -> (i32, i32) {
    %c0_i32 = arith.constant 0 : i32
    %c0_i32_0 = arith.constant 0 : i32
    %c0_i32_1 = arith.constant 0 : i32
    return %c0_i32, %c0_i32_0 : i32, i32
  }
  func.func @transform_1(%arg0: i32) -> (i32, i32) {
    %c0_i32 = arith.constant 0 : i32
    %c0_i32_0 = arith.constant 0 : i32
    %c0_i32_1 = arith.constant 0 : i32
    return %c0_i32, %c0_i32_0 : i32, i32
  }
  func.func @transform_2(%arg0: i32) -> (i32, i32) {
    %c0_i32 = arith.constant 0 : i32
    %c0_i32_0 = arith.constant 0 : i32
    %c0_i32_1 = arith.constant 0 : i32
    return %c0_i32, %c0_i32_0 : i32, i32
  }
  func.func @transform_3(%arg0: i32) -> (i32, i32) {
    %c0_i32 = arith.constant 0 : i32
    %c0_i32_0 = arith.constant 0 : i32
    %c0_i32_1 = arith.constant 0 : i32
    return %c0_i32, %c0_i32_0 : i32, i32
  }
  func.func @transform_4(%arg0: i32) -> (i32, i32) {
    %c0_i32 = arith.constant 0 : i32
    %c0_i32_0 = arith.constant 0 : i32
    %c0_i32_1 = arith.constant 0 : i32
    return %c0_i32, %c0_i32_0 : i32, i32
  }
  func.func @transform_7(%arg0: i32) -> (i32, i32) {
    %c0_i32 = arith.constant 0 : i32
    %c0_i32_0 = arith.constant 0 : i32
    %c0_i32_1 = arith.constant 0 : i32
    return %c0_i32, %c0_i32_0 : i32, i32
  }
  func.func @transform_8(%arg0: i32) -> (i32, i32) {
    %c0_i32 = arith.constant 0 : i32
    %c0_i32_0 = arith.constant 0 : i32
    %c0_i32_1 = arith.constant 0 : i32
    return %c0_i32, %c0_i32_0 : i32, i32
  }
  func.func @transform_11(%arg0: i32) -> (i32, i32) {
    %c0_i32 = arith.constant 0 : i32
    %c0_i32_0 = arith.constant 0 : i32
    %c0_i32_1 = arith.constant 0 : i32
    return %c0_i32, %c0_i32_0 : i32, i32
  }
  func.func @transform_12(%arg0: i32) -> (i32, i32) {
    %c0_i32 = arith.constant 0 : i32
    %c0_i32_0 = arith.constant 0 : i32
    %c0_i32_1 = arith.constant 0 : i32
    return %c0_i32, %c0_i32_0 : i32, i32
  }
  func.func @transform_13(%arg0: i32) -> (i32, i32, i32) {
    %c0_i32 = arith.constant 0 : i32
    %c0_i32_0 = arith.constant 0 : i32
    %c0_i32_1 = arith.constant 0 : i32
    %c0_i32_2 = arith.constant 0 : i32
    return %c0_i32, %c0_i32_0, %c0_i32_1 : i32, i32, i32
  }
}

</mosaic_0001>

<llo_original>
// kernel: gru_stack_forward.1
$region0: #{gru_stack_forward.1}
  #allocation0 [shape = 'u32[]', space=smem, size = 0x4, offset = 0x4, fixed_abs, tag = 'smem constant byte address 0x4 - core index']
  #allocation1 [shape = 'u32[144,128]{1,0:T(1,128)}', space=vmem, size = 0x12000, scoped, tag = 'internal scratch']
  #allocation2 [shape = 'bf16[128,384]{1,0:T(16,128)(2,1)}', space=vmem, size = 0x18000, scoped, tag = 'scratch operand']
  #allocation3 [shape = 'bf16[32,384]{1,0:T(16,128)(2,1)}', space=vmem, size = 0x6000, scoped, tag = 'scratch operand']
  #allocation4 [shape = 'bf16[128,384]{1,0:T(16,128)(2,1)}', space=vmem, size = 0x18000, scoped, tag = 'scratch operand']
  #allocation5 [shape = 'bf16[32,384]{1,0:T(16,128)(2,1)}', space=vmem, size = 0x6000, scoped, tag = 'scratch operand']
  #allocation6 [shape = 's32[4]{0}', space=sflag, size = 0x10, scoped, tag = 'scratch operand']
  #allocation7 [shape = 's32[]', space=sflag, size = 0x4, offset = 0, fixed_abs, tag = 'sflag constant byte address 0x0 - dummy sync flag']
  #allocation8 [shape = 's32[]', space=sflag, size = 0x4, offset = 0, fixed_abs, tag = 'sflag constant byte address 0x0 - dummy sync flag']
  #allocation9 [shape = 's32[]', space=sflag, size = 0x4, offset = 0, fixed_abs, tag = 'sflag constant byte address 0x0 - dummy sync flag']
  #allocation10 [shape = 's32[]', space=sflag, size = 0x4, offset = 0, fixed_abs, tag = 'sflag constant byte address 0x0 - dummy sync flag']
  %s0 = inlined_call_operand.vmem [shape: bf16[16,16], index: 0, kind: input, shape index: {}]
  %s1 = inlined_call_operand.vmem [shape: bf16[16,384], index: 1, kind: input, shape index: {}]
  %s2 = inlined_call_operand.vmem [shape: bf16[32,384], index: 2, kind: input, shape index: {}]
  %s3 = inlined_call_operand.vmem [shape: f32[1,384], index: 3, kind: input, shape index: {}]
  %s4 = inlined_call_operand.vmem [shape: f32[1,128], index: 4, kind: input, shape index: {}]
  %s5 = inlined_call_operand.vmem [shape: bf16[128,384], index: 5, kind: input, shape index: {}]
  %s6 = inlined_call_operand.vmem [shape: bf16[32,384], index: 6, kind: input, shape index: {}]
  %s7 = inlined_call_operand.vmem [shape: f32[1,384], index: 7, kind: input, shape index: {}]
  %s8 = inlined_call_operand.vmem [shape: f32[1,128], index: 8, kind: input, shape index: {}]
  %s9 = inlined_call_operand.vmem [shape: bf16[128,384], index: 9, kind: input, shape index: {}]
  %s10 = inlined_call_operand.vmem [shape: bf16[32,384], index: 10, kind: input, shape index: {}]
  %s11 = inlined_call_operand.vmem [shape: f32[1,384], index: 11, kind: input, shape index: {}]
  %s12 = inlined_call_operand.vmem [shape: f32[1,128], index: 12, kind: input, shape index: {}]
  %s13 = inlined_call_operand.vmem [shape: f32[3,16,128], index: 13, kind: output, shape index: {}]
  %s14 = sld [smem:[#allocation0]]
  $region194: #{gru_stack_forward.1} parent=0
    _
  %s16 = ssub.s32 1, %s14
  %s17 = scalar_select 0, %s16, %s14
  // Predicated region
  $region2: #{gru_stack_forward.1} parent=0 // pred_check
    _
  $region3: #{gru_stack_forward.1} parent=0 // pred_check_branch
    %19 = sbr.rel (0) target = $region5
  $region4: #{gru_stack_forward.1} parent=0 // pred_region
    _
  $region5: #{gru_stack_forward.1} parent=0 // pred_fallthru
    _
  // Predicated region
  $region6: #{gru_stack_forward.1} parent=0 // pred_check
    _
  $region7: #{gru_stack_forward.1} parent=0 // pred_check_branch
    %21 = sbr.rel (0) target = $region9
  $region8: #{gru_stack_forward.1} parent=0 // pred_region
    _
  $region9: #{gru_stack_forward.1} parent=0 // pred_fallthru
    _
  // Predicated region
  $region10: #{gru_stack_forward.1} parent=0 // pred_check
    _
  $region11: #{gru_stack_forward.1} parent=0 // pred_check_branch
    %23 = sbr.rel (0) target = $region13
  $region12: #{gru_stack_forward.1} parent=0 // pred_region
    _
  $region13: #{gru_stack_forward.1} parent=0 // pred_fallthru
    _
  // Predicated region
  $region14: #{gru_stack_forward.1} parent=0 // pred_check
    _
  $region15: #{gru_stack_forward.1} parent=0 // pred_check_branch
    %25 = sbr.rel (0) target = $region17
  $region16: #{gru_stack_forward.1} parent=0 // pred_region
    _
  $region17: #{gru_stack_forward.1} parent=0 // pred_fallthru
    _
  // Predicated region
  $region18: #{gru_stack_forward.1} parent=0 // pred_check
    _
  $region19: #{gru_stack_forward.1} parent=0 // pred_check_branch
    %27 = sbr.rel (0) target = $region21
  $region20: #{gru_stack_forward.1} parent=0 // pred_region
    _
  $region21: #{gru_stack_forward.1} parent=0 // pred_fallthru
    _
  // Predicated region
  $region22: #{gru_stack_forward.1} parent=0 // pred_check
    _
  $region23: #{gru_stack_forward.1} parent=0 // pred_check_branch
    %29 = sbr.rel (0) target = $region25
  $region24: #{gru_stack_forward.1} parent=0 // pred_region
    _
  $region25: #{gru_stack_forward.1} parent=0 // pred_fallthru
    _
  // Predicated region
  $region26: #{gru_stack_forward.1} parent=0 // pred_check
    _
  $region27: #{gru_stack_forward.1} parent=0 // pred_check_branch
    %31 = sbr.rel (0) target = $region29
  $region28: #{gru_stack_forward.1} parent=0 // pred_region
    _
  $region29: #{gru_stack_forward.1} parent=0 // pred_fallthru
    _
  // Predicated region
  $region30: #{gru_stack_forward.1} parent=0 // pred_check
    _
  $region31: #{gru_stack_forward.1} parent=0 // pred_check_branch
    %33 = sbr.rel (0) target = $region33
  $region32: #{gru_stack_forward.1} parent=0 // pred_region
    _
  $region33: #{gru_stack_forward.1} parent=0 // pred_fallthru
    _
  // Predicated region
  $region34: #{gru_stack_forward.1} parent=0 // pred_check
    _
  $region35: #{gru_stack_forward.1} parent=0 // pred_check_branch
    %35 = sbr.rel (0) target = $region37
  $region36: #{gru_stack_forward.1} parent=0 // pred_region
    _
  $region37: #{gru_stack_forward.1} parent=0 // pred_fallthru
    _
  %p38 = scmp.lt.u32.totalorder 4, 8
  %p39 = pneg %p38
  // Predicated region
  $region38: #{gru_stack_forward.1} parent=0 // pred_check
    _
  $region39: #{gru_stack_forward.1} parent=0 // pred_check_branch
    %41 = sbr.rel (%p38) target = $region41
  $region40: #{gru_stack_forward.1} parent=0 // pred_region
    %s150 = sand.u32 4, 7
    %p151 = scmp.eq.s32.totalorder %s150, 0
    %p152 = pneg %p151
    // Predicated region
    $region53: #{gru_stack_forward.1} parent=40 // pred_check
      _
    $region54: #{gru_stack_forward.1} parent=40 // pred_check_branch
      %154 = sbr.rel (%p151) target = $region56
    $region55: #{gru_stack_forward.1} parent=40 // pred_region
      %s155 = sand.u32 4, 7
      %s156 = ssub.s32 4, %s155
      %s157 = scalar_lea.vmem %s5, %s156
      %s158 = ssub.s32 4, %s155
      %s159 = scalar_lea.vmem [#allocation2], %s158
      loop: start=0, step=1, limit=1
      $region57: #{gru_stack_forward.1} parent=55 // loop_pre_header
        _
      $region58: #{gru_stack_forward.1} parent=55 // loop_header
        %s161 = sphi 0, %s165
        %p162 = scmp.ge.s32.totalorder %s161, 1
        %s166 = sphi %s5, %s5
        %s167 = sphi [#allocation2], [#allocation2]
      $region59: #{gru_stack_forward.1} parent=55 // loop_header_branch
        %164 = sbr.rel (%p162) target = $region63
      $region60: #{gru_stack_forward.1} parent=55 // loop_body
        _
      $region61: #{gru_stack_forward.1} parent=55 // loop_footer
        %s165 = sadd.s32 1, %s161
      $region62: #{gru_stack_forward.1} parent=55 // loop_footer_branch
        %160 = sbr.rel target = $region58
      $region63: #{gru_stack_forward.1} parent=55 // loop_exit
        _
      %s168 = sshllo.u32 0, %s155
      loop: start=0, step=1, limit=1
      $region64: #{gru_stack_forward.1} parent=55 // loop_pre_header
        _
      $region65: #{gru_stack_forward.1} parent=55 // loop_header
        %s170 = sphi 0, %s174
        %p171 = scmp.ge.s32.totalorder %s170, 1
        %s175 = sphi %s157, %s157
        %s176 = sphi %s159, %s159
      $region66: #{gru_stack_forward.1} parent=55 // loop_header_branch
        %173 = sbr.rel (%p171) target = $region70
      $region67: #{gru_stack_forward.1} parent=55 // loop_body
        %v177 = vld [vmem:[%s175] sm:%s168]
        %178 = vst [vmem:[%s176] sm:%s168] %v177
        %v179 = vld [vmem:[%s175 + $0xc] sm:%s168]
        %180 = vst [vmem:[%s176 + $0x4] sm:%s168] %v179
        %v181 = vld [vmem:[%s175 + $0x4] sm:%s168]
        %182 = vst [vmem:[%s176 + $0x8] sm:%s168] %v181
        %v183 = vld [vmem:[%s175 + $0x10] sm:%s168]
        %184 = vst [vmem:[%s176 + $0xc] sm:%s168] %v183
        %v185 = vld [vmem:[%s175 + $0x8] sm:%s168]
        %186 = vst [vmem:[%s176 + $0x10] sm:%s168] %v185
        %v187 = vld [vmem:[%s175 + $0x14] sm:%s168]
        %188 = vst [vmem:[%s176 + $0x14] sm:%s168] %v187
        %v189 = vld [vmem:[%s175 + $0x18] sm:%s168]
        %190 = vst [vmem:[%s176 + $0x18] sm:%s168] %v189
        %v191 = vld [vmem:[%s175 + $0x24] sm:%s168]
        %192 = vst [vmem:[%s176 + $0x1c] sm:%s168] %v191
        %v193 = vld [vmem:[%s175 + $0x1c] sm:%s168]
        %194 = vst [vmem:[%s176 + $0x20] sm:%s168] %v193
        %v195 = vld [vmem:[%s175 + $0x28] sm:%s168]
        %196 = vst [vmem:[%s176 + $0x24] sm:%s168] %v195
        %v197 = vld [vmem:[%s175 + $0x20] sm:%s168]
        %198 = vst [vmem:[%s176 + $0x28] sm:%s168] %v197
        %v199 = vld [vmem:[%s175 + $0x2c] sm:%s168]
        %200 = vst [vmem:[%s176 + $0x2c] sm:%s168] %v199
        %v201 = vld [vmem:[%s175 + $0x30] sm:%s168]
        %202 = vst [vmem:[%s176 + $0x30] sm:%s168] %v201
        %v203 = vld [vmem:[%s175 + $0x3c] sm:%s168]
        %204 = vst [vmem:[%s176 + $0x34] sm:%s168] %v203
        %v205 = vld [vmem:[%s175 + $0x34] sm:%s168]
        %206 = vst [vmem:[%s176 + $0x38] sm:%s168] %v205
        %v207 = vld [vmem:[%s175 + $0x40] sm:%s168]
        %208 = vst [vmem:[%s176 + $0x3c] sm:%s168] %v207
        %v209 = vld [vmem:[%s175 + $0x38] sm:%s168]
        %210 = vst [vmem:[%s176 + $0x40] sm:%s168] %v209
        %v211 = vld [vmem:[%s175 + $0x44] sm:%s168]
        %212 = vst [vmem:[%s176 + $0x44] sm:%s168] %v211
        %v213 = vld [vmem:[%s175 + $0x48] sm:%s168]
        %214 = vst [vmem:[%s176 + $0x48] sm:%s168] %v213
        %v215 = vld [vmem:[%s175 + $0x54] sm:%s168]
        %216 = vst [vmem:[%s176 + $0x4c] sm:%s168] %v215
        %v217 = vld [vmem:[%s175 + $0x4c] sm:%s168]
        %218 = vst [vmem:[%s176 + $0x50] sm:%s168] %v217
        %v219 = vld [vmem:[%s175 + $0x58] sm:%s168]
        %220 = vst [vmem:[%s176 + $0x54] sm:%s168] %v219
        %v221 = vld [vmem:[%s175 + $0x50] sm:%s168]
        %222 = vst [vmem:[%s176 + $0x58] sm:%s168] %v221
        %v223 = vld [vmem:[%s175 + $0x5c] sm:%s168]
        %224 = vst [vmem:[%s176 + $0x5c] sm:%s168] %v223
        %v225 = vld [vmem:[%s175 + $0x60] sm:%s168]
        %226 = vst [vmem:[%s176 + $0x60] sm:%s168] %v225
        %v227 = vld [vmem:[%s175 + $0x6c] sm:%s168]
        %228 = vst [vmem:[%s176 + $0x64] sm:%s168] %v227
        %v229 = vld [vmem:[%s175 + $0x64] sm:%s168]
        %230 = vst [vmem:[%s176 + $0x68] sm:%s168] %v229
        %v231 = vld [vmem:[%s175 + $0x70] sm:%s168]
        %232 = vst [vmem:[%s176 + $0x6c] sm:%s168] %v231
        %v233 = vld [vmem:[%s175 + $0x68] sm:%s168]
        %234 = vst [vmem:[%s176 + $0x70] sm:%s168] %v233
        %v235 = vld [vmem:[%s175 + $0x74] sm:%s168]
        %236 = vst [vmem:[%s176 + $0x74] sm:%s168] %v235
        %v237 = vld [vmem:[%s175 + $0x78] sm:%s168]
        %238 = vst [vmem:[%s176 + $0x78] sm:%s168] %v237
        %v239 = vld [vmem:[%s175 + $0x84] sm:%s168]
        %240 = vst [vmem:[%s176 + $0x7c] sm:%s168] %v239
        %v241 = vld [vmem:[%s175 + $0x7c] sm:%s168]
        %242 = vst [vmem:[%s176 + $0x80] sm:%s168] %v241
        %v243 = vld [vmem:[%s175 + $0x88] sm:%s168]
        %244 = vst [vmem:[%s176 + $0x84] sm:%s168] %v243
        %v245 = vld [vmem:[%s175 + $0x80] sm:%s168]
        %246 = vst [vmem:[%s176 + $0x88] sm:%s168] %v245
        %v247 = vld [vmem:[%s175 + $0x8c] sm:%s168]
        %248 = vst [vmem:[%s176 + $0x8c] sm:%s168] %v247
        %v249 = vld [vmem:[%s175 + $0x90] sm:%s168]
        %250 = vst [vmem:[%s176 + $0x90] sm:%s168] %v249
        %v251 = vld [vmem:[%s175 + $0x9c] sm:%s168]
        %252 = vst [vmem:[%s176 + $0x94] sm:%s168] %v251
        %v253 = vld [vmem:[%s175 + $0x94] sm:%s168]
        %254 = vst [vmem:[%s176 + $0x98] sm:%s168] %v253
        %v255 = vld [vmem:[%s175 + $0xa0] sm:%s168]
        %256 = vst [vmem:[%s176 + $0x9c] sm:%s168] %v255
        %v257 = vld [vmem:[%s175 + $0x98] sm:%s168]
        %258 = vst [vmem:[%s176 + $0xa0] sm:%s168] %v257
        %v259 = vld [vmem:[%s175 + $0xa4] sm:%s168]
        %260 = vst [vmem:[%s176 + $0xa4] sm:%s168] %v259
        %v261 = vld [vmem:[%s175 + $0xa8] sm:%s168]
        %262 = vst [vmem:[%s176 + $0xa8] sm:%s168] %v261
        %v263 = vld [vmem:[%s175 + $0xb4] sm:%s168]
        %264 = vst [vmem:[%s176 + $0xac] sm:%s168] %v263
        %v265 = vld [vmem:[%s175 + $0xac] sm:%s168]
        %266 = vst [vmem:[%s176 + $0xb0] sm:%s168] %v265
        %v267 = vld [vmem:[%s175 + $0xb8] sm:%s168]
        %268 = vst [vmem:[%s176 + $0xb4] sm:%s168] %v267
        %v269 = vld [vmem:[%s175 + $0xb0] sm:%s168]
        %270 = vst [vmem:[%s176 + $0xb8] sm:%s168] %v269
        %v271 = vld [vmem:[%s175 + $0xbc] sm:%s168]
        %272 = vst [vmem:[%s176 + $0xbc] sm:%s168] %v271
      $region68: #{gru_stack_forward.1} parent=55 // loop_footer
        %s174 = sadd.s32 1, %s170
      $region69: #{gru_stack_forward.1} parent=55 // loop_footer_branch
        %169 = sbr.rel target = $region65
      $region70: #{gru_stack_forward.1} parent=55 // loop_exit
        _
    $region56: #{gru_stack_forward.1} parent=40 // pred_fallthru
      _
  $region41: #{gru_stack_forward.1} parent=0 // pred_fallthru
    _
  // Predicated region
  $region42: #{gru_stack_forward.1} parent=0 // pred_check
    %p42 = pneg %p38
  $region43: #{gru_stack_forward.1} parent=0 // pred_check_branch
    %44 = sbr.rel (%p42) target = $region45
  $region44: #{gru_stack_forward.1} parent=0 // pred_region
    %s45 = sshllo.u32 0, 4
    loop: start=0, step=1, limit=1
    $region46: #{gru_stack_forward.1} parent=44 // loop_pre_header
      _
    $region47: #{gru_stack_forward.1} parent=44 // loop_header
      %s47 = sphi 0, %s51
      %p48 = scmp.ge.s32.totalorder %s47, 1
      %s52 = sphi %s5, %s5
      %s53 = sphi [#allocation2], [#allocation2]
    $region48: #{gru_stack_forward.1} parent=44 // loop_header_branch
      %50 = sbr.rel (%p48) target = $region52
    $region49: #{gru_stack_forward.1} parent=44 // loop_body
      %v54 = vld [vmem:[%s52] sm:%s45]
      %55 = vst [vmem:[%s53] sm:%s45] %v54
      %v56 = vld [vmem:[%s52 + $0xc] sm:%s45]
      %57 = vst [vmem:[%s53 + $0x4] sm:%s45] %v56
      %v58 = vld [vmem:[%s52 + $0x4] sm:%s45]
      %59 = vst [vmem:[%s53 + $0x8] sm:%s45] %v58
      %v60 = vld [vmem:[%s52 + $0x10] sm:%s45]
      %61 = vst [vmem:[%s53 + $0xc] sm:%s45] %v60
      %v62 = vld [vmem:[%s52 + $0x8] sm:%s45]
      %63 = vst [vmem:[%s53 + $0x10] sm:%s45] %v62
      %v64 = vld [vmem:[%s52 + $0x14] sm:%s45]
      %65 = vst [vmem:[%s53 + $0x14] sm:%s45] %v64
      %v66 = vld [vmem:[%s52 + $0x18] sm:%s45]
      %67 = vst [vmem:[%s53 + $0x18] sm:%s45] %v66
      %v68 = vld [vmem:[%s52 + $0x24] sm:%s45]
      %69 = vst [vmem:[%s53 + $0x1c] sm:%s45] %v68
      %v70 = vld [vmem:[%s52 + $0x1c] sm:%s45]
      %71 = vst [vmem:[%s53 + $0x20] sm:%s45] %v70
      %v72 = vld [vmem:[%s52 + $0x28] sm:%s45]
      %73 = vst [vmem:[%s53 + $0x24] sm:%s45] %v72
      %v74 = vld [vmem:[%s52 + $0x20] sm:%s45]
      %75 = vst [vmem:[%s53 + $0x28] sm:%s45] %v74
      %v76 = vld [vmem:[%s52 + $0x2c] sm:%s45]
      %77 = vst [vmem:[%s53 + $0x2c] sm:%s45] %v76
      %v78 = vld [vmem:[%s52 + $0x30] sm:%s45]
      %79 = vst [vmem:[%s53 + $0x30] sm:%s45] %v78
      %v80 = vld [vmem:[%s52 + $0x3c] sm:%s45]
      %81 = vst [vmem:[%s53 + $0x34] sm:%s45] %v80
      %v82 = vld [vmem:[%s52 + $0x34] sm:%s45]
      %83 = vst [vmem:[%s53 + $0x38] sm:%s45] %v82
      %v84 = vld [vmem:[%s52 + $0x40] sm:%s45]
      %85 = vst [vmem:[%s53 + $0x3c] sm:%s45] %v84
      %v86 = vld [vmem:[%s52 + $0x38] sm:%s45]
      %87 = vst [vmem:[%s53 + $0x40] sm:%s45] %v86
      %v88 = vld [vmem:[%s52 + $0x44] sm:%s45]
      %89 = vst [vmem:[%s53 + $0x44] sm:%s45] %v88
      %v90 = vld [vmem:[%s52 + $0x48] sm:%s45]
      %91 = vst [vmem:[%s53 + $0x48] sm:%s45] %v90
      %v92 = vld [vmem:[%s52 + $0x54] sm:%s45]
      %93 = vst [vmem:[%s53 + $0x4c] sm:%s45] %v92
      %v94 = vld [vmem:[%s52 + $0x4c] sm:%s45]
      %95 = vst [vmem:[%s53 + $0x50] sm:%s45] %v94
      %v96 = vld [vmem:[%s52 + $0x58] sm:%s45]
      %97 = vst [vmem:[%s53 + $0x54] sm:%s45] %v96
      %v98 = vld [vmem:[%s52 + $0x50] sm:%s45]
      %99 = vst [vmem:[%s53 + $0x58] sm:%s45] %v98
      %v100 = vld [vmem:[%s52 + $0x5c] sm:%s45]
      %101 = vst [vmem:[%s53 + $0x5c] sm:%s45] %v100
      %v102 = vld [vmem:[%s52 + $0x60] sm:%s45]
      %103 = vst [vmem:[%s53 + $0x60] sm:%s45] %v102
      %v104 = vld [vmem:[%s52 + $0x6c] sm:%s45]
      %105 = vst [vmem:[%s53 + $0x64] sm:%s45] %v104
      %v106 = vld [vmem:[%s52 + $0x64] sm:%s45]
      %107 = vst [vmem:[%s53 + $0x68] sm:%s45] %v106
      %v108 = vld [vmem:[%s52 + $0x70] sm:%s45]
      %109 = vst [vmem:[%s53 + $0x6c] sm:%s45] %v108
      %v110 = vld [vmem:[%s52 + $0x68] sm:%s45]
      %111 = vst [vmem:[%s53 + $0x70] sm:%s45] %v110
      %v112 = vld [vmem:[%s52 + $0x74] sm:%s45]
      %113 = vst [vmem:[%s53 + $0x74] sm:%s45] %v112
      %v114 = vld [vmem:[%s52 + $0x78] sm:%s45]
      %115 = vst [vmem:[%s53 + $0x78] sm:%s45] %v114
      %v116 = vld [vmem:[%s52 + $0x84] sm:%s45]
      %117 = vst [vmem:[%s53 + $0x7c] sm:%s45] %v116
      %v118 = vld [vmem:[%s52 + $0x7c] sm:%s45]
      %119 = vst [vmem:[%s53 + $0x80] sm:%s45] %v118
      %v120 = vld [vmem:[%s52 + $0x88] sm:%s45]
      %121 = vst [vmem:[%s53 + $0x84] sm:%s45] %v120
      %v122 = vld [vmem:[%s52 + $0x80] sm:%s45]
      %123 = vst [vmem:[%s53 + $0x88] sm:%s45] %v122
      %v124 = vld [vmem:[%s52 + $0x8c] sm:%s45]
      %125 = vst [vmem:[%s53 + $0x8c] sm:%s45] %v124
      %v126 = vld [vmem:[%s52 + $0x90] sm:%s45]
      %127 = vst [vmem:[%s53 + $0x90] sm:%s45] %v126
      %v128 = vld [vmem:[%s52 + $0x9c] sm:%s45]
      %129 = vst [vmem:[%s53 + $0x94] sm:%s45] %v128
      %v130 = vld [vmem:[%s52 + $0x94] sm:%s45]
      %131 = vst [vmem:[%s53 + $0x98] sm:%s45] %v130
      %v132 = vld [vmem:[%s52 + $0xa0] sm:%s45]
      %133 = vst [vmem:[%s53 + $0x9c] sm:%s45] %v132
      %v134 = vld [vmem:[%s52 + $0x98] sm:%s45]
      %135 = vst [vmem:[%s53 + $0xa0] sm:%s45] %v134
      %v136 = vld [vmem:[%s52 + $0xa4] sm:%s45]
      %137 = vst [vmem:[%s53 + $0xa4] sm:%s45] %v136
      %v138 = vld [vmem:[%s52 + $0xa8] sm:%s45]
      %139 = vst [vmem:[%s53 + $0xa8] sm:%s45] %v138
      %v140 = vld [vmem:[%s52 + $0xb4] sm:%s45]
      %141 = vst [vmem:[%s53 + $0xac] sm:%s45] %v140
      %v142 = vld [vmem:[%s52 + $0xac] sm:%s45]
      %143 = vst [vmem:[%s53 + $0xb0] sm:%s45] %v142
      %v144 = vld [vmem:[%s52 + $0xb8] sm:%s45]
      %145 = vst [vmem:[%s53 + $0xb4] sm:%s45] %v144
      %v146 = vld [vmem:[%s52 + $0xb0] sm:%s45]
      %147 = vst [vmem:[%s53 + $0xb8] sm:%s45] %v146
      %v148 = vld [vmem:[%s52 + $0xbc] sm:%s45]
      %149 = vst [vmem:[%s53 + $0xbc] sm:%s45] %v148
    $region50: #{gru_stack_forward.1} parent=44 // loop_footer
      %s51 = sadd.s32 1, %s47
    $region51: #{gru_stack_forward.1} parent=44 // loop_footer_branch
      %46 = sbr.rel target = $region47
    $region52: #{gru_stack_forward.1} parent=44 // loop_exit
      _
  $region45: #{gru_stack_forward.1} parent=0 // pred_fallthru
    _
  // Predicated region
  $region71: #{gru_stack_forward.1} parent=0 // pred_check
    _
  $region72: #{gru_stack_forward.1} parent=0 // pred_check_branch
    %275 = sbr.rel (0) target = $region74
  $region73: #{gru_stack_forward.1} parent=0 // pred_region
    %276 = vsyncadd [#allocation6], 3072
  $region74: #{gru_stack_forward.1} parent=0 // pred_fallthru
    _
  %s277 = scalar_lea.sflag [#allocation6], 1
  %p279 = scmp.lt.u32.totalorder 4, 8
  %p280 = pneg %p279
  // Predicated region
  $region75: #{gru_stack_forward.1} parent=0 // pred_check
    _
  $region76: #{gru_stack_forward.1} parent=0 // pred_check_branch
    %282 = sbr.rel (%p279) target = $region78
  $region77: #{gru_stack_forward.1} parent=0 // pred_region
    %s319 = sand.u32 4, 7
    %p320 = scmp.eq.s32.totalorder %s319, 0
    %p321 = pneg %p320
    // Predicated region
    $region90: #{gru_stack_forward.1} parent=77 // pred_check
      _
    $region91: #{gru_stack_forward.1} parent=77 // pred_check_branch
      %323 = sbr.rel (%p320) target = $region93
    $region92: #{gru_stack_forward.1} parent=77 // pred_region
      %s324 = sand.u32 4, 7
      %s325 = ssub.s32 4, %s324
      %s326 = scalar_lea.vmem %s6, %s325
      %s327 = ssub.s32 4, %s324
      %s328 = scalar_lea.vmem [#allocation3], %s327
      loop: start=0, step=1, limit=1
      $region94: #{gru_stack_forward.1} parent=92 // loop_pre_header
        _
      $region95: #{gru_stack_forward.1} parent=92 // loop_header
        %s330 = sphi 0, %s334
        %p331 = scmp.ge.s32.totalorder %s330, 1
        %s335 = sphi %s6, %s6
        %s336 = sphi [#allocation3], [#allocation3]
      $region96: #{gru_stack_forward.1} parent=92 // loop_header_branch
        %333 = sbr.rel (%p331) target = $region100
      $region97: #{gru_stack_forward.1} parent=92 // loop_body
        _
      $region98: #{gru_stack_forward.1} parent=92 // loop_footer
        %s334 = sadd.s32 1, %s330
      $region99: #{gru_stack_forward.1} parent=92 // loop_footer_branch
        %329 = sbr.rel target = $region95
      $region100: #{gru_stack_forward.1} parent=92 // loop_exit
        _
      %s337 = sshllo.u32 0, %s324
      loop: start=0, step=1, limit=1
      $region101: #{gru_stack_forward.1} parent=92 // loop_pre_header
        _
      $region102: #{gru_stack_forward.1} parent=92 // loop_header
        %s339 = sphi 0, %s343
        %p340 = scmp.ge.s32.totalorder %s339, 1
        %s344 = sphi %s326, %s326
        %s345 = sphi %s328, %s328
      $region103: #{gru_stack_forward.1} parent=92 // loop_header_branch
        %342 = sbr.rel (%p340) target = $region107
      $region104: #{gru_stack_forward.1} parent=92 // loop_body
        %v346 = vld [vmem:[%s344] sm:%s337]
        %347 = vst [vmem:[%s345] sm:%s337] %v346
        %v348 = vld [vmem:[%s344 + $0xc] sm:%s337]
        %349 = vst [vmem:[%s345 + $0x4] sm:%s337] %v348
        %v350 = vld [vmem:[%s344 + $0x4] sm:%s337]
        %351 = vst [vmem:[%s345 + $0x8] sm:%s337] %v350
        %v352 = vld [vmem:[%s344 + $0x10] sm:%s337]
        %353 = vst [vmem:[%s345 + $0xc] sm:%s337] %v352
        %v354 = vld [vmem:[%s344 + $0x8] sm:%s337]
        %355 = vst [vmem:[%s345 + $0x10] sm:%s337] %v354
        %v356 = vld [vmem:[%s344 + $0x14] sm:%s337]
        %357 = vst [vmem:[%s345 + $0x14] sm:%s337] %v356
        %v358 = vld [vmem:[%s344 + $0x18] sm:%s337]
        %359 = vst [vmem:[%s345 + $0x18] sm:%s337] %v358
        %v360 = vld [vmem:[%s344 + $0x24] sm:%s337]
        %361 = vst [vmem:[%s345 + $0x1c] sm:%s337] %v360
        %v362 = vld [vmem:[%s344 + $0x1c] sm:%s337]
        %363 = vst [vmem:[%s345 + $0x20] sm:%s337] %v362
        %v364 = vld [vmem:[%s344 + $0x28] sm:%s337]
        %365 = vst [vmem:[%s345 + $0x24] sm:%s337] %v364
        %v366 = vld [vmem:[%s344 + $0x20] sm:%s337]
        %367 = vst [vmem:[%s345 + $0x28] sm:%s337] %v366
        %v368 = vld [vmem:[%s344 + $0x2c] sm:%s337]
        %369 = vst [vmem:[%s345 + $0x2c] sm:%s337] %v368
      $region105: #{gru_stack_forward.1} parent=92 // loop_footer
        %s343 = sadd.s32 1, %s339
      $region106: #{gru_stack_forward.1} parent=92 // loop_footer_branch
        %338 = sbr.rel target = $region102
      $region107: #{gru_stack_forward.1} parent=92 // loop_exit
        _
    $region93: #{gru_stack_forward.1} parent=77 // pred_fallthru
      _
  $region78: #{gru_stack_forward.1} parent=0 // pred_fallthru
    _
  // Predicated region
  $region79: #{gru_stack_forward.1} parent=0 // pred_check
    %p283 = pneg %p279
  $region80: #{gru_stack_forward.1} parent=0 // pred_check_branch
    %285 = sbr.rel (%p283) target = $region82
  $region81: #{gru_stack_forward.1} parent=0 // pred_region
    %s286 = sshllo.u32 0, 4
    loop: start=0, step=1, limit=1
    $region83: #{gru_stack_forward.1} parent=81 // loop_pre_header
      _
    $region84: #{gru_stack_forward.1} parent=81 // loop_header
      %s288 = sphi 0, %s292
      %p289 = scmp.ge.s32.totalorder %s288, 1
      %s293 = sphi %s6, %s6
      %s294 = sphi [#allocation3], [#allocation3]
    $region85: #{gru_stack_forward.1} parent=81 // loop_header_branch
      %291 = sbr.rel (%p289) target = $region89
    $region86: #{gru_stack_forward.1} parent=81 // loop_body
      %v295 = vld [vmem:[%s293] sm:%s286]
      %296 = vst [vmem:[%s294] sm:%s286] %v295
      %v297 = vld [vmem:[%s293 + $0xc] sm:%s286]
      %298 = vst [vmem:[%s294 + $0x4] sm:%s286] %v297
      %v299 = vld [vmem:[%s293 + $0x4] sm:%s286]
      %300 = vst [vmem:[%s294 + $0x8] sm:%s286] %v299
      %v301 = vld [vmem:[%s293 + $0x10] sm:%s286]
      %302 = vst [vmem:[%s294 + $0xc] sm:%s286] %v301
      %v303 = vld [vmem:[%s293 + $0x8] sm:%s286]
      %304 = vst [vmem:[%s294 + $0x10] sm:%s286] %v303
      %v305 = vld [vmem:[%s293 + $0x14] sm:%s286]
      %306 = vst [vmem:[%s294 + $0x14] sm:%s286] %v305
      %v307 = vld [vmem:[%s293 + $0x18] sm:%s286]
      %308 = vst [vmem:[%s294 + $0x18] sm:%s286] %v307
      %v309 = vld [vmem:[%s293 + $0x24] sm:%s286]
      %310 = vst [vmem:[%s294 + $0x1c] sm:%s286] %v309
      %v311 = vld [vmem:[%s293 + $0x1c] sm:%s286]
      %312 = vst [vmem:[%s294 + $0x20] sm:%s286] %v311
      %v313 = vld [vmem:[%s293 + $0x28] sm:%s286]
      %314 = vst [vmem:[%s294 + $0x24] sm:%s286] %v313
      %v315 = vld [vmem:[%s293 + $0x20] sm:%s286]
      %316 = vst [vmem:[%s294 + $0x28] sm:%s286] %v315
      %v317 = vld [vmem:[%s293 + $0x2c] sm:%s286]
      %318 = vst [vmem:[%s294 + $0x2c] sm:%s286] %v317
    $region87: #{gru_stack_forward.1} parent=81 // loop_footer
      %s292 = sadd.s32 1, %s288
    $region88: #{gru_stack_forward.1} parent=81 // loop_footer_branch
      %287 = sbr.rel target = $region84
    $region89: #{gru_stack_forward.1} parent=81 // loop_exit
      _
  $region82: #{gru_stack_forward.1} parent=0 // pred_fallthru
    _
  // Predicated region
  $region108: #{gru_stack_forward.1} parent=0 // pred_check
    _
  $region109: #{gru_stack_forward.1} parent=0 // pred_check_branch
    %372 = sbr.rel (0) target = $region111
  $region110: #{gru_stack_forward.1} parent=0 // pred_region
    %373 = vsyncadd %s277, 768
  $region111: #{gru_stack_forward.1} parent=0 // pred_fallthru
    _
  %s374 = scalar_lea.sflag [#allocation6], 2
  %p376 = scmp.lt.u32.totalorder 4, 8
  %p377 = pneg %p376
  // Predicated region
  $region112: #{gru_stack_forward.1} parent=0 // pred_check
    _
  $region113: #{gru_stack_forward.1} parent=0 // pred_check_branch
    %379 = sbr.rel (%p376) target = $region115
  $region114: #{gru_stack_forward.1} parent=0 // pred_region
    %s488 = sand.u32 4, 7
    %p489 = scmp.eq.s32.totalorder %s488, 0
    %p490 = pneg %p489
    // Predicated region
    $region127: #{gru_stack_forward.1} parent=114 // pred_check
      _
    $region128: #{gru_stack_forward.1} parent=114 // pred_check_branch
      %492 = sbr.rel (%p489) target = $region130
    $region129: #{gru_stack_forward.1} parent=114 // pred_region
      %s493 = sand.u32 4, 7
      %s494 = ssub.s32 4, %s493
      %s495 = scalar_lea.vmem %s9, %s494
      %s496 = ssub.s32 4, %s493
      %s497 = scalar_lea.vmem [#allocation4], %s496
      loop: start=0, step=1, limit=1
      $region131: #{gru_stack_forward.1} parent=129 // loop_pre_header
        _
      $region132: #{gru_stack_forward.1} parent=129 // loop_header
        %s499 = sphi 0, %s503
        %p500 = scmp.ge.s32.totalorder %s499, 1
        %s504 = sphi %s9, %s9
        %s505 = sphi [#allocation4], [#allocation4]
      $region133: #{gru_stack_forward.1} parent=129 // loop_header_branch
        %502 = sbr.rel (%p500) target = $region137
      $region134: #{gru_stack_forward.1} parent=129 // loop_body
        _
      $region135: #{gru_stack_forward.1} parent=129 // loop_footer
        %s503 = sadd.s32 1, %s499
      $region136: #{gru_stack_forward.1} parent=129 // loop_footer_branch
        %498 = sbr.rel target = $region132
      $region137: #{gru_stack_forward.1} parent=129 // loop_exit
        _
      %s506 = sshllo.u32 0, %s493
      loop: start=0, step=1, limit=1
      $region138: #{gru_stack_forward.1} parent=129 // loop_pre_header
        _
      $region139: #{gru_stack_forward.1} parent=129 // loop_header
        %s508 = sphi 0, %s512
        %p509 = scmp.ge.s32.totalorder %s508, 1
        %s513 = sphi %s495, %s495
        %s514 = sphi %s497, %s497
      $region140: #{gru_stack_forward.1} parent=129 // loop_header_branch
        %511 = sbr.rel (%p509) target = $region144
      $region141: #{gru_stack_forward.1} parent=129 // loop_body
        %v515 = vld [vmem:[%s513] sm:%s506]
        %516 = vst [vmem:[%s514] sm:%s506] %v515
        %v517 = vld [vmem:[%s513 + $0xc] sm:%s506]
        %518 = vst [vmem:[%s514 + $0x4] sm:%s506] %v517
        %v519 = vld [vmem:[%s513 + $0x4] sm:%s506]
        %520 = vst [vmem:[%s514 + $0x8] sm:%s506] %v519
        %v521 = vld [vmem:[%s513 + $0x10] sm:%s506]
        %522 = vst [vmem:[%s514 + $0xc] sm:%s506] %v521
        %v523 = vld [vmem:[%s513 + $0x8] sm:%s506]
        %524 = vst [vmem:[%s514 + $0x10] sm:%s506] %v523
        %v525 = vld [vmem:[%s513 + $0x14] sm:%s506]
        %526 = vst [vmem:[%s514 + $0x14] sm:%s506] %v525
        %v527 = vld [vmem:[%s513 + $0x18] sm:%s506]
        %528 = vst [vmem:[%s514 + $0x18] sm:%s506] %v527
        %v529 = vld [vmem:[%s513 + $0x24] sm:%s506]
        %530 = vst [vmem:[%s514 + $0x1c] sm:%s506] %v529
        %v531 = vld [vmem:[%s513 + $0x1c] sm:%s506]
        %532 = vst [vmem:[%s514 + $0x20] sm:%s506] %v531
        %v533 = vld [vmem:[%s513 + $0x28] sm:%s506]
        %534 = vst [vmem:[%s514 + $0x24] sm:%s506] %v533
        %v535 = vld [vmem:[%s513 + $0x20] sm:%s506]
        %536 = vst [vmem:[%s514 + $0x28] sm:%s506] %v535
        %v537 = vld [vmem:[%s513 + $0x2c] sm:%s506]
        %538 = vst [vmem:[%s514 + $0x2c] sm:%s506] %v537
        %v539 = vld [vmem:[%s513 + $0x30] sm:%s506]
        %540 = vst [vmem:[%s514 + $0x30] sm:%s506] %v539
        %v541 = vld [vmem:[%s513 + $0x3c] sm:%s506]
        %542 = vst [vmem:[%s514 + $0x34] sm:%s506] %v541
        %v543 = vld [vmem:[%s513 + $0x34] sm:%s506]
        %544 = vst [vmem:[%s514 + $0x38] sm:%s506] %v543
        %v545 = vld [vmem:[%s513 + $0x40] sm:%s506]
        %546 = vst [vmem:[%s514 + $0x3c] sm:%s506] %v545
        %v547 = vld [vmem:[%s513 + $0x38] sm:%s506]
        %548 = vst [vmem:[%s514 + $0x40] sm:%s506] %v547
        %v549 = vld [vmem:[%s513 + $0x44] sm:%s506]
        %550 = vst [vmem:[%s514 + $0x44] sm:%s506] %v549
        %v551 = vld [vmem:[%s513 + $0x48] sm:%s506]
        %552 = vst [vmem:[%s514 + $0x48] sm:%s506] %v551
        %v553 = vld [vmem:[%s513 + $0x54] sm:%s506]
        %554 = vst [vmem:[%s514 + $0x4c] sm:%s506] %v553
        %v555 = vld [vmem:[%s513 + $0x4c] sm:%s506]
        %556 = vst [vmem:[%s514 + $0x50] sm:%s506] %v555
        %v557 = vld [vmem:[%s513 + $0x58] sm:%s506]
        %558 = vst [vmem:[%s514 + $0x54] sm:%s506] %v557
        %v559 = vld [vmem:[%s513 + $0x50] sm:%s506]
        %560 = vst [vmem:[%s514 + $0x58] sm:%s506] %v559
        %v561 = vld [vmem:[%s513 + $0x5c] sm:%s506]
        %562 = vst [vmem:[%s514 + $0x5c] sm:%s506] %v561
        %v563 = vld [vmem:[%s513 + $0x60] sm:%s506]
        %564 = vst [vmem:[%s514 + $0x60] sm:%s506] %v563
        %v565 = vld [vmem:[%s513 + $0x6c] sm:%s506]
        %566 = vst [vmem:[%s514 + $0x64] sm:%s506] %v565
        %v567 = vld [vmem:[%s513 + $0x64] sm:%s506]
        %568 = vst [vmem:[%s514 + $0x68] sm:%s506] %v567
        %v569 = vld [vmem:[%s513 + $0x70] sm:%s506]
        %570 = vst [vmem:[%s514 + $0x6c] sm:%s506] %v569
        %v571 = vld [vmem:[%s513 + $0x68] sm:%s506]
        %572 = vst [vmem:[%s514 + $0x70] sm:%s506] %v571
        %v573 = vld [vmem:[%s513 + $0x74] sm:%s506]
        %574 = vst [vmem:[%s514 + $0x74] sm:%s506] %v573
        %v575 = vld [vmem:[%s513 + $0x78] sm:%s506]
        %576 = vst [vmem:[%s514 + $0x78] sm:%s506] %v575
        %v577 = vld [vmem:[%s513 + $0x84] sm:%s506]
        %578 = vst [vmem:[%s514 + $0x7c] sm:%s506] %v577
        %v579 = vld [vmem:[%s513 + $0x7c] sm:%s506]
        %580 = vst [vmem:[%s514 + $0x80] sm:%s506] %v579
        %v581 = vld [vmem:[%s513 + $0x88] sm:%s506]
        %582 = vst [vmem:[%s514 + $0x84] sm:%s506] %v581
        %v583 = vld [vmem:[%s513 + $0x80] sm:%s506]
        %584 = vst [vmem:[%s514 + $0x88] sm:%s506] %v583
        %v585 = vld [vmem:[%s513 + $0x8c] sm:%s506]
        %586 = vst [vmem:[%s514 + $0x8c] sm:%s506] %v585
        %v587 = vld [vmem:[%s513 + $0x90] sm:%s506]
        %588 = vst [vmem:[%s514 + $0x90] sm:%s506] %v587
        %v589 = vld [vmem:[%s513 + $0x9c] sm:%s506]
        %590 = vst [vmem:[%s514 + $0x94] sm:%s506] %v589
        %v591 = vld [vmem:[%s513 + $0x94] sm:%s506]
        %592 = vst [vmem:[%s514 + $0x98] sm:%s506] %v591
        %v593 = vld [vmem:[%s513 + $0xa0] sm:%s506]
        %594 = vst [vmem:[%s514 + $0x9c] sm:%s506] %v593
        %v595 = vld [vmem:[%s513 + $0x98] sm:%s506]
        %596 = vst [vmem:[%s514 + $0xa0] sm:%s506] %v595
        %v597 = vld [vmem:[%s513 + $0xa4] sm:%s506]
        %598 = vst [vmem:[%s514 + $0xa4] sm:%s506] %v597
        %v599 = vld [vmem:[%s513 + $0xa8] sm:%s506]
        %600 = vst [vmem:[%s514 + $0xa8] sm:%s506] %v599
        %v601 = vld [vmem:[%s513 + $0xb4] sm:%s506]
        %602 = vst [vmem:[%s514 + $0xac] sm:%s506] %v601
        %v603 = vld [vmem:[%s513 + $0xac] sm:%s506]
        %604 = vst [vmem:[%s514 + $0xb0] sm:%s506] %v603
        %v605 = vld [vmem:[%s513 + $0xb8] sm:%s506]
        %606 = vst [vmem:[%s514 + $0xb4] sm:%s506] %v605
        %v607 = vld [vmem:[%s513 + $0xb0] sm:%s506]
        %608 = vst [vmem:[%s514 + $0xb8] sm:%s506] %v607
        %v609 = vld [vmem:[%s513 + $0xbc] sm:%s506]
        %610 = vst [vmem:[%s514 + $0xbc] sm:%s506] %v609
      $region142: #{gru_stack_forward.1} parent=129 // loop_footer
        %s512 = sadd.s32 1, %s508
      $region143: #{gru_stack_forward.1} parent=129 // loop_footer_branch
        %507 = sbr.rel target = $region139
      $region144: #{gru_stack_forward.1} parent=129 // loop_exit
        _
    $region130: #{gru_stack_forward.1} parent=114 // pred_fallthru
      _
  $region115: #{gru_stack_forward.1} parent=0 // pred_fallthru
    _
  // Predicated region
  $region116: #{gru_stack_forward.1} parent=0 // pred_check
    %p380 = pneg %p376
  $region117: #{gru_stack_forward.1} parent=0 // pred_check_branch
    %382 = sbr.rel (%p380) target = $region119
  $region118: #{gru_stack_forward.1} parent=0 // pred_region
    %s383 = sshllo.u32 0, 4
    loop: start=0, step=1, limit=1
    $region120: #{gru_stack_forward.1} parent=118 // loop_pre_header
      _
    $region121: #{gru_stack_forward.1} parent=118 // loop_header
      %s385 = sphi 0, %s389
      %p386 = scmp.ge.s32.totalorder %s385, 1
      %s390 = sphi %s9, %s9
      %s391 = sphi [#allocation4], [#allocation4]
    $region122: #{gru_stack_forward.1} parent=118 // loop_header_branch
      %388 = sbr.rel (%p386) target = $region126
    $region123: #{gru_stack_forward.1} parent=118 // loop_body
      %v392 = vld [vmem:[%s390] sm:%s383]
      %393 = vst [vmem:[%s391] sm:%s383] %v392
      %v394 = vld [vmem:[%s390 + $0xc] sm:%s383]
      %395 = vst [vmem:[%s391 + $0x4] sm:%s383] %v394
      %v396 = vld [vmem:[%s390 + $0x4] sm:%s383]
      %397 = vst [vmem:[%s391 + $0x8] sm:%s383] %v396
      %v398 = vld [vmem:[%s390 + $0x10] sm:%s383]
      %399 = vst [vmem:[%s391 + $0xc] sm:%s383] %v398
      %v400 = vld [vmem:[%s390 + $0x8] sm:%s383]
      %401 = vst [vmem:[%s391 + $0x10] sm:%s383] %v400
      %v402 = vld [vmem:[%s390 + $0x14] sm:%s383]
      %403 = vst [vmem:[%s391 + $0x14] sm:%s383] %v402
      %v404 = vld [vmem:[%s390 + $0x18] sm:%s383]
      %405 = vst [vmem:[%s391 + $0x18] sm:%s383] %v404
      %v406 = vld [vmem:[%s390 + $0x24] sm:%s383]
      %407 = vst [vmem:[%s391 + $0x1c] sm:%s383] %v406
      %v408 = vld [vmem:[%s390 + $0x1c] sm:%s383]
      %409 = vst [vmem:[%s391 + $0x20] sm:%s383] %v408
      %v410 = vld [vmem:[%s390 + $0x28] sm:%s383]
      %411 = vst [vmem:[%s391 + $0x24] sm:%s383] %v410
      %v412 = vld [vmem:[%s390 + $0x20] sm:%s383]
      %413 = vst [vmem:[%s391 + $0x28] sm:%s383] %v412
      %v414 = vld [vmem:[%s390 + $0x2c] sm:%s383]
      %415 = vst [vmem:[%s391 + $0x2c] sm:%s383] %v414
      %v416 = vld [vmem:[%s390 + $0x30] sm:%s383]
      %417 = vst [vmem:[%s391 + $0x30] sm:%s383] %v416
      %v418 = vld [vmem:[%s390 + $0x3c] sm:%s383]
      %419 = vst [vmem:[%s391 + $0x34] sm:%s383] %v418
      %v420 = vld [vmem:[%s390 + $0x34] sm:%s383]
      %421 = vst [vmem:[%s391 + $0x38] sm:%s383] %v420
      %v422 = vld [vmem:[%s390 + $0x40] sm:%s383]
      %423 = vst [vmem:[%s391 + $0x3c] sm:%s383] %v422
      %v424 = vld [vmem:[%s390 + $0x38] sm:%s383]
      %425 = vst [vmem:[%s391 + $0x40] sm:%s383] %v424
      %v426 = vld [vmem:[%s390 + $0x44] sm:%s383]
      %427 = vst [vmem:[%s391 + $0x44] sm:%s383] %v426
      %v428 = vld [vmem:[%s390 + $0x48] sm:%s383]
      %429 = vst [vmem:[%s391 + $0x48] sm:%s383] %v428
      %v430 = vld [vmem:[%s390 + $0x54] sm:%s383]
      %431 = vst [vmem:[%s391 + $0x4c] sm:%s383] %v430
      %v432 = vld [vmem:[%s390 + $0x4c] sm:%s383]
      %433 = vst [vmem:[%s391 + $0x50] sm:%s383] %v432
      %v434 = vld [vmem:[%s390 + $0x58] sm:%s383]
      %435 = vst [vmem:[%s391 + $0x54] sm:%s383] %v434
      %v436 = vld [vmem:[%s390 + $0x50] sm:%s383]
      %437 = vst [vmem:[%s391 + $0x58] sm:%s383] %v436
      %v438 = vld [vmem:[%s390 + $0x5c] sm:%s383]
      %439 = vst [vmem:[%s391 + $0x5c] sm:%s383] %v438
      %v440 = vld [vmem:[%s390 + $0x60] sm:%s383]
      %441 = vst [vmem:[%s391 + $0x60] sm:%s383] %v440
      %v442 = vld [vmem:[%s390 + $0x6c] sm:%s383]
      %443 = vst [vmem:[%s391 + $0x64] sm:%s383] %v442
      %v444 = vld [vmem:[%s390 + $0x64] sm:%s383]
      %445 = vst [vmem:[%s391 + $0x68] sm:%s383] %v444
      %v446 = vld [vmem:[%s390 + $0x70] sm:%s383]
      %447 = vst [vmem:[%s391 + $0x6c] sm:%s383] %v446
      %v448 = vld [vmem:[%s390 + $0x68] sm:%s383]
      %449 = vst [vmem:[%s391 + $0x70] sm:%s383] %v448
      %v450 = vld [vmem:[%s390 + $0x74] sm:%s383]
      %451 = vst [vmem:[%s391 + $0x74] sm:%s383] %v450
      %v452 = vld [vmem:[%s390 + $0x78] sm:%s383]
      %453 = vst [vmem:[%s391 + $0x78] sm:%s383] %v452
      %v454 = vld [vmem:[%s390 + $0x84] sm:%s383]
      %455 = vst [vmem:[%s391 + $0x7c] sm:%s383] %v454
      %v456 = vld [vmem:[%s390 + $0x7c] sm:%s383]
      %457 = vst [vmem:[%s391 + $0x80] sm:%s383] %v456
      %v458 = vld [vmem:[%s390 + $0x88] sm:%s383]
      %459 = vst [vmem:[%s391 + $0x84] sm:%s383] %v458
      %v460 = vld [vmem:[%s390 + $0x80] sm:%s383]
      %461 = vst [vmem:[%s391 + $0x88] sm:%s383] %v460
      %v462 = vld [vmem:[%s390 + $0x8c] sm:%s383]
      %463 = vst [vmem:[%s391 + $0x8c] sm:%s383] %v462
      %v464 = vld [vmem:[%s390 + $0x90] sm:%s383]
      %465 = vst [vmem:[%s391 + $0x90] sm:%s383] %v464
      %v466 = vld [vmem:[%s390 + $0x9c] sm:%s383]
      %467 = vst [vmem:[%s391 + $0x94] sm:%s383] %v466
      %v468 = vld [vmem:[%s390 + $0x94] sm:%s383]
      %469 = vst [vmem:[%s391 + $0x98] sm:%s383] %v468
      %v470 = vld [vmem:[%s390 + $0xa0] sm:%s383]
      %471 = vst [vmem:[%s391 + $0x9c] sm:%s383] %v470
      %v472 = vld [vmem:[%s390 + $0x98] sm:%s383]
      %473 = vst [vmem:[%s391 + $0xa0] sm:%s383] %v472
      %v474 = vld [vmem:[%s390 + $0xa4] sm:%s383]
      %475 = vst [vmem:[%s391 + $0xa4] sm:%s383] %v474
      %v476 = vld [vmem:[%s390 + $0xa8] sm:%s383]
      %477 = vst [vmem:[%s391 + $0xa8] sm:%s383] %v476
      %v478 = vld [vmem:[%s390 + $0xb4] sm:%s383]
      %479 = vst [vmem:[%s391 + $0xac] sm:%s383] %v478
      %v480 = vld [vmem:[%s390 + $0xac] sm:%s383]
      %481 = vst [vmem:[%s391 + $0xb0] sm:%s383] %v480
      %v482 = vld [vmem:[%s390 + $0xb8] sm:%s383]
      %483 = vst [vmem:[%s391 + $0xb4] sm:%s383] %v482
      %v484 = vld [vmem:[%s390 + $0xb0] sm:%s383]
      %485 = vst [vmem:[%s391 + $0xb8] sm:%s383] %v484
      %v486 = vld [vmem:[%s390 + $0xbc] sm:%s383]
      %487 = vst [vmem:[%s391 + $0xbc] sm:%s383] %v486
    $region124: #{gru_stack_forward.1} parent=118 // loop_footer
      %s389 = sadd.s32 1, %s385
    $region125: #{gru_stack_forward.1} parent=118 // loop_footer_branch
      %384 = sbr.rel target = $region121
    $region126: #{gru_stack_forward.1} parent=118 // loop_exit
      _
  $region119: #{gru_stack_forward.1} parent=0 // pred_fallthru
    _
  // Predicated region
  $region145: #{gru_stack_forward.1} parent=0 // pred_check
    _
  $region146: #{gru_stack_forward.1} parent=0 // pred_check_branch
    %613 = sbr.rel (0) target = $region148
  $region147: #{gru_stack_forward.1} parent=0 // pred_region
    %614 = vsyncadd %s374, 3072
  $region148: #{gru_stack_forward.1} parent=0 // pred_fallthru
    _
  %s615 = scalar_lea.sflag [#allocation6], 3
  %p617 = scmp.lt.u32.totalorder 4, 8
  %p618 = pneg %p617
  // Predicated region
  $region149: #{gru_stack_forward.1} parent=0 // pred_check
    _
  $region150: #{gru_stack_forward.1} parent=0 // pred_check_branch
    %620 = sbr.rel (%p617) target = $region152
  $region151: #{gru_stack_forward.1} parent=0 // pred_region
    %s657 = sand.u32 4, 7
    %p658 = scmp.eq.s32.totalorder %s657, 0
    %p659 = pneg %p658
    // Predicated region
    $region164: #{gru_stack_forward.1} parent=151 // pred_check
      _
    $region165: #{gru_stack_forward.1} parent=151 // pred_check_branch
      %661 = sbr.rel (%p658) target = $region167
    $region166: #{gru_stack_forward.1} parent=151 // pred_region
      %s662 = sand.u32 4, 7
      %s663 = ssub.s32 4, %s662
      %s664 = scalar_lea.vmem %s10, %s663
      %s665 = ssub.s32 4, %s662
      %s666 = scalar_lea.vmem [#allocation5], %s665
      loop: start=0, step=1, limit=1
      $region168: #{gru_stack_forward.1} parent=166 // loop_pre_header
        _
      $region169: #{gru_stack_forward.1} parent=166 // loop_header
        %s668 = sphi 0, %s672
        %p669 = scmp.ge.s32.totalorder %s668, 1
        %s673 = sphi %s10, %s10
        %s674 = sphi [#allocation5], [#allocation5]
      $region170: #{gru_stack_forward.1} parent=166 // loop_header_branch
        %671 = sbr.rel (%p669) target = $region174
      $region171: #{gru_stack_forward.1} parent=166 // loop_body
        _
      $region172: #{gru_stack_forward.1} parent=166 // loop_footer
        %s672 = sadd.s32 1, %s668
      $region173: #{gru_stack_forward.1} parent=166 // loop_footer_branch
        %667 = sbr.rel target = $region169
      $region174: #{gru_stack_forward.1} parent=166 // loop_exit
        _
      %s675 = sshllo.u32 0, %s662
      loop: start=0, step=1, limit=1
      $region175: #{gru_stack_forward.1} parent=166 // loop_pre_header
        _
      $region176: #{gru_stack_forward.1} parent=166 // loop_header
        %s677 = sphi 0, %s681
        %p678 = scmp.ge.s32.totalorder %s677, 1
        %s682 = sphi %s664, %s664
        %s683 = sphi %s666, %s666
      $region177: #{gru_stack_forward.1} parent=166 // loop_header_branch
        %680 = sbr.rel (%p678) target = $region181
      $region178: #{gru_stack_forward.1} parent=166 // loop_body
        %v684 = vld [vmem:[%s682] sm:%s675]
        %685 = vst [vmem:[%s683] sm:%s675] %v684
        %v686 = vld [vmem:[%s682 + $0xc] sm:%s675]
        %687 = vst [vmem:[%s683 + $0x4] sm:%s675] %v686
        %v688 = vld [vmem:[%s682 + $0x4] sm:%s675]
        %689 = vst [vmem:[%s683 + $0x8] sm:%s675] %v688
        %v690 = vld [vmem:[%s682 + $0x10] sm:%s675]
        %691 = vst [vmem:[%s683 + $0xc] sm:%s675] %v690
        %v692 = vld [vmem:[%s682 + $0x8] sm:%s675]
        %693 = vst [vmem:[%s683 + $0x10] sm:%s675] %v692
        %v694 = vld [vmem:[%s682 + $0x14] sm:%s675]
        %695 = vst [vmem:[%s683 + $0x14] sm:%s675] %v694
        %v696 = vld [vmem:[%s682 + $0x18] sm:%s675]
        %697 = vst [vmem:[%s683 + $0x18] sm:%s675] %v696
        %v698 = vld [vmem:[%s682 + $0x24] sm:%s675]
        %699 = vst [vmem:[%s683 + $0x1c] sm:%s675] %v698
        %v700 = vld [vmem:[%s682 + $0x1c] sm:%s675]
        %701 = vst [vmem:[%s683 + $0x20] sm:%s675] %v700
        %v702 = vld [vmem:[%s682 + $0x28] sm:%s675]
        %703 = vst [vmem:[%s683 + $0x24] sm:%s675] %v702
        %v704 = vld [vmem:[%s682 + $0x20] sm:%s675]
        %705 = vst [vmem:[%s683 + $0x28] sm:%s675] %v704
        %v706 = vld [vmem:[%s682 + $0x2c] sm:%s675]
        %707 = vst [vmem:[%s683 + $0x2c] sm:%s675] %v706
      $region179: #{gru_stack_forward.1} parent=166 // loop_footer
        %s681 = sadd.s32 1, %s677
      $region180: #{gru_stack_forward.1} parent=166 // loop_footer_branch
        %676 = sbr.rel target = $region176
      $region181: #{gru_stack_forward.1} parent=166 // loop_exit
        _
    $region167: #{gru_stack_forward.1} parent=151 // pred_fallthru
      _
  $region152: #{gru_stack_forward.1} parent=0 // pred_fallthru
    _
  // Predicated region
  $region153: #{gru_stack_forward.1} parent=0 // pred_check
    %p621 = pneg %p617
  $region154: #{gru_stack_forward.1} parent=0 // pred_check_branch
    %623 = sbr.rel (%p621) target = $region156
  $region155: #{gru_stack_forward.1} parent=0 // pred_region
    %s624 = sshllo.u32 0, 4
    loop: start=0, step=1, limit=1
    $region157: #{gru_stack_forward.1} parent=155 // loop_pre_header
      _
    $region158: #{gru_stack_forward.1} parent=155 // loop_header
      %s626 = sphi 0, %s630
      %p627 = scmp.ge.s32.totalorder %s626, 1
      %s631 = sphi %s10, %s10
      %s632 = sphi [#allocation5], [#allocation5]
    $region159: #{gru_stack_forward.1} parent=155 // loop_header_branch
      %629 = sbr.rel (%p627) target = $region163
    $region160: #{gru_stack_forward.1} parent=155 // loop_body
      %v633 = vld [vmem:[%s631] sm:%s624]
      %634 = vst [vmem:[%s632] sm:%s624] %v633
      %v635 = vld [vmem:[%s631 + $0xc] sm:%s624]
      %636 = vst [vmem:[%s632 + $0x4] sm:%s624] %v635
      %v637 = vld [vmem:[%s631 + $0x4] sm:%s624]
      %638 = vst [vmem:[%s632 + $0x8] sm:%s624] %v637
      %v639 = vld [vmem:[%s631 + $0x10] sm:%s624]
      %640 = vst [vmem:[%s632 + $0xc] sm:%s624] %v639
      %v641 = vld [vmem:[%s631 + $0x8] sm:%s624]
      %642 = vst [vmem:[%s632 + $0x10] sm:%s624] %v641
      %v643 = vld [vmem:[%s631 + $0x14] sm:%s624]
      %644 = vst [vmem:[%s632 + $0x14] sm:%s624] %v643
      %v645 = vld [vmem:[%s631 + $0x18] sm:%s624]
      %646 = vst [vmem:[%s632 + $0x18] sm:%s624] %v645
      %v647 = vld [vmem:[%s631 + $0x24] sm:%s624]
      %648 = vst [vmem:[%s632 + $0x1c] sm:%s624] %v647
      %v649 = vld [vmem:[%s631 + $0x1c] sm:%s624]
      %650 = vst [vmem:[%s632 + $0x20] sm:%s624] %v649
      %v651 = vld [vmem:[%s631 + $0x28] sm:%s624]
      %652 = vst [vmem:[%s632 + $0x24] sm:%s624] %v651
      %v653 = vld [vmem:[%s631 + $0x20] sm:%s624]
      %654 = vst [vmem:[%s632 + $0x28] sm:%s624] %v653
      %v655 = vld [vmem:[%s631 + $0x2c] sm:%s624]
      %656 = vst [vmem:[%s632 + $0x2c] sm:%s624] %v655
    $region161: #{gru_stack_forward.1} parent=155 // loop_footer
      %s630 = sadd.s32 1, %s626
    $region162: #{gru_stack_forward.1} parent=155 // loop_footer_branch
      %625 = sbr.rel target = $region158
    $region163: #{gru_stack_forward.1} parent=155 // loop_exit
      _
  $region156: #{gru_stack_forward.1} parent=0 // pred_fallthru
    _
  // Predicated region
  $region182: #{gru_stack_forward.1} parent=0 // pred_check
    _
  $region183: #{gru_stack_forward.1} parent=0 // pred_check_branch
    %710 = sbr.rel (0) target = $region185
  $region184: #{gru_stack_forward.1} parent=0 // pred_region
    %711 = vsyncadd %s615, 768
  $region185: #{gru_stack_forward.1} parent=0 // pred_fallthru
    _
  %v712 = vld [vmem:[%s0] sm:$0xf]
  %v713 = vld [vmem:[%s0 + $0x4] sm:$0xf]
  %v714 = vld [vmem:[%s1] sm:$0xff]
  %v715 = vld [vmem:[%s1 + $0x8] sm:$0xf]
  %v716 = vld [vmem:[%s1 + $0xc] sm:$0xff]
  %v717 = vld [vmem:[%s1 + $0x14] sm:$0xf]
  %v718 = vld [vmem:[%s2] sm:$0xff]
  %v719 = vld [vmem:[%s2 + $0x8] sm:$0xf]
  %v720 = vld [vmem:[%s2 + $0xc] sm:$0xff]
  %v721 = vld [vmem:[%s2 + $0x14] sm:$0xf]
  %v722 = vld [vmem:[%s2 + $0x18] sm:$0xff]
  %v723 = vld [vmem:[%s2 + $0x20] sm:$0xf]
  %v724 = vld [vmem:[%s2 + $0x24] sm:$0xff]
  %v725 = vld [vmem:[%s2 + $0x2c] sm:$0xf]
  %v726 = vld [vmem:[%s3] sm:$0x7]
  %v728 = vlaneseq
  %v729 = vshrl.u32 %v728, 7
  %v730 = vsub.s32 0, %v729
  %v731 = vrot.slane %v726, %v730
  %v732 = vlaneseq
  %v733 = vshrl.u32 %v732, 7
  %v734 = vsub.s32 1, %v733
  %v735 = vrot.slane %v726, %v734
  %v736 = vlaneseq
  %v737 = vshrl.u32 %v736, 7
  %v738 = vsub.s32 2, %v737
  %v739 = vrot.slane %v726, %v738
  %v745 = vunpack.c.l.b16 %v712
  %v746 = vunpack.c.l.b16 %v713
  %v747 = vpack.c.b16 %v746, %v745
  %v752 = vunpack.c.l.b16 %v714
  %v753 = vunpack.c.h.b16 %v714
  %v754 = vunpack.c.l.b16 %v715
  %v755 = vunpack.c.l.b16 %v716
  %v756 = vunpack.c.h.b16 %v716
  %v757 = vunpack.c.l.b16 %v717
  %v758 = vpack.c.b16 %v755, %v752
  %v759 = vpack.c.b16 %v756, %v753
  %v760 = vpack.c.b16 %v757, %v754
  %vm764 = vcmask 130048
  %v766 = vsel %vm764, %v747, 0
  %768 = vmatprep.subr.bf16.mxu0 %v759
  %769 = vmatpush1.bf16.msra.mxu0 %v758
  %770 = vmatprep.subr.bf16.mxu0 0
  %771 = vmatpush1.bf16.msra.mxu0 0
  %772 = vmatprep.subr.bf16.mxu0 0
  %773 = vmatpush1.bf16.msra.mxu0 0
  %774 = vmatprep.subr.bf16.mxu0 0
  %775 = vmatpush1.bf16.msra.mxu0 0
  %776 = vmatprep.subr.bf16.mxu0 0
  %777 = vmatpush1.bf16.msra.mxu0 0
  %778 = vmatprep.subr.bf16.mxu0 0
  %779 = vmatpush1.bf16.msra.mxu0 0
  %780 = vmatprep.subr.bf16.mxu0 0
  %781 = vmatpush1.bf16.msra.mxu0 0
  %782 = vmatprep.subr.bf16.mxu0 0
  %783 = vmatpush1.bf16.msra.mxu0 0
  %784 = vmatprep.subr.bf16.mxu0 0
  %785 = vmatpush1.bf16.msra.mxu0 0
  %786 = vmatprep.subr.bf16.mxu0 0
  %787 = vmatpush1.bf16.msra.mxu0 0
  %788 = vmatprep.subr.bf16.mxu0 0
  %789 = vmatpush1.bf16.msra.mxu0 0
  %790 = vmatprep.subr.bf16.mxu0 0
  %791 = vmatpush1.bf16.msra.mxu0 0
  %792 = vmatprep.subr.bf16.mxu0 0
  %793 = vmatpush1.bf16.msra.mxu0 0
  %794 = vmatprep.subr.bf16.mxu0 0
  %795 = vmatpush1.bf16.msra.mxu0 0
  %796 = vmatprep.subr.bf16.mxu0 0
  %797 = vmatpush1.bf16.msra.mxu0 0
  %798 = vmatprep.subr.bf16.mxu0 0
  %799 = vmatpush1.bf16.msra.mxu0 0
  %800 = vmatprep.mubr.bf16.mxu0 0
  %801 = vmatmul.mubr.bf16.gmra.mrb[0].mxu0 %v766
  %v802 = vpop.f32.mrb[0].mxu0
  %v803 = vadd.f32 %v731, %v802
  %v804 = vpop.f32.mrb[0].mxu0
  %v805 = vadd.f32 %v735, %v804
  %v806 = vpop.f32.mrb[0].mxu0
  %v807 = vadd.f32 %v731, %v806
  %v808 = vpop.f32.mrb[0].mxu0
  %v809 = vadd.f32 %v735, %v808
  %810 = vdwg.mxu0
  %811 = vmatprep.subr.bf16.mxu0 0
  %812 = vmatpush1.bf16.msra.mxu0 %v760
  %813 = vmatprep.subr.bf16.mxu0 0
  %814 = vmatpush1.bf16.msra.mxu0 0
  %815 = vmatprep.subr.bf16.mxu0 0
  %816 = vmatpush1.bf16.msra.mxu0 0
  %817 = vmatprep.subr.bf16.mxu0 0
  %818 = vmatpush1.bf16.msra.mxu0 0
  %819 = vmatprep.subr.bf16.mxu0 0
  %820 = vmatpush1.bf16.msra.mxu0 0
  %821 = vmatprep.subr.bf16.mxu0 0
  %822 = vmatpush1.bf16.msra.mxu0 0
  %823 = vmatprep.subr.bf16.mxu0 0
  %824 = vmatpush1.bf16.msra.mxu0 0
  %825 = vmatprep.subr.bf16.mxu0 0
  %826 = vmatpush1.bf16.msra.mxu0 0
  %827 = vmatprep.subr.bf16.mxu0 0
  %828 = vmatpush1.bf16.msra.mxu0 0
  %829 = vmatprep.subr.bf16.mxu0 0
  %830 = vmatpush1.bf16.msra.mxu0 0
  %831 = vmatprep.subr.bf16.mxu0 0
  %832 = vmatpush1.bf16.msra.mxu0 0
  %833 = vmatprep.subr.bf16.mxu0 0
  %834 = vmatpush1.bf16.msra.mxu0 0
  %835 = vmatprep.subr.bf16.mxu0 0
  %836 = vmatpush1.bf16.msra.mxu0 0
  %837 = vmatprep.subr.bf16.mxu0 0
  %838 = vmatpush1.bf16.msra.mxu0 0
  %839 = vmatprep.subr.bf16.mxu0 0
  %840 = vmatpush1.bf16.msra.mxu0 0
  %841 = vmatprep.subr.bf16.mxu0 0
  %842 = vmatpush1.bf16.msra.mxu0 0
  %843 = vmatprep.mubr.bf16.mxu0 0
  %844 = vmatmul.mubr.bf16.gmra.mrb[0].mxu0 %v766
  %v845 = vpop.f32.mrb[0].mxu0
  %v846 = vadd.f32 %v739, %v845
  %v847 = vpop.f32.mrb[0].mxu0
  %v848 = vpop.f32.mrb[0].mxu0
  %v849 = vadd.f32 %v739, %v848
  %v850 = vpop.f32.mrb[0].mxu0
  %851 = vdwg.mxu0
  %v852 = vld [vmem:[%s4] sm:$0x1]
  %v854 = vlaneseq
  %v855 = vshrl.u32 %v854, 7
  %v856 = vsub.s32 0, %v855
  %v857 = vrot.slane %v852, %v856
  %v867 = vunpack.c.l.b16 %v718
  %v868 = vunpack.c.h.b16 %v718
  %v869 = vunpack.c.l.b16 %v719
  %v870 = vunpack.c.l.b16 %v720
  %v871 = vunpack.c.h.b16 %v720
  %v872 = vunpack.c.l.b16 %v721
  %v873 = vunpack.c.l.b16 %v722
  %v874 = vunpack.c.h.b16 %v722
  %v875 = vunpack.c.l.b16 %v723
  %v876 = vunpack.c.l.b16 %v724
  %v877 = vunpack.c.h.b16 %v724
  %v878 = vunpack.c.l.b16 %v725
  %v879 = vpack.c.b16 %v870, %v867
  %v880 = vpack.c.b16 %v871, %v868
  %v881 = vpack.c.b16 %v872, %v869
  %v882 = vpack.c.b16 %v876, %v873
  %v883 = vpack.c.b16 %v877, %v874
  %v884 = vpack.c.b16 %v878, %v875
  %vm891 = vcmask 261120
  %v893 = vsel %vm891, 0, 0
  %895 = vmatprep.subr.bf16.mxu0 %v880
  %896 = vmatpush1.bf16.msra.mxu0 %v879
  %897 = vmatprep.subr.bf16.mxu0 %v883
  %898 = vmatpush1.bf16.msra.mxu0 %v882
  %899 = vmatprep.subr.bf16.mxu0 0
  %900 = vmatpush1.bf16.msra.mxu0 0
  %901 = vmatprep.subr.bf16.mxu0 0
  %902 = vmatpush1.bf16.msra.mxu0 0
  %903 = vmatprep.subr.bf16.mxu0 0
  %904 = vmatpush1.bf16.msra.mxu0 0
  %905 = vmatprep.subr.bf16.mxu0 0
  %906 = vmatpush1.bf16.msra.mxu0 0
  %907 = vmatprep.subr.bf16.mxu0 0
  %908 = vmatpush1.bf16.msra.mxu0 0
  %909 = vmatprep.subr.bf16.mxu0 0
  %910 = vmatpush1.bf16.msra.mxu0 0
  %911 = vmatprep.subr.bf16.mxu0 0
  %912 = vmatpush1.bf16.msra.mxu0 0
  %913 = vmatprep.subr.bf16.mxu0 0
  %914 = vmatpush1.bf16.msra.mxu0 0
  %915 = vmatprep.subr.bf16.mxu0 0
  %916 = vmatpush1.bf16.msra.mxu0 0
  %917 = vmatprep.subr.bf16.mxu0 0
  %918 = vmatpush1.bf16.msra.mxu0 0
  %919 = vmatprep.subr.bf16.mxu0 0
  %920 = vmatpush1.bf16.msra.mxu0 0
  %921 = vmatprep.subr.bf16.mxu0 0
  %922 = vmatpush1.bf16.msra.mxu0 0
  %923 = vmatprep.subr.bf16.mxu0 0
  %924 = vmatpush1.bf16.msra.mxu0 0
  %925 = vmatprep.subr.bf16.mxu0 0
  %926 = vmatpush1.bf16.msra.mxu0 0
  %927 = vmatprep.mubr.bf16.mxu0 0
  %928 = vmatmul.mubr.bf16.gmra.mrb[0].mxu0 %v893
  %v929 = vpop.f32.mrb[0].mxu0
  %v930 = vadd.f32 0.0, %v929
  %v931 = vpop.f32.mrb[0].mxu0
  %v932 = vadd.f32 0.0, %v931
  %v933 = vpop.f32.mrb[0].mxu0
  %v934 = vpop.f32.mrb[0].mxu0
  %935 = vdwg.mxu0
  %936 = vmatprep.subr.bf16.mxu0 0
  %937 = vmatpush1.bf16.msra.mxu0 %v881
  %938 = vmatprep.subr.bf16.mxu0 0
  %939 = vmatpush1.bf16.msra.mxu0 %v884
  %940 = vmatprep.subr.bf16.mxu0 0
  %941 = vmatpush1.bf16.msra.mxu0 0
  %942 = vmatprep.subr.bf16.mxu0 0
  %943 = vmatpush1.bf16.msra.mxu0 0
  %944 = vmatprep.subr.bf16.mxu0 0
  %945 = vmatpush1.bf16.msra.mxu0 0
  %946 = vmatprep.subr.bf16.mxu0 0
  %947 = vmatpush1.bf16.msra.mxu0 0
  %948 = vmatprep.subr.bf16.mxu0 0
  %949 = vmatpush1.bf16.msra.mxu0 0
  %950 = vmatprep.subr.bf16.mxu0 0
  %951 = vmatpush1.bf16.msra.mxu0 0
  %952 = vmatprep.subr.bf16.mxu0 0
  %953 = vmatpush1.bf16.msra.mxu0 0
  %954 = vmatprep.subr.bf16.mxu0 0
  %955 = vmatpush1.bf16.msra.mxu0 0
  %956 = vmatprep.subr.bf16.mxu0 0
  %957 = vmatpush1.bf16.msra.mxu0 0
  %958 = vmatprep.subr.bf16.mxu0 0
  %959 = vmatpush1.bf16.msra.mxu0 0
  %960 = vmatprep.subr.bf16.mxu0 0
  %961 = vmatpush1.bf16.msra.mxu0 0
  %962 = vmatprep.subr.bf16.mxu0 0
  %963 = vmatpush1.bf16.msra.mxu0 0
  %964 = vmatprep.subr.bf16.mxu0 0
  %965 = vmatpush1.bf16.msra.mxu0 0
  %966 = vmatprep.subr.bf16.mxu0 0
  %967 = vmatpush1.bf16.msra.mxu0 0
  %968 = vmatprep.mubr.bf16.mxu0 0
  %969 = vmatmul.mubr.bf16.gmra.mrb[0].mxu0 %v893
  %v970 = vpop.f32.mrb[0].mxu0
  %v971 = vadd.f32 0.0, %v970
  %v972 = vpop.f32.mrb[0].mxu0
  %v973 = vpop.f32.mrb[0].mxu0
  %v974 = vpop.f32.mrb[0].mxu0
  %975 = vdwg.mxu0
  %v976 = vadd.f32 %v803, %v930
  %v977 = vxor.u32 %v976, 2147483648
  %v978 = vmul.f32 %v977, 1.442695
  %v979 = vpow.pop %v978
  %v980 = vadd.f32 %v979, 1.0
  %v981 = vrcp.pop %v980
  %v982 = vmul.f32 1.0, %v981
  %v983 = vadd.f32 %v805, %v932
  %v984 = vxor.u32 %v983, 2147483648
  %v985 = vmul.f32 %v984, 1.442695
  %v986 = vpow.pop %v985
  %v987 = vadd.f32 %v986, 1.0
  %v988 = vrcp.pop %v987
  %v989 = vmul.f32 1.0, %v988
  %v990 = vadd.f32 %v971, %v857
  %v991 = vmul.f32 %v982, %v990
  %v992 = vadd.f32 %v846, %v991
  %v993 = vtanh.pop %v992
  %v994 = vsub.f32 0.0, %v993
  %v995 = vmul.f32 %v989, %v994
  %v996 = vadd.f32 %v993, %v995
  %v997 = vpack.c.bf16 %v996, %v996
  %v999 = vsel %vm891, %v997, 0
  %1001 = vmatprep.subr.bf16.mxu0 %v880
  %1002 = vmatpush1.bf16.msra.mxu0 %v879
  %1003 = vmatprep.subr.bf16.mxu0 %v883
  %1004 = vmatpush1.bf16.msra.mxu0 %v882
  %1005 = vmatprep.subr.bf16.mxu0 0
  %1006 = vmatpush1.bf16.msra.mxu0 0
  %1007 = vmatprep.subr.bf16.mxu0 0
  %1008 = vmatpush1.bf16.msra.mxu0 0
  %1009 = vmatprep.subr.bf16.mxu0 0
  %1010 = vmatpush1.bf16.msra.mxu0 0
  %1011 = vmatprep.subr.bf16.mxu0 0
  %1012 = vmatpush1.bf16.msra.mxu0 0
  %1013 = vmatprep.subr.bf16.mxu0 0
  %1014 = vmatpush1.bf16.msra.mxu0 0
  %1015 = vmatprep.subr.bf16.mxu0 0
  %1016 = vmatpush1.bf16.msra.mxu0 0
  %1017 = vmatprep.subr.bf16.mxu0 0
  %1018 = vmatpush1.bf16.msra.mxu0 0
  %1019 = vmatprep.subr.bf16.mxu0 0
  %1020 = vmatpush1.bf16.msra.mxu0 0
  %1021 = vmatprep.subr.bf16.mxu0 0
  %1022 = vmatpush1.bf16.msra.mxu0 0
  %1023 = vmatprep.subr.bf16.mxu0 0
  %1024 = vmatpush1.bf16.msra.mxu0 0
  %1025 = vmatprep.subr.bf16.mxu0 0
  %1026 = vmatpush1.bf16.msra.mxu0 0
  %1027 = vmatprep.subr.bf16.mxu0 0
  %1028 = vmatpush1.bf16.msra.mxu0 0
  %1029 = vmatprep.subr.bf16.mxu0 0
  %1030 = vmatpush1.bf16.msra.mxu0 0
  %1031 = vmatprep.subr.bf16.mxu0 0
  %1032 = vmatpush1.bf16.msra.mxu0 0
  %1033 = vmatprep.mubr.bf16.mxu0 0
  %1034 = vmatmul.mubr.bf16.gmra.mrb[0].mxu0 %v999
  %v1035 = vpop.f32.mrb[0].mxu0
  %v1036 = vadd.f32 0.0, %v1035
  %v1037 = vpop.f32.mrb[0].mxu0
  %v1038 = vadd.f32 0.0, %v1037
  %v1039 = vpop.f32.mrb[0].mxu0
  %v1040 = vpop.f32.mrb[0].mxu0
  %1041 = vdwg.mxu0
  %1042 = vmatprep.subr.bf16.mxu0 0
  %1043 = vmatpush1.bf16.msra.mxu0 %v881
  %1044 = vmatprep.subr.bf16.mxu0 0
  %1045 = vmatpush1.bf16.msra.mxu0 %v884
  %1046 = vmatprep.subr.bf16.mxu0 0
  %1047 = vmatpush1.bf16.msra.mxu0 0
  %1048 = vmatprep.subr.bf16.mxu0 0
  %1049 = vmatpush1.bf16.msra.mxu0 0
  %1050 = vmatprep.subr.bf16.mxu0 0
  %1051 = vmatpush1.bf16.msra.mxu0 0
  %1052 = vmatprep.subr.bf16.mxu0 0
  %1053 = vmatpush1.bf16.msra.mxu0 0
  %1054 = vmatprep.subr.bf16.mxu0 0
  %1055 = vmatpush1.bf16.msra.mxu0 0
  %1056 = vmatprep.subr.bf16.mxu0 0
  %1057 = vmatpush1.bf16.msra.mxu0 0
  %1058 = vmatprep.subr.bf16.mxu0 0
  %1059 = vmatpush1.bf16.msra.mxu0 0
  %1060 = vmatprep.subr.bf16.mxu0 0
  %1061 = vmatpush1.bf16.msra.mxu0 0
  %1062 = vmatprep.subr.bf16.mxu0 0
  %1063 = vmatpush1.bf16.msra.mxu0 0
  %1064 = vmatprep.subr.bf16.mxu0 0
  %1065 = vmatpush1.bf16.msra.mxu0 0
  %1066 = vmatprep.subr.bf16.mxu0 0
  %1067 = vmatpush1.bf16.msra.mxu0 0
  %1068 = vmatprep.subr.bf16.mxu0 0
  %1069 = vmatpush1.bf16.msra.mxu0 0
  %1070 = vmatprep.subr.bf16.mxu0 0
  %1071 = vmatpush1.bf16.msra.mxu0 0
  %1072 = vmatprep.subr.bf16.mxu0 0
  %1073 = vmatpush1.bf16.msra.mxu0 0
  %1074 = vmatprep.mubr.bf16.mxu0 0
  %1075 = vmatmul.mubr.bf16.gmra.mrb[0].mxu0 %v999
  %v1076 = vpop.f32.mrb[0].mxu0
  %v1077 = vadd.f32 0.0, %v1076
  %v1078 = vpop.f32.mrb[0].mxu0
  %v1079 = vpop.f32.mrb[0].mxu0
  %v1080 = vpop.f32.mrb[0].mxu0
  %1081 = vdwg.mxu0
  %v1083 = vrot.slane %v1036, 6
  %v1085 = vadd.f32 %v803, %v1083
  %v1086 = vxor.u32 %v1085, 2147483648
  %v1087 = vmul.f32 %v1086, 1.442695
  %v1088 = vpow.pop %v1087
  %v1089 = vadd.f32 %v1088, 1.0
  %v1090 = vrcp.pop %v1089
  %v1091 = vmul.f32 1.0, %v1090
  %v1093 = vrot.slane %v1038, 6
  %v1095 = vadd.f32 %v805, %v1093
  %v1096 = vxor.u32 %v1095, 2147483648
  %v1097 = vmul.f32 %v1096, 1.442695
  %v1098 = vpow.pop %v1097
  %v1099 = vadd.f32 %v1098, 1.0
  %v1100 = vrcp.pop %v1099
  %v1101 = vmul.f32 1.0, %v1100
  %v1102 = vadd.f32 %v1077, %v857
  %v1104 = vrot.slane %v1102, 6
  %v1106 = vmul.f32 %v1091, %v1104
  %v1107 = vadd.f32 %v846, %v1106
  %v1108 = vtanh.pop %v1107
  %v1110 = vrot.slane %v1108, 2
  %v1112 = vsub.f32 %v996, %v1110
  %v1114 = vrot.slane %v1112, 6
  %v1116 = vmul.f32 %v1101, %v1114
  %v1117 = vadd.f32 %v1108, %v1116
  %v1118 = vpack.c.bf16 %v1117, %v1117
  %v1120 = vrot.slane %v1118, 1
  %v1122 = vsel %vm891, %v1120, 0
  %1124 = vmatprep.subr.bf16.mxu0 %v880
  %1125 = vmatpush1.bf16.msra.mxu0 %v879
  %1126 = vmatprep.subr.bf16.mxu0 %v883
  %1127 = vmatpush1.bf16.msra.mxu0 %v882
  %1128 = vmatprep.subr.bf16.mxu0 0
  %1129 = vmatpush1.bf16.msra.mxu0 0
  %1130 = vmatprep.subr.bf16.mxu0 0
  %1131 = vmatpush1.bf16.msra.mxu0 0
  %1132 = vmatprep.subr.bf16.mxu0 0
  %1133 = vmatpush1.bf16.msra.mxu0 0
  %1134 = vmatprep.subr.bf16.mxu0 0
  %1135 = vmatpush1.bf16.msra.mxu0 0
  %1136 = vmatprep.subr.bf16.mxu0 0
  %1137 = vmatpush1.bf16.msra.mxu0 0
  %1138 = vmatprep.subr.bf16.mxu0 0
  %1139 = vmatpush1.bf16.msra.mxu0 0
  %1140 = vmatprep.subr.bf16.mxu0 0
  %1141 = vmatpush1.bf16.msra.mxu0 0
  %1142 = vmatprep.subr.bf16.mxu0 0
  %1143 = vmatpush1.bf16.msra.mxu0 0
  %1144 = vmatprep.subr.bf16.mxu0 0
  %1145 = vmatpush1.bf16.msra.mxu0 0
  %1146 = vmatprep.subr.bf16.mxu0 0
  %1147 = vmatpush1.bf16.msra.mxu0 0
  %1148 = vmatprep.subr.bf16.mxu0 0
  %1149 = vmatpush1.bf16.msra.mxu0 0
  %1150 = vmatprep.subr.bf16.mxu0 0
  %1151 = vmatpush1.bf16.msra.mxu0 0
  %1152 = vmatprep.subr.bf16.mxu0 0
  %1153 = vmatpush1.bf16.msra.mxu0 0
  %1154 = vmatprep.subr.bf16.mxu0 0
  %1155 = vmatpush1.bf16.msra.mxu0 0
  %1156 = vmatprep.mubr.bf16.mxu0 0
  %1157 = vmatmul.mubr.bf16.gmra.mrb[0].mxu0 %v1122
  %v1158 = vpop.f32.mrb[0].mxu0
  %v1159 = vadd.f32 0.0, %v1158
  %v1160 = vpop.f32.mrb[0].mxu0
  %v1161 = vadd.f32 0.0, %v1160
  %v1162 = vpop.f32.mrb[0].mxu0
  %v1163 = vpop.f32.mrb[0].mxu0
  %1164 = vdwg.mxu0
  %1165 = vmatprep.subr.bf16.mxu0 0
  %1166 = vmatpush1.bf16.msra.mxu0 %v881
  %1167 = vmatprep.subr.bf16.mxu0 0
  %1168 = vmatpush1.bf16.msra.mxu0 %v884
  %1169 = vmatprep.subr.bf16.mxu0 0
  %1170 = vmatpush1.bf16.msra.mxu0 0
  %1171 = vmatprep.subr.bf16.mxu0 0
  %1172 = vmatpush1.bf16.msra.mxu0 0
  %1173 = vmatprep.subr.bf16.mxu0 0
  %1174 = vmatpush1.bf16.msra.mxu0 0
  %1175 = vmatprep.subr.bf16.mxu0 0
  %1176 = vmatpush1.bf16.msra.mxu0 0
  %1177 = vmatprep.subr.bf16.mxu0 0
  %1178 = vmatpush1.bf16.msra.mxu0 0
  %1179 = vmatprep.subr.bf16.mxu0 0
  %1180 = vmatpush1.bf16.msra.mxu0 0
  %1181 = vmatprep.subr.bf16.mxu0 0
  %1182 = vmatpush1.bf16.msra.mxu0 0
  %1183 = vmatprep.subr.bf16.mxu0 0
  %1184 = vmatpush1.bf16.msra.mxu0 0
  %1185 = vmatprep.subr.bf16.mxu0 0
  %1186 = vmatpush1.bf16.msra.mxu0 0
  %1187 = vmatprep.subr.bf16.mxu0 0
  %1188 = vmatpush1.bf16.msra.mxu0 0
  %1189 = vmatprep.subr.bf16.mxu0 0
  %1190 = vmatpush1.bf16.msra.mxu0 0
  %1191 = vmatprep.subr.bf16.mxu0 0
  %1192 = vmatpush1.bf16.msra.mxu0 0
  %1193 = vmatprep.subr.bf16.mxu0 0
  %1194 = vmatpush1.bf16.msra.mxu0 0
  %1195 = vmatprep.subr.bf16.mxu0 0
  %1196 = vmatpush1.bf16.msra.mxu0 0
  %1197 = vmatprep.mubr.bf16.mxu0 0
  %1198 = vmatmul.mubr.bf16.gmra.mrb[0].mxu0 %v1122
  %v1199 = vpop.f32.mrb[0].mxu0
  %v1200 = vadd.f32 0.0, %v1199
  %v1201 = vpop.f32.mrb[0].mxu0
  %v1202 = vpop.f32.mrb[0].mxu0
  %v1203 = vpop.f32.mrb[0].mxu0
  %1204 = vdwg.mxu0
  %v1206 = vrot.slane %v1159, 4
  %v1208 = vadd.f32 %v803, %v1206
  %v1209 = vxor.u32 %v1208, 2147483648
  %v1210 = vmul.f32 %v1209, 1.442695
  %v1211 = vpow.pop %v1210
  %v1212 = vadd.f32 %v1211, 1.0
  %v1213 = vrcp.pop %v1212
  %v1214 = vmul.f32 1.0, %v1213
  %v1216 = vrot.slane %v1161, 4
  %v1218 = vadd.f32 %v805, %v1216
  %v1219 = vxor.u32 %v1218, 2147483648
  %v1220 = vmul.f32 %v1219, 1.442695
  %v1221 = vpow.pop %v1220
  %v1222 = vadd.f32 %v1221, 1.0
  %v1223 = vrcp.pop %v1222
  %v1224 = vmul.f32 1.0, %v1223
  %v1225 = vadd.f32 %v1200, %v857
  %v1227 = vrot.slane %v1225, 4
  %v1229 = vmul.f32 %v1214, %v1227
  %v1230 = vadd.f32 %v846, %v1229
  %v1231 = vtanh.pop %v1230
  %v1233 = vrot.slane %v1231, 2
  %v1235 = vsub.f32 %v1117, %v1233
  %v1237 = vrot.slane %v1235, 6
  %v1239 = vmul.f32 %v1224, %v1237
  %v1240 = vadd.f32 %v1231, %v1239
  %v1241 = vpack.c.bf16 %v1240, %v1240
  %v1243 = vrot.slane %v1241, 2
  %v1245 = vsel %vm891, %v1243, 0
  %1247 = vmatprep.subr.bf16.mxu0 %v880
  %1248 = vmatpush1.bf16.msra.mxu0 %v879
  %1249 = vmatprep.subr.bf16.mxu0 %v883
  %1250 = vmatpush1.bf16.msra.mxu0 %v882
  %1251 = vmatprep.subr.bf16.mxu0 0
  %1252 = vmatpush1.bf16.msra.mxu0 0
  %1253 = vmatprep.subr.bf16.mxu0 0
  %1254 = vmatpush1.bf16.msra.mxu0 0
  %1255 = vmatprep.subr.bf16.mxu0 0
  %1256 = vmatpush1.bf16.msra.mxu0 0
  %1257 = vmatprep.subr.bf16.mxu0 0
  %1258 = vmatpush1.bf16.msra.mxu0 0
  %1259 = vmatprep.subr.bf16.mxu0 0
  %1260 = vmatpush1.bf16.msra.mxu0 0
  %1261 = vmatprep.subr.bf16.mxu0 0
  %1262 = vmatpush1.bf16.msra.mxu0 0
  %1263 = vmatprep.subr.bf16.mxu0 0
  %1264 = vmatpush1.bf16.msra.mxu0 0
  %1265 = vmatprep.subr.bf16.mxu0 0
  %1266 = vmatpush1.bf16.msra.mxu0 0
  %1267 = vmatprep.subr.bf16.mxu0 0
  %1268 = vmatpush1.bf16.msra.mxu0 0
  %1269 = vmatprep.subr.bf16.mxu0 0
  %1270 = vmatpush1.bf16.msra.mxu0 0
  %1271 = vmatprep.subr.bf16.mxu0 0
  %1272 = vmatpush1.bf16.msra.mxu0 0
  %1273 = vmatprep.subr.bf16.mxu0 0
  %1274 = vmatpush1.bf16.msra.mxu0 0
  %1275 = vmatprep.subr.bf16.mxu0 0
  %1276 = vmatpush1.bf16.msra.mxu0 0
  %1277 = vmatprep.subr.bf16.mxu0 0
  %1278 = vmatpush1.bf16.msra.mxu0 0
  %1279 = vmatprep.mubr.bf16.mxu0 0
  %1280 = vmatmul.mubr.bf16.gmra.mrb[0].mxu0 %v1245
  %v1281 = vpop.f32.mrb[0].mxu0
  %v1282 = vadd.f32 0.0, %v1281
  %v1283 = vpop.f32.mrb[0].mxu0
  %v1284 = vadd.f32 0.0, %v1283
  %v1285 = vpop.f32.mrb[0].mxu0
  %v1286 = vpop.f32.mrb[0].mxu0
  %1287 = vdwg.mxu0
  %1288 = vmatprep.subr.bf16.mxu0 0
  %1289 = vmatpush1.bf16.msra.mxu0 %v881
  %1290 = vmatprep.subr.bf16.mxu0 0
  %1291 = vmatpush1.bf16.msra.mxu0 %v884
  %1292 = vmatprep.subr.bf16.mxu0 0
  %1293 = vmatpush1.bf16.msra.mxu0 0
  %1294 = vmatprep.subr.bf16.mxu0 0
  %1295 = vmatpush1.bf16.msra.mxu0 0
  %1296 = vmatprep.subr.bf16.mxu0 0
  %1297 = vmatpush1.bf16.msra.mxu0 0
  %1298 = vmatprep.subr.bf16.mxu0 0
  %1299 = vmatpush1.bf16.msra.mxu0 0
  %1300 = vmatprep.subr.bf16.mxu0 0
  %1301 = vmatpush1.bf16.msra.mxu0 0
  %1302 = vmatprep.subr.bf16.mxu0 0
  %1303 = vmatpush1.bf16.msra.mxu0 0
  %1304 = vmatprep.subr.bf16.mxu0 0
  %1305 = vmatpush1.bf16.msra.mxu0 0
  %1306 = vmatprep.subr.bf16.mxu0 0
  %1307 = vmatpush1.bf16.msra.mxu0 0
  %1308 = vmatprep.subr.bf16.mxu0 0
  %1309 = vmatpush1.bf16.msra.mxu0 0
  %1310 = vmatprep.subr.bf16.mxu0 0
  %1311 = vmatpush1.bf16.msra.mxu0 0
  %1312 = vmatprep.subr.bf16.mxu0 0
  %1313 = vmatpush1.bf16.msra.mxu0 0
  %1314 = vmatprep.subr.bf16.mxu0 0
  %1315 = vmatpush1.bf16.msra.mxu0 0
  %1316 = vmatprep.subr.bf16.mxu0 0
  %1317 = vmatpush1.bf16.msra.mxu0 0
  %1318 = vmatprep.subr.bf16.mxu0 0
  %1319 = vmatpush1.bf16.msra.mxu0 0
  %1320 = vmatprep.mubr.bf16.mxu0 0
  %1321 = vmatmul.mubr.bf16.gmra.mrb[0].mxu0 %v1245
  %v1322 = vpop.f32.mrb[0].mxu0
  %v1323 = vadd.f32 0.0, %v1322
  %v1324 = vpop.f32.mrb[0].mxu0
  %v1325 = vpop.f32.mrb[0].mxu0
  %v1326 = vpop.f32.mrb[0].mxu0
  %1327 = vdwg.mxu0
  %v1329 = vrot.slane %v1282, 2
  %v1331 = vadd.f32 %v803, %v1329
  %v1332 = vxor.u32 %v1331, 2147483648
  %v1333 = vmul.f32 %v1332, 1.442695
  %v1334 = vpow.pop %v1333
  %v1335 = vadd.f32 %v1334, 1.0
  %v1336 = vrcp.pop %v1335
  %v1337 = vmul.f32 1.0, %v1336
  %v1339 = vrot.slane %v1284, 2
  %v1341 = vadd.f32 %v805, %v1339
  %v1342 = vxor.u32 %v1341, 2147483648
  %v1343 = vmul.f32 %v1342, 1.442695
  %v1344 = vpow.pop %v1343
  %v1345 = vadd.f32 %v1344, 1.0
  %v1346 = vrcp.pop %v1345
  %v1347 = vmul.f32 1.0, %v1346
  %v1348 = vadd.f32 %v1323, %v857
  %v1350 = vrot.slane %v1348, 2
  %v1352 = vmul.f32 %v1337, %v1350
  %v1353 = vadd.f32 %v846, %v1352
  %v1354 = vtanh.pop %v1353
  %v1356 = vrot.slane %v1354, 2
  %v1358 = vsub.f32 %v1240, %v1356
  %v1360 = vrot.slane %v1358, 6
  %v1362 = vmul.f32 %v1347, %v1360
  %v1363 = vadd.f32 %v1354, %v1362
  %v1364 = vpack.c.bf16 %v1363, %v1363
  %v1366 = vrot.slane %v1364, 3
  %v1368 = vsel %vm891, %v1366, 0
  %1370 = vmatprep.subr.bf16.mxu0 %v880
  %1371 = vmatpush1.bf16.msra.mxu0 %v879
  %1372 = vmatprep.subr.bf16.mxu0 %v883
  %1373 = vmatpush1.bf16.msra.mxu0 %v882
  %1374 = vmatprep.subr.bf16.mxu0 0
  %1375 = vmatpush1.bf16.msra.mxu0 0
  %1376 = vmatprep.subr.bf16.mxu0 0
  %1377 = vmatpush1.bf16.msra.mxu0 0
  %1378 = vmatprep.subr.bf16.mxu0 0
  %1379 = vmatpush1.bf16.msra.mxu0 0
  %1380 = vmatprep.subr.bf16.mxu0 0
  %1381 = vmatpush1.bf16.msra.mxu0 0
  %1382 = vmatprep.subr.bf16.mxu0 0
  %1383 = vmatpush1.bf16.msra.mxu0 0
  %1384 = vmatprep.subr.bf16.mxu0 0
  %1385 = vmatpush1.bf16.msra.mxu0 0
  %1386 = vmatprep.subr.bf16.mxu0 0
  %1387 = vmatpush1.bf16.msra.mxu0 0
  %1388 = vmatprep.subr.bf16.mxu0 0
  %1389 = vmatpush1.bf16.msra.mxu0 0
  %1390 = vmatprep.subr.bf16.mxu0 0
  %1391 = vmatpush1.bf16.msra.mxu0 0
  %1392 = vmatprep.subr.bf16.mxu0 0
  %1393 = vmatpush1.bf16.msra.mxu0 0
  %1394 = vmatprep.subr.bf16.mxu0 0
  %1395 = vmatpush1.bf16.msra.mxu0 0
  %1396 = vmatprep.subr.bf16.mxu0 0
  %1397 = vmatpush1.bf16.msra.mxu0 0
  %1398 = vmatprep.subr.bf16.mxu0 0
  %1399 = vmatpush1.bf16.msra.mxu0 0
  %1400 = vmatprep.subr.bf16.mxu0 0
  %1401 = vmatpush1.bf16.msra.mxu0 0
  %1402 = vmatprep.mubr.bf16.mxu0 0
  %1403 = vmatmul.mubr.bf16.gmra.mrb[0].mxu0 %v1368
  %v1404 = vpop.f32.mrb[0].mxu0
  %v1405 = vadd.f32 0.0, %v1404
  %v1406 = vpop.f32.mrb[0].mxu0
  %v1407 = vadd.f32 0.0, %v1406
  %v1408 = vpop.f32.mrb[0].mxu0
  %v1409 = vpop.f32.mrb[0].mxu0
  %1410 = vdwg.mxu0
  %1411 = vmatprep.subr.bf16.mxu0 0
  %1412 = vmatpush1.bf16.msra.mxu0 %v881
  %1413 = vmatprep.subr.bf16.mxu0 0
  %1414 = vmatpush1.bf16.msra.mxu0 %v884
  %1415 = vmatprep.subr.bf16.mxu0 0
  %1416 = vmatpush1.bf16.msra.mxu0 0
  %1417 = vmatprep.subr.bf16.mxu0 0
  %1418 = vmatpush1.bf16.msra.mxu0 0
  %1419 = vmatprep.subr.bf16.mxu0 0
  %1420 = vmatpush1.bf16.msra.mxu0 0
  %1421 = vmatprep.subr.bf16.mxu0 0
  %1422 = vmatpush1.bf16.msra.mxu0 0
  %1423 = vmatprep.subr.bf16.mxu0 0
  %1424 = vmatpush1.bf16.msra.mxu0 0
  %1425 = vmatprep.subr.bf16.mxu0 0
  %1426 = vmatpush1.bf16.msra.mxu0 0
  %1427 = vmatprep.subr.bf16.mxu0 0
  %1428 = vmatpush1.bf16.msra.mxu0 0
  %1429 = vmatprep.subr.bf16.mxu0 0
  %1430 = vmatpush1.bf16.msra.mxu0 0
  %1431 = vmatprep.subr.bf16.mxu0 0
  %1432 = vmatpush1.bf16.msra.mxu0 0
  %1433 = vmatprep.subr.bf16.mxu0 0
  %1434 = vmatpush1.bf16.msra.mxu0 0
  %1435 = vmatprep.subr.bf16.mxu0 0
  %1436 = vmatpush1.bf16.msra.mxu0 0
  %1437 = vmatprep.subr.bf16.mxu0 0
  %1438 = vmatpush1.bf16.msra.mxu0 0
  %1439 = vmatprep.subr.bf16.mxu0 0
  %1440 = vmatpush1.bf16.msra.mxu0 0
  %1441 = vmatprep.subr.bf16.mxu0 0
  %1442 = vmatpush1.bf16.msra.mxu0 0
  %1443 = vmatprep.mubr.bf16.mxu0 0
  %1444 = vmatmul.mubr.bf16.gmra.mrb[0].mxu0 %v1368
  %v1445 = vpop.f32.mrb[0].mxu0
  %v1446 = vadd.f32 0.0, %v1445
  %v1447 = vpop.f32.mrb[0].mxu0
  %v1448 = vpop.f32.mrb[0].mxu0
  %v1449 = vpop.f32.mrb[0].mxu0
  %1450 = vdwg.mxu0
  %v1451 = vadd.f32 %v807, %v1405
  %v1452 = vxor.u32 %v1451, 2147483648
  %v1453 = vmul.f32 %v1452, 1.442695
  %v1454 = vpow.pop %v1453
  %v1455 = vadd.f32 %v1454, 1.0
  %v1456 = vrcp.pop %v1455
  %v1457 = vmul.f32 1.0, %v1456
  %v1458 = vadd.f32 %v809, %v1407
  %v1459 = vxor.u32 %v1458, 2147483648
  %v1460 = vmul.f32 %v1459, 1.442695
  %v1461 = vpow.pop %v1460
  %v1462 = vadd.f32 %v1461, 1.0
  %v1463 = vrcp.pop %v1462
  %v1464 = vmul.f32 1.0, %v1463
  %v1465 = vadd.f32 %v1446, %v857
  %v1466 = vmul.f32 %v1457, %v1465
  %v1467 = vadd.f32 %v849, %v1466
  %v1468 = vtanh.pop %v1467
  %v1470 = vrot.slane %v1468, 2
  %v1472 = vsub.f32 %v1363, %v1470
  %v1474 = vrot.slane %v1472, 6
  %v1476 = vmul.f32 %v1464, %v1474
  %v1477 = vadd.f32 %v1468, %v1476
  %v1478 = vpack.c.bf16 %v1477, %v1477
  %v1480 = vsel %vm891, %v1478, 0
  %1482 = vmatprep.subr.bf16.mxu0 %v880
  %1483 = vmatpush1.bf16.msra.mxu0 %v879
  %1484 = vmatprep.subr.bf16.mxu0 %v883
  %1485 = vmatpush1.bf16.msra.mxu0 %v882
  %1486 = vmatprep.subr.bf16.mxu0 0
  %1487 = vmatpush1.bf16.msra.mxu0 0
  %1488 = vmatprep.subr.bf16.mxu0 0
  %1489 = vmatpush1.bf16.msra.mxu0 0
  %1490 = vmatprep.subr.bf16.mxu0 0
  %1491 = vmatpush1.bf16.msra.mxu0 0
  %1492 = vmatprep.subr.bf16.mxu0 0
  %1493 = vmatpush1.bf16.msra.mxu0 0
  %1494 = vmatprep.subr.bf16.mxu0 0
  %1495 = vmatpush1.bf16.msra.mxu0 0
  %1496 = vmatprep.subr.bf16.mxu0 0
  %1497 = vmatpush1.bf16.msra.mxu0 0
  %1498 = vmatprep.subr.bf16.mxu0 0
  %1499 = vmatpush1.bf16.msra.mxu0 0
  %1500 = vmatprep.subr.bf16.mxu0 0
  %1501 = vmatpush1.bf16.msra.mxu0 0
  %1502 = vmatprep.subr.bf16.mxu0 0
  %1503 = vmatpush1.bf16.msra.mxu0 0
  %1504 = vmatprep.subr.bf16.mxu0 0
  %1505 = vmatpush1.bf16.msra.mxu0 0
  %1506 = vmatprep.subr.bf16.mxu0 0
  %1507 = vmatpush1.bf16.msra.mxu0 0
  %1508 = vmatprep.subr.bf16.mxu0 0
  %1509 = vmatpush1.bf16.msra.mxu0 0
  %1510 = vmatprep.subr.bf16.mxu0 0
  %1511 = vmatpush1.bf16.msra.mxu0 0
  %1512 = vmatprep.subr.bf16.mxu0 0
  %1513 = vmatpush1.bf16.msra.mxu0 0
  %1514 = vmatprep.mubr.bf16.mxu0 0
  %1515 = vmatmul.mubr.bf16.gmra.mrb[0].mxu0 %v1480
  %v1516 = vpop.f32.mrb[0].mxu0
  %v1517 = vadd.f32 0.0, %v1516
  %v1518 = vpop.f32.mrb[0].mxu0
  %v1519 = vadd.f32 0.0, %v1518
  %v1520 = vpop.f32.mrb[0].mxu0
  %v1521 = vpop.f32.mrb[0].mxu0
  %1522 = vdwg.mxu0
  %1523 = vmatprep.subr.bf16.mxu0 0
  %1524 = vmatpush1.bf16.msra.mxu0 %v881
  %1525 = vmatprep.subr.bf16.mxu0 0
  %1526 = vmatpush1.bf16.msra.mxu0 %v884
  %1527 = vmatprep.subr.bf16.mxu0 0
  %1528 = vmatpush1.bf16.msra.mxu0 0
  %1529 = vmatprep.subr.bf16.mxu0 0
  %1530 = vmatpush1.bf16.msra.mxu0 0
  %1531 = vmatprep.subr.bf16.mxu0 0
  %1532 = vmatpush1.bf16.msra.mxu0 0
  %1533 = vmatprep.subr.bf16.mxu0 0
  %1534 = vmatpush1.bf16.msra.mxu0 0
  %1535 = vmatprep.subr.bf16.mxu0 0
  %1536 = vmatpush1.bf16.msra.mxu0 0
  %1537 = vmatprep.subr.bf16.mxu0 0
  %1538 = vmatpush1.bf16.msra.mxu0 0
  %1539 = vmatprep.subr.bf16.mxu0 0
  %1540 = vmatpush1.bf16.msra.mxu0 0
  %1541 = vmatprep.subr.bf16.mxu0 0
  %1542 = vmatpush1.bf16.msra.mxu0 0
  %1543 = vmatprep.subr.bf16.mxu0 0
  %1544 = vmatpush1.bf16.msra.mxu0 0
  %1545 = vmatprep.subr.bf16.mxu0 0
  %1546 = vmatpush1.bf16.msra.mxu0 0
  %1547 = vmatprep.subr.bf16.mxu0 0
  %1548 = vmatpush1.bf16.msra.mxu0 0
  %1549 = vmatprep.subr.bf16.mxu0 0
  %1550 = vmatpush1.bf16.msra.mxu0 0
  %1551 = vmatprep.subr.bf16.mxu0 0
  %1552 = vmatpush1.bf16.msra.mxu0 0
  %1553 = vmatprep.subr.bf16.mxu0 0
  %1554 = vmatpush1.bf16.msra.mxu0 0
  %1555 = vmatprep.mubr.bf16.mxu0 0
  %1556 = vmatmul.mubr.bf16.gmra.mrb[0].mxu0 %v1480
  %v1557 = vpop.f32.mrb[0].mxu0
  %v1558 = vadd.f32 0.0, %v1557
  %v1559 = vpop.f32.mrb[0].mxu0
  %v1560 = vpop.f32.mrb[0].mxu0
  %v1561 = vpop.f32.mrb[0].mxu0
  %1562 = vdwg.mxu0
  %v1564 = vrot.slane %v1517, 6
  %v1566 = vadd.f32 %v807, %v1564
  %v1567 = vxor.u32 %v1566, 2147483648
  %v1568 = vmul.f32 %v1567, 1.442695
  %v1569 = vpow.pop %v1568
  %v1570 = vadd.f32 %v1569, 1.0
  %v1571 = vrcp.pop %v1570
  %v1572 = vmul.f32 1.0, %v1571
  %v1574 = vrot.slane %v1519, 6
  %v1576 = vadd.f32 %v809, %v1574
  %v1577 = vxor.u32 %v1576, 2147483648
  %v1578 = vmul.f32 %v1577, 1.442695
  %v1579 = vpow.pop %v1578
  %v1580 = vadd.f32 %v1579, 1.0
  %v1581 = vrcp.pop %v1580
  %v1582 = vmul.f32 1.0, %v1581
  %v1583 = vadd.f32 %v1558, %v857
  %v1585 = vrot.slane %v1583, 6
  %v1587 = vmul.f32 %v1572, %v1585
  %v1588 = vadd.f32 %v849, %v1587
  %v1589 = vtanh.pop %v1588
  %v1591 = vrot.slane %v1589, 2
  %v1593 = vsub.f32 %v1477, %v1591
  %v1595 = vrot.slane %v1593, 6
  %v1597 = vmul.f32 %v1582, %v1595
  %v1598 = vadd.f32 %v1589, %v1597
  %v1599 = vpack.c.bf16 %v1598, %v1598
  %v1601 = vrot.slane %v1599, 1
  %v1603 = vsel %vm891, %v1601, 0
  %1605 = vmatprep.subr.bf16.mxu0 %v880
  %1606 = vmatpush1.bf16.msra.mxu0 %v879
  %1607 = vmatprep.subr.bf16.mxu0 %v883
  %1608 = vmatpush1.bf16.msra.mxu0 %v882
  %1609 = vmatprep.subr.bf16.mxu0 0
  %1610 = vmatpush1.bf16.msra.mxu0 0
  %1611 = vmatprep.subr.bf16.mxu0 0
  %1612 = vmatpush1.bf16.msra.mxu0 0
  %1613 = vmatprep.subr.bf16.mxu0 0
  %1614 = vmatpush1.bf16.msra.mxu0 0
  %1615 = vmatprep.subr.bf16.mxu0 0
  %1616 = vmatpush1.bf16.msra.mxu0 0
  %1617 = vmatprep.subr.bf16.mxu0 0
  %1618 = vmatpush1.bf16.msra.mxu0 0
  %1619 = vmatprep.subr.bf16.mxu0 0
  %1620 = vmatpush1.bf16.msra.mxu0 0
  %1621 = vmatprep.subr.bf16.mxu0 0
  %1622 = vmatpush1.bf16.msra.mxu0 0
  %1623 = vmatprep.subr.bf16.mxu0 0
  %1624 = vmatpush1.bf16.msra.mxu0 0
  %1625 = vmatprep.subr.bf16.mxu0 0
  %1626 = vmatpush1.bf16.msra.mxu0 0
  %1627 = vmatprep.subr.bf16.mxu0 0
  %1628 = vmatpush1.bf16.msra.mxu0 0
  %1629 = vmatprep.subr.bf16.mxu0 0
  %1630 = vmatpush1.bf16.msra.mxu0 0
  %1631 = vmatprep.subr.bf16.mxu0 0
  %1632 = vmatpush1.bf16.msra.mxu0 0
  %1633 = vmatprep.subr.bf16.mxu0 0
  %1634 = vmatpush1.bf16.msra.mxu0 0
  %1635 = vmatprep.subr.bf16.mxu0 0
  %1636 = vmatpush1.bf16.msra.mxu0 0
  %1637 = vmatprep.mubr.bf16.mxu0 0
  %1638 = vmatmul.mubr.bf16.gmra.mrb[0].mxu0 %v1603
  %v1639 = vpop.f32.mrb[0].mxu0
  %v1640 = vadd.f32 0.0, %v1639
  %v1641 = vpop.f32.mrb[0].mxu0
  %v1642 = vadd.f32 0.0, %v1641
  %v1643 = vpop.f32.mrb[0].mxu0
  %v1644 = vpop.f32.mrb[0].mxu0
  %1645 = vdwg.mxu0
  %1646 = vmatprep.subr.bf16.mxu0 0
  %1647 = vmatpush1.bf16.msra.mxu0 %v881
  %1648 = vmatprep.subr.bf16.mxu0 0
  %1649 = vmatpush1.bf16.msra.mxu0 %v884
  %1650 = vmatprep.subr.bf16.mxu0 0
  %1651 = vmatpush1.bf16.msra.mxu0 0
  %1652 = vmatprep.subr.bf16.mxu0 0
  %1653 = vmatpush1.bf16.msra.mxu0 0
  %1654 = vmatprep.subr.bf16.mxu0 0
  %1655 = vmatpush1.bf16.msra.mxu0 0
  %1656 = vmatprep.subr.bf16.mxu0 0
  %1657 = vmatpush1.bf16.msra.mxu0 0
  %1658 = vmatprep.subr.bf16.mxu0 0
  %1659 = vmatpush1.bf16.msra.mxu0 0
  %1660 = vmatprep.subr.bf16.mxu0 0
  %1661 = vmatpush1.bf16.msra.mxu0 0
  %1662 = vmatprep.subr.bf16.mxu0 0
  %1663 = vmatpush1.bf16.msra.mxu0 0
  %1664 = vmatprep.subr.bf16.mxu0 0
  %1665 = vmatpush1.bf16.msra.mxu0 0
  %1666 = vmatprep.subr.bf16.mxu0 0
  %1667 = vmatpush1.bf16.msra.mxu0 0
  %1668 = vmatprep.subr.bf16.mxu0 0
  %1669 = vmatpush1.bf16.msra.mxu0 0
  %1670 = vmatprep.subr.bf16.mxu0 0
  %1671 = vmatpush1.bf16.msra.mxu0 0
  %1672 = vmatprep.subr.bf16.mxu0 0
  %1673 = vmatpush1.bf16.msra.mxu0 0
  %1674 = vmatprep.subr.bf16.mxu0 0
  %1675 = vmatpush1.bf16.msra.mxu0 0
  %1676 = vmatprep.subr.bf16.mxu0 0
  %1677 = vmatpush1.bf16.msra.mxu0 0
  %1678 = vmatprep.mubr.bf16.mxu0 0
  %1679 = vmatmul.mubr.bf16.gmra.mrb[0].mxu0 %v1603
  %v1680 = vpop.f32.mrb[0].mxu0
  %v1681 = vadd.f32 0.0, %v1680
  %v1682 = vpop.f32.mrb[0].mxu0
  %v1683 = vpop.f32.mrb[0].mxu0
  %v1684 = vpop.f32.mrb[0].mxu0
  %1685 = vdwg.mxu0
  %v1687 = vrot.slane %v1640, 4
  %v1689 = vadd.f32 %v807, %v1687
  %v1690 = vxor.u32 %v1689, 2147483648
  %v1691 = vmul.f32 %v1690, 1.442695
  %v1692 = vpow.pop %v1691
  %v1693 = vadd.f32 %v1692, 1.0
  %v1694 = vrcp.pop %v1693
  %v1695 = vmul.f32 1.0, %v1694
  %v1697 = vrot.slane %v1642, 4
  %v1699 = vadd.f32 %v809, %v1697
  %v1700 = vxor.u32 %v1699, 2147483648
  %v1701 = vmul.f32 %v1700, 1.442695
  %v1702 = vpow.pop %v1701
  %v1703 = vadd.f32 %v1702, 1.0
  %v1704 = vrcp.pop %v1703
  %v1705 = vmul.f32 1.0, %v1704
  %v1706 = vadd.f32 %v1681, %v857
  %v1708 = vrot.slane %v1706, 4
  %v1710 = vmul.f32 %v1695, %v1708
  %v1711 = vadd.f32 %v849, %v1710
  %v1712 = vtanh.pop %v1711
  %v1714 = vrot.slane %v1712, 2
  %v1716 = vsub.f32 %v1598, %v1714
  %v1718 = vrot.slane %v1716, 6
  %v1720 = vmul.f32 %v1705, %v1718
  %v1721 = vadd.f32 %v1712, %v1720
  %v1722 = vpack.c.bf16 %v1721, %v1721
  %v1724 = vrot.slane %v1722, 2
  %v1726 = vsel %vm891, %v1724, 0
  %1728 = vmatprep.subr.bf16.mxu0 %v880
  %1729 = vmatpush1.bf16.msra.mxu0 %v879
  %1730 = vmatprep.subr.bf16.mxu0 %v883
  %1731 = vmatpush1.bf16.msra.mxu0 %v882
  %1732 = vmatprep.subr.bf16.mxu0 0
  %1733 = vmatpush1.bf16.msra.mxu0 0
  %1734 = vmatprep.subr.bf16.mxu0 0
  %1735 = vmatpush1.bf16.msra.mxu0 0
  %1736 = vmatprep.subr.bf16.mxu0 0
  %1737 = vmatpush1.bf16.msra.mxu0 0
  %1738 = vmatprep.subr.bf16.mxu0 0
  %1739 = vmatpush1.bf16.msra.mxu0 0
  %1740 = vmatprep.subr.bf16.mxu0 0
  %1741 = vmatpush1.bf16.msra.mxu0 0
  %1742 = vmatprep.subr.bf16.mxu0 0
  %1743 = vmatpush1.bf16.msra.mxu0 0
  %1744 = vmatprep.subr.bf16.mxu0 0
  %1745 = vmatpush1.bf16.msra.mxu0 0
  %1746 = vmatprep.subr.bf16.mxu0 0
  %1747 = vmatpush1.bf16.msra.mxu0 0
  %1748 = vmatprep.subr.bf16.mxu0 0
  %1749 = vmatpush1.bf16.msra.mxu0 0
  %1750 = vmatprep.subr.bf16.mxu0 0
  %1751 = vmatpush1.bf16.msra.mxu0 0
  %1752 = vmatprep.subr.bf16.mxu0 0
  %1753 = vmatpush1.bf16.msra.mxu0 0
  %1754 = vmatprep.subr.bf16.mxu0 0
  %1755 = vmatpush1.bf16.msra.mxu0 0
  %1756 = vmatprep.subr.bf16.mxu0 0
  %1757 = vmatpush1.bf16.msra.mxu0 0
  %1758 = vmatprep.subr.bf16.mxu0 0
  %1759 = vmatpush1.bf16.msra.mxu0 0
  %1760 = vmatprep.mubr.bf16.mxu0 0
  %1761 = vmatmul.mubr.bf16.gmra.mrb[0].mxu0 %v1726
  %v1762 = vpop.f32.mrb[0].mxu0
  %v1763 = vadd.f32 0.0, %v1762
  %v1764 = vpop.f32.mrb[0].mxu0
  %v1765 = vadd.f32 0.0, %v1764
  %v1766 = vpop.f32.mrb[0].mxu0
  %v1767 = vpop.f32.mrb[0].mxu0
  %1768 = vdwg.mxu0
  %1769 = vmatprep.subr.bf16.mxu0 0
  %1770 = vmatpush1.bf16.msra.mxu0 %v881
  %1771 = vmatprep.subr.bf16.mxu0 0
  %1772 = vmatpush1.bf16.msra.mxu0 %v884
  %1773 = vmatprep.subr.bf16.mxu0 0
  %1774 = vmatpush1.bf16.msra.mxu0 0
  %1775 = vmatprep.subr.bf16.mxu0 0
  %1776 = vmatpush1.bf16.msra.mxu0 0
  %1777 = vmatprep.subr.bf16.mxu0 0
  %1778 = vmatpush1.bf16.msra.mxu0 0
  %1779 = vmatprep.subr.bf16.mxu0 0
  %1780 = vmatpush1.bf16.msra.mxu0 0
  %1781 = vmatprep.subr.bf16.mxu0 0
  %1782 = vmatpush1.bf16.msra.mxu0 0
  %1783 = vmatprep.subr.bf16.mxu0 0
  %1784 = vmatpush1.bf16.msra.mxu0 0
  %1785 = vmatprep.subr.bf16.mxu0 0
  %1786 = vmatpush1.bf16.msra.mxu0 0
  %1787 = vmatprep.subr.bf16.mxu0 0
  %1788 = vmatpush1.bf16.msra.mxu0 0
  %1789 = vmatprep.subr.bf16.mxu0 0
  %1790 = vmatpush1.bf16.msra.mxu0 0
  %1791 = vmatprep.subr.bf16.mxu0 0
  %1792 = vmatpush1.bf16.msra.mxu0 0
  %1793 = vmatprep.subr.bf16.mxu0 0
  %1794 = vmatpush1.bf16.msra.mxu0 0
  %1795 = vmatprep.subr.bf16.mxu0 0
  %1796 = vmatpush1.bf16.msra.mxu0 0
  %1797 = vmatprep.subr.bf16.mxu0 0
  %1798 = vmatpush1.bf16.msra.mxu0 0
  %1799 = vmatprep.subr.bf16.mxu0 0
  %1800 = vmatpush1.bf16.msra.mxu0 0
  %1801 = vmatprep.mubr.bf16.mxu0 0
  %1802 = vmatmul.mubr.bf16.gmra.mrb[0].mxu0 %v1726
  %v1803 = vpop.f32.mrb[0].mxu0
  %v1804 = vadd.f32 0.0, %v1803
  %v1805 = vpop.f32.mrb[0].mxu0
  %v1806 = vpop.f32.mrb[0].mxu0
  %v1807 = vpop.f32.mrb[0].mxu0
  %1808 = vdwg.mxu0
  %v1810 = vrot.slane %v1763, 2
  %v1812 = vadd.f32 %v807, %v1810
  %v1813 = vxor.u32 %v1812, 2147483648
  %v1814 = vmul.f32 %v1813, 1.442695
  %v1815 = vpow.pop %v1814
  %v1816 = vadd.f32 %v1815, 1.0
  %v1817 = vrcp.pop %v1816
  %v1818 = vmul.f32 1.0, %v1817
  %v1820 = vrot.slane %v1765, 2
  %v1822 = vadd.f32 %v809, %v1820
  %v1823 = vxor.u32 %v1822, 2147483648
  %v1824 = vmul.f32 %v1823, 1.442695
  %v1825 = vpow.pop %v1824
  %v1826 = vadd.f32 %v1825, 1.0
  %v1827 = vrcp.pop %v1826
  %v1828 = vmul.f32 1.0, %v1827
  %v1829 = vadd.f32 %v1804, %v857
  %v1831 = vrot.slane %v1829, 2
  %v1833 = vmul.f32 %v1818, %v1831
  %v1834 = vadd.f32 %v849, %v1833
  %v1835 = vtanh.pop %v1834
  %v1837 = vrot.slane %v1835, 2
  %v1839 = vsub.f32 %v1721, %v1837
  %v1841 = vrot.slane %v1839, 6
  %v1843 = vmul.f32 %v1828, %v1841
  %v1844 = vadd.f32 %v1835, %v1843
  %vm1845 = vcmask 1041408
  %v1846 = vsel %vm1845, %v996, %v1117
  %vm1847 = vcmask 1043456
  %v1848 = vsel %vm1847, %v1846, %v1240
  %vm1849 = vcmask 1045504
  %v1850 = vsel %vm1849, %v1848, %v1363
  %v1851 = vsel %vm1845, %v1477, %v1598
  %v1852 = vsel %vm1847, %v1851, %v1721
  %v1853 = vsel %vm1849, %v1852, %v1844
  %1854 = vst [vmem:[%s13] sm:$0xff] %v1850
  %1855 = vst [vmem:[%s13 + $0x8] sm:$0xff] %v1853
  %v1856 = vpack.c.bf16 %v1853, %v1850
  %s1857 = smul.u32 4, 16
  %s1858 = smul.u32 %s1857, 3
  %s1859 = sshll.u32 %s1858, 4
  %1860 = dma.done [#allocation6], %s1859
  %s1861 = smul.u32 4, 4
  %s1862 = smul.u32 %s1861, 3
  %s1863 = sshll.u32 %s1862, 4
  %1864 = dma.done %s277, %s1863
  %v1865 = vld [vmem:[#allocation2] sm:$0xff]
  %v1866 = vld [vmem:[#allocation2 + $0x8] sm:$0xff]
  %v1867 = vld [vmem:[#allocation2 + $0x10] sm:$0xff]
  %v1868 = vld [vmem:[#allocation2 + $0x18] sm:$0xff]
  %v1869 = vld [vmem:[#allocation2 + $0x20] sm:$0xff]
  %v1870 = vld [vmem:[#allocation2 + $0x28] sm:$0xff]
  %v1871 = vld [vmem:[#allocation2 + $0x30] sm:$0xff]
  %v1872 = vld [vmem:[#allocation2 + $0x38] sm:$0xff]
  %v1873 = vld [vmem:[#allocation2 + $0x40] sm:$0xff]
  %v1874 = vld [vmem:[#allocation2 + $0x48] sm:$0xff]
  %v1875 = vld [vmem:[#allocation2 + $0x50] sm:$0xff]
  %v1876 = vld [vmem:[#allocation2 + $0x58] sm:$0xff]
  %v1877 = vld [vmem:[#allocation2 + $0x60] sm:$0xff]
  %v1878 = vld [vmem:[#allocation2 + $0x68] sm:$0xff]
  %v1879 = vld [vmem:[#allocation2 + $0x70] sm:$0xff]
  %v1880 = vld [vmem:[#allocation2 + $0x78] sm:$0xff]
  %v1881 = vld [vmem:[#allocation2 + $0x80] sm:$0xff]
  %v1882 = vld [vmem:[#allocation2 + $0x88] sm:$0xff]
  %v1883 = vld [vmem:[#allocation2 + $0x90] sm:$0xff]
  %v1884 = vld [vmem:[#allocation2 + $0x98] sm:$0xff]
  %v1885 = vld [vmem:[#allocation2 + $0xa0] sm:$0xff]
  %v1886 = vld [vmem:[#allocation2 + $0xa8] sm:$0xff]
  %v1887 = vld [vmem:[#allocation2 + $0xb0] sm:$0xff]
  %v1888 = vld [vmem:[#allocation2 + $0xb8] sm:$0xff]
  %v1889 = vld [vmem:[#allocation3] sm:$0xff]
  %v1890 = vld [vmem:[#allocation3 + $0x8] sm:$0xff]
  %v1891 = vld [vmem:[#allocation3 + $0x10] sm:$0xff]
  %v1892 = vld [vmem:[#allocation3 + $0x18] sm:$0xff]
  %v1893 = vld [vmem:[#allocation3 + $0x20] sm:$0xff]
  %v1894 = vld [vmem:[#allocation3 + $0x28] sm:$0xff]
  %v1895 = vld [vmem:[%s7] sm:$0x7]
  %v1897 = vlaneseq
  %v1898 = vshrl.u32 %v1897, 7
  %v1899 = vsub.s32 0, %v1898
  %v1900 = vrot.slane %v1895, %v1899
  %v1901 = vlaneseq
  %v1902 = vshrl.u32 %v1901, 7
  %v1903 = vsub.s32 1, %v1902
  %v1904 = vrot.slane %v1895, %v1903
  %v1905 = vlaneseq
  %v1906 = vshrl.u32 %v1905, 7
  %v1907 = vsub.s32 2, %v1906
  %v1908 = vrot.slane %v1895, %v1907
  %1912 = vmatprep.subr.bf16.mxu0 %v1866
  %1913 = vmatpush1.bf16.msra.mxu0 %v1865
  %1914 = vmatprep.subr.bf16.mxu0 %v1869
  %1915 = vmatpush1.bf16.msra.mxu0 %v1868
  %1916 = vmatprep.subr.bf16.mxu0 %v1872
  %1917 = vmatpush1.bf16.msra.mxu0 %v1871
  %1918 = vmatprep.subr.bf16.mxu0 %v1875
  %1919 = vmatpush1.bf16.msra.mxu0 %v1874
  %1920 = vmatprep.subr.bf16.mxu0 %v1878
  %1921 = vmatpush1.bf16.msra.mxu0 %v1877
  %1922 = vmatprep.subr.bf16.mxu0 %v1881
  %1923 = vmatpush1.bf16.msra.mxu0 %v1880
  %1924 = vmatprep.subr.bf16.mxu0 %v1884
  %1925 = vmatpush1.bf16.msra.mxu0 %v1883
  %1926 = vmatprep.subr.bf16.mxu0 %v1887
  %1927 = vmatpush1.bf16.msra.mxu0 %v1886
  %1928 = vmatprep.subr.bf16.mxu0 0
  %1929 = vmatpush1.bf16.msra.mxu0 0
  %1930 = vmatprep.subr.bf16.mxu0 0
  %1931 = vmatpush1.bf16.msra.mxu0 0
  %1932 = vmatprep.subr.bf16.mxu0 0
  %1933 = vmatpush1.bf16.msra.mxu0 0
  %1934 = vmatprep.subr.bf16.mxu0 0
  %1935 = vmatpush1.bf16.msra.mxu0 0
  %1936 = vmatprep.subr.bf16.mxu0 0
  %1937 = vmatpush1.bf16.msra.mxu0 0
  %1938 = vmatprep.subr.bf16.mxu0 0
  %1939 = vmatpush1.bf16.msra.mxu0 0
  %1940 = vmatprep.subr.bf16.mxu0 0
  %1941 = vmatpush1.bf16.msra.mxu0 0
  %1942 = vmatprep.subr.bf16.mxu0 0
  %1943 = vmatpush1.bf16.msra.mxu0 0
  %1944 = vmatprep.mubr.bf16.mxu0 0
  %1945 = vmatmul.mubr.bf16.gmra.mrb[0].mxu0 %v1856
  %v1946 = vpop.f32.mrb[0].mxu0
  %v1947 = vadd.f32 %v1900, %v1946
  %v1948 = vpop.f32.mrb[0].mxu0
  %v1949 = vadd.f32 %v1904, %v1948
  %v1950 = vpop.f32.mrb[0].mxu0
  %v1951 = vadd.f32 %v1900, %v1950
  %v1952 = vpop.f32.mrb[0].mxu0
  %v1953 = vadd.f32 %v1904, %v1952
  %1954 = vdwg.mxu0
  %1955 = vmatprep.subr.bf16.mxu0 0
  %1956 = vmatpush1.bf16.msra.mxu0 %v1867
  %1957 = vmatprep.subr.bf16.mxu0 0
  %1958 = vmatpush1.bf16.msra.mxu0 %v1870
  %1959 = vmatprep.subr.bf16.mxu0 0
  %1960 = vmatpush1.bf16.msra.mxu0 %v1873
  %1961 = vmatprep.subr.bf16.mxu0 0
  %1962 = vmatpush1.bf16.msra.mxu0 %v1876
  %1963 = vmatprep.subr.bf16.mxu0 0
  %1964 = vmatpush1.bf16.msra.mxu0 %v1879
  %1965 = vmatprep.subr.bf16.mxu0 0
  %1966 = vmatpush1.bf16.msra.mxu0 %v1882
  %1967 = vmatprep.subr.bf16.mxu0 0
  %1968 = vmatpush1.bf16.msra.mxu0 %v1885
  %1969 = vmatprep.subr.bf16.mxu0 0
  %1970 = vmatpush1.bf16.msra.mxu0 %v1888
  %1971 = vmatprep.subr.bf16.mxu0 0
  %1972 = vmatpush1.bf16.msra.mxu0 0
  %1973 = vmatprep.subr.bf16.mxu0 0
  %1974 = vmatpush1.bf16.msra.mxu0 0
  %1975 = vmatprep.subr.bf16.mxu0 0
  %1976 = vmatpush1.bf16.msra.mxu0 0
  %1977 = vmatprep.subr.bf16.mxu0 0
  %1978 = vmatpush1.bf16.msra.mxu0 0
  %1979 = vmatprep.subr.bf16.mxu0 0
  %1980 = vmatpush1.bf16.msra.mxu0 0
  %1981 = vmatprep.subr.bf16.mxu0 0
  %1982 = vmatpush1.bf16.msra.mxu0 0
  %1983 = vmatprep.subr.bf16.mxu0 0
  %1984 = vmatpush1.bf16.msra.mxu0 0
  %1985 = vmatprep.subr.bf16.mxu0 0
  %1986 = vmatpush1.bf16.msra.mxu0 0
  %1987 = vmatprep.mubr.bf16.mxu0 0
  %1988 = vmatmul.mubr.bf16.gmra.mrb[0].mxu0 %v1856
  %v1989 = vpop.f32.mrb[0].mxu0
  %v1990 = vadd.f32 %v1908, %v1989
  %v1991 = vpop.f32.mrb[0].mxu0
  %v1992 = vpop.f32.mrb[0].mxu0
  %v1993 = vadd.f32 %v1908, %v1992
  %v1994 = vpop.f32.mrb[0].mxu0
  %1995 = vdwg.mxu0
  %v1996 = vld [vmem:[%s8] sm:$0x1]
  %v1998 = vlaneseq
  %v1999 = vshrl.u32 %v1998, 7
  %v2000 = vsub.s32 0, %v1999
  %v2001 = vrot.slane %v1996, %v2000
  %2003 = vmatprep.subr.bf16.mxu0 %v1890
  %2004 = vmatpush1.bf16.msra.mxu0 %v1889
  %2005 = vmatprep.subr.bf16.mxu0 %v1893
  %2006 = vmatpush1.bf16.msra.mxu0 %v1892
  %2007 = vmatprep.subr.bf16.mxu0 0
  %2008 = vmatpush1.bf16.msra.mxu0 0
  %2009 = vmatprep.subr.bf16.mxu0 0
  %2010 = vmatpush1.bf16.msra.mxu0 0
  %2011 = vmatprep.subr.bf16.mxu0 0
  %2012 = vmatpush1.bf16.msra.mxu0 0
  %2013 = vmatprep.subr.bf16.mxu0 0
  %2014 = vmatpush1.bf16.msra.mxu0 0
  %2015 = vmatprep.subr.bf16.mxu0 0
  %2016 = vmatpush1.bf16.msra.mxu0 0
  %2017 = vmatprep.subr.bf16.mxu0 0
  %2018 = vmatpush1.bf16.msra.mxu0 0
  %2019 = vmatprep.subr.bf16.mxu0 0
  %2020 = vmatpush1.bf16.msra.mxu0 0
  %2021 = vmatprep.subr.bf16.mxu0 0
  %2022 = vmatpush1.bf16.msra.mxu0 0
  %2023 = vmatprep.subr.bf16.mxu0 0
  %2024 = vmatpush1.bf16.msra.mxu0 0
  %2025 = vmatprep.subr.bf16.mxu0 0
  %2026 = vmatpush1.bf16.msra.mxu0 0
  %2027 = vmatprep.subr.bf16.mxu0 0
  %2028 = vmatpush1.bf16.msra.mxu0 0
  %2029 = vmatprep.subr.bf16.mxu0 0
  %2030 = vmatpush1.bf16.msra.mxu0 0
  %2031 = vmatprep.subr.bf16.mxu0 0
  %2032 = vmatpush1.bf16.msra.mxu0 0
  %2033 = vmatprep.subr.bf16.mxu0 0
  %2034 = vmatpush1.bf16.msra.mxu0 0
  %2035 = vmatprep.mubr.bf16.mxu0 0
  %2036 = vmatmul.mubr.bf16.gmra.mrb[0].mxu0 %v893
  %v2037 = vpop.f32.mrb[0].mxu0
  %v2038 = vadd.f32 0.0, %v2037
  %v2039 = vpop.f32.mrb[0].mxu0
  %v2040 = vadd.f32 0.0, %v2039
  %v2041 = vpop.f32.mrb[0].mxu0
  %v2042 = vpop.f32.mrb[0].mxu0
  %2043 = vdwg.mxu0
  %2044 = vmatprep.subr.bf16.mxu0 0
  %2045 = vmatpush1.bf16.msra.mxu0 %v1891
  %2046 = vmatprep.subr.bf16.mxu0 0
  %2047 = vmatpush1.bf16.msra.mxu0 %v1894
  %2048 = vmatprep.subr.bf16.mxu0 0
  %2049 = vmatpush1.bf16.msra.mxu0 0
  %2050 = vmatprep.subr.bf16.mxu0 0
  %2051 = vmatpush1.bf16.msra.mxu0 0
  %2052 = vmatprep.subr.bf16.mxu0 0
  %2053 = vmatpush1.bf16.msra.mxu0 0
  %2054 = vmatprep.subr.bf16.mxu0 0
  %2055 = vmatpush1.bf16.msra.mxu0 0
  %2056 = vmatprep.subr.bf16.mxu0 0
  %2057 = vmatpush1.bf16.msra.mxu0 0
  %2058 = vmatprep.subr.bf16.mxu0 0
  %2059 = vmatpush1.bf16.msra.mxu0 0
  %2060 = vmatprep.subr.bf16.mxu0 0
  %2061 = vmatpush1.bf16.msra.mxu0 0
  %2062 = vmatprep.subr.bf16.mxu0 0
  %2063 = vmatpush1.bf16.msra.mxu0 0
  %2064 = vmatprep.subr.bf16.mxu0 0
  %2065 = vmatpush1.bf16.msra.mxu0 0
  %2066 = vmatprep.subr.bf16.mxu0 0
  %2067 = vmatpush1.bf16.msra.mxu0 0
  %2068 = vmatprep.subr.bf16.mxu0 0
  %2069 = vmatpush1.bf16.msra.mxu0 0
  %2070 = vmatprep.subr.bf16.mxu0 0
  %2071 = vmatpush1.bf16.msra.mxu0 0
  %2072 = vmatprep.subr.bf16.mxu0 0
  %2073 = vmatpush1.bf16.msra.mxu0 0
  %2074 = vmatprep.subr.bf16.mxu0 0
  %2075 = vmatpush1.bf16.msra.mxu0 0
  %2076 = vmatprep.mubr.bf16.mxu0 0
  %2077 = vmatmul.mubr.bf16.gmra.mrb[0].mxu0 %v893
  %v2078 = vpop.f32.mrb[0].mxu0
  %v2079 = vadd.f32 0.0, %v2078
  %v2080 = vpop.f32.mrb[0].mxu0
  %v2081 = vpop.f32.mrb[0].mxu0
  %v2082 = vpop.f32.mrb[0].mxu0
  %2083 = vdwg.mxu0
  %v2084 = vadd.f32 %v1947, %v2038
  %v2085 = vxor.u32 %v2084, 2147483648
  %v2086 = vmul.f32 %v2085, 1.442695
  %v2087 = vpow.pop %v2086
  %v2088 = vadd.f32 %v2087, 1.0
  %v2089 = vrcp.pop %v2088
  %v2090 = vmul.f32 1.0, %v2089
  %v2091 = vadd.f32 %v1949, %v2040
  %v2092 = vxor.u32 %v2091, 2147483648
  %v2093 = vmul.f32 %v2092, 1.442695
  %v2094 = vpow.pop %v2093
  %v2095 = vadd.f32 %v2094, 1.0
  %v2096 = vrcp.pop %v2095
  %v2097 = vmul.f32 1.0, %v2096
  %v2098 = vadd.f32 %v2079, %v2001
  %v2099 = vmul.f32 %v2090, %v2098
  %v2100 = vadd.f32 %v1990, %v2099
  %v2101 = vtanh.pop %v2100
  %v2102 = vsub.f32 0.0, %v2101
  %v2103 = vmul.f32 %v2097, %v2102
  %v2104 = vadd.f32 %v2101, %v2103
  %v2105 = vpack.c.bf16 %v2104, %v2104
  %v2107 = vsel %vm891, %v2105, 0
  %2109 = vmatprep.subr.bf16.mxu0 %v1890
  %2110 = vmatpush1.bf16.msra.mxu0 %v1889
  %2111 = vmatprep.subr.bf16.mxu0 %v1893
  %2112 = vmatpush1.bf16.msra.mxu0 %v1892
  %2113 = vmatprep.subr.bf16.mxu0 0
  %2114 = vmatpush1.bf16.msra.mxu0 0
  %2115 = vmatprep.subr.bf16.mxu0 0
  %2116 = vmatpush1.bf16.msra.mxu0 0
  %2117 = vmatprep.subr.bf16.mxu0 0
  %2118 = vmatpush1.bf16.msra.mxu0 0
  %2119 = vmatprep.subr.bf16.mxu0 0
  %2120 = vmatpush1.bf16.msra.mxu0 0
  %2121 = vmatprep.subr.bf16.mxu0 0
  %2122 = vmatpush1.bf16.msra.mxu0 0
  %2123 = vmatprep.subr.bf16.mxu0 0
  %2124 = vmatpush1.bf16.msra.mxu0 0
  %2125 = vmatprep.subr.bf16.mxu0 0
  %2126 = vmatpush1.bf16.msra.mxu0 0
  %2127 = vmatprep.subr.bf16.mxu0 0
  %2128 = vmatpush1.bf16.msra.mxu0 0
  %2129 = vmatprep.subr.bf16.mxu0 0
  %2130 = vmatpush1.bf16.msra.mxu0 0
  %2131 = vmatprep.subr.bf16.mxu0 0
  %2132 = vmatpush1.bf16.msra.mxu0 0
  %2133 = vmatprep.subr.bf16.mxu0 0
  %2134 = vmatpush1.bf16.msra.mxu0 0
  %2135 = vmatprep.subr.bf16.mxu0 0
  %2136 = vmatpush1.bf16.msra.mxu0 0
  %2137 = vmatprep.subr.bf16.mxu0 0
  %2138 = vmatpush1.bf16.msra.mxu0 0
  %2139 = vmatprep.subr.bf16.mxu0 0
  %2140 = vmatpush1.bf16.msra.mxu0 0
  %2141 = vmatprep.mubr.bf16.mxu0 0
  %2142 = vmatmul.mubr.bf16.gmra.mrb[0].mxu0 %v2107
  %v2143 = vpop.f32.mrb[0].mxu0
  %v2144 = vadd.f32 0.0, %v2143
  %v2145 = vpop.f32.mrb[0].mxu0
  %v2146 = vadd.f32 0.0, %v2145
  %v2147 = vpop.f32.mrb[0].mxu0
  %v2148 = vpop.f32.mrb[0].mxu0
  %2149 = vdwg.mxu0
  %2150 = vmatprep.subr.bf16.mxu0 0
  %2151 = vmatpush1.bf16.msra.mxu0 %v1891
  %2152 = vmatprep.subr.bf16.mxu0 0
  %2153 = vmatpush1.bf16.msra.mxu0 %v1894
  %2154 = vmatprep.subr.bf16.mxu0 0
  %2155 = vmatpush1.bf16.msra.mxu0 0
  %2156 = vmatprep.subr.bf16.mxu0 0
  %2157 = vmatpush1.bf16.msra.mxu0 0
  %2158 = vmatprep.subr.bf16.mxu0 0
  %2159 = vmatpush1.bf16.msra.mxu0 0
  %2160 = vmatprep.subr.bf16.mxu0 0
  %2161 = vmatpush1.bf16.msra.mxu0 0
  %2162 = vmatprep.subr.bf16.mxu0 0
  %2163 = vmatpush1.bf16.msra.mxu0 0
  %2164 = vmatprep.subr.bf16.mxu0 0
  %2165 = vmatpush1.bf16.msra.mxu0 0
  %2166 = vmatprep.subr.bf16.mxu0 0
  %2167 = vmatpush1.bf16.msra.mxu0 0
  %2168 = vmatprep.subr.bf16.mxu0 0
  %2169 = vmatpush1.bf16.msra.mxu0 0
  %2170 = vmatprep.subr.bf16.mxu0 0
  %2171 = vmatpush1.bf16.msra.mxu0 0
  %2172 = vmatprep.subr.bf16.mxu0 0
  %2173 = vmatpush1.bf16.msra.mxu0 0
  %2174 = vmatprep.subr.bf16.mxu0 0
  %2175 = vmatpush1.bf16.msra.mxu0 0
  %2176 = vmatprep.subr.bf16.mxu0 0
  %2177 = vmatpush1.bf16.msra.mxu0 0
  %2178 = vmatprep.subr.bf16.mxu0 0
  %2179 = vmatpush1.bf16.msra.mxu0 0
  %2180 = vmatprep.subr.bf16.mxu0 0
  %2181 = vmatpush1.bf16.msra.mxu0 0
  %2182 = vmatprep.mubr.bf16.mxu0 0
  %2183 = vmatmul.mubr.bf16.gmra.mrb[0].mxu0 %v2107
  %v2184 = vpop.f32.mrb[0].mxu0
  %v2185 = vadd.f32 0.0, %v2184
  %v2186 = vpop.f32.mrb[0].mxu0
  %v2187 = vpop.f32.mrb[0].mxu0
  %v2188 = vpop.f32.mrb[0].mxu0
  %2189 = vdwg.mxu0
  %v2191 = vrot.slane %v2144, 6
  %v2193 = vadd.f32 %v1947, %v2191
  %v2194 = vxor.u32 %v2193, 2147483648
  %v2195 = vmul.f32 %v2194, 1.442695
  %v2196 = vpow.pop %v2195
  %v2197 = vadd.f32 %v2196, 1.0
  %v2198 = vrcp.pop %v2197
  %v2199 = vmul.f32 1.0, %v2198
  %v2201 = vrot.slane %v2146, 6
  %v2203 = vadd.f32 %v1949, %v2201
  %v2204 = vxor.u32 %v2203, 2147483648
  %v2205 = vmul.f32 %v2204, 1.442695
  %v2206 = vpow.pop %v2205
  %v2207 = vadd.f32 %v2206, 1.0
  %v2208 = vrcp.pop %v2207
  %v2209 = vmul.f32 1.0, %v2208
  %v2210 = vadd.f32 %v2185, %v2001
  %v2212 = vrot.slane %v2210, 6
  %v2214 = vmul.f32 %v2199, %v2212
  %v2215 = vadd.f32 %v1990, %v2214
  %v2216 = vtanh.pop %v2215
  %v2218 = vrot.slane %v2216, 2
  %v2220 = vsub.f32 %v2104, %v2218
  %v2222 = vrot.slane %v2220, 6
  %v2224 = vmul.f32 %v2209, %v2222
  %v2225 = vadd.f32 %v2216, %v2224
  %v2226 = vpack.c.bf16 %v2225, %v2225
  %v2228 = vrot.slane %v2226, 1
  %v2230 = vsel %vm891, %v2228, 0
  %2232 = vmatprep.subr.bf16.mxu0 %v1890
  %2233 = vmatpush1.bf16.msra.mxu0 %v1889
  %2234 = vmatprep.subr.bf16.mxu0 %v1893
  %2235 = vmatpush1.bf16.msra.mxu0 %v1892
  %2236 = vmatprep.subr.bf16.mxu0 0
  %2237 = vmatpush1.bf16.msra.mxu0 0
  %2238 = vmatprep.subr.bf16.mxu0 0
  %2239 = vmatpush1.bf16.msra.mxu0 0
  %2240 = vmatprep.subr.bf16.mxu0 0
  %2241 = vmatpush1.bf16.msra.mxu0 0
  %2242 = vmatprep.subr.bf16.mxu0 0
  %2243 = vmatpush1.bf16.msra.mxu0 0
  %2244 = vmatprep.subr.bf16.mxu0 0
  %2245 = vmatpush1.bf16.msra.mxu0 0
  %2246 = vmatprep.subr.bf16.mxu0 0
  %2247 = vmatpush1.bf16.msra.mxu0 0
  %2248 = vmatprep.subr.bf16.mxu0 0
  %2249 = vmatpush1.bf16.msra.mxu0 0
  %2250 = vmatprep.subr.bf16.mxu0 0
  %2251 = vmatpush1.bf16.msra.mxu0 0
  %2252 = vmatprep.subr.bf16.mxu0 0
  %2253 = vmatpush1.bf16.msra.mxu0 0
  %2254 = vmatprep.subr.bf16.mxu0 0
  %2255 = vmatpush1.bf16.msra.mxu0 0
  %2256 = vmatprep.subr.bf16.mxu0 0
  %2257 = vmatpush1.bf16.msra.mxu0 0
  %2258 = vmatprep.subr.bf16.mxu0 0
  %2259 = vmatpush1.bf16.msra.mxu0 0
  %2260 = vmatprep.subr.bf16.mxu0 0
  %2261 = vmatpush1.bf16.msra.mxu0 0
  %2262 = vmatprep.subr.bf16.mxu0 0
  %2263 = vmatpush1.bf16.msra.mxu0 0
  %2264 = vmatprep.mubr.bf16.mxu0 0
  %2265 = vmatmul.mubr.bf16.gmra.mrb[0].mxu0 %v2230
  %v2266 = vpop.f32.mrb[0].mxu0
  %v2267 = vadd.f32 0.0, %v2266
  %v2268 = vpop.f32.mrb[0].mxu0
  %v2269 = vadd.f32 0.0, %v2268
  %v2270 = vpop.f32.mrb[0].mxu0
  %v2271 = vpop.f32.mrb[0].mxu0
  %2272 = vdwg.mxu0
  %2273 = vmatprep.subr.bf16.mxu0 0
  %2274 = vmatpush1.bf16.msra.mxu0 %v1891
  %2275 = vmatprep.subr.bf16.mxu0 0
  %2276 = vmatpush1.bf16.msra.mxu0 %v1894
  %2277 = vmatprep.subr.bf16.mxu0 0
  %2278 = vmatpush1.bf16.msra.mxu0 0
  %2279 = vmatprep.subr.bf16.mxu0 0
  %2280 = vmatpush1.bf16.msra.mxu0 0
  %2281 = vmatprep.subr.bf16.mxu0 0
  %2282 = vmatpush1.bf16.msra.mxu0 0
  %2283 = vmatprep.subr.bf16.mxu0 0
  %2284 = vmatpush1.bf16.msra.mxu0 0
  %2285 = vmatprep.subr.bf16.mxu0 0
  %2286 = vmatpush1.bf16.msra.mxu0 0
  %2287 = vmatprep.subr.bf16.mxu0 0
  %2288 = vmatpush1.bf16.msra.mxu0 0
  %2289 = vmatprep.subr.bf16.mxu0 0
  %2290 = vmatpush1.bf16.msra.mxu0 0
  %2291 = vmatprep.subr.bf16.mxu0 0
  %2292 = vmatpush1.bf16.msra.mxu0 0
  %2293 = vmatprep.subr.bf16.mxu0 0
  %2294 = vmatpush1.bf16.msra.mxu0 0
  %2295 = vmatprep.subr.bf16.mxu0 0
  %2296 = vmatpush1.bf16.msra.mxu0 0
  %2297 = vmatprep.subr.bf16.mxu0 0
  %2298 = vmatpush1.bf16.msra.mxu0 0
  %2299 = vmatprep.subr.bf16.mxu0 0
  %2300 = vmatpush1.bf16.msra.mxu0 0
  %2301 = vmatprep.subr.bf16.mxu0 0
  %2302 = vmatpush1.bf16.msra.mxu0 0
  %2303 = vmatprep.subr.bf16.mxu0 0
  %2304 = vmatpush1.bf16.msra.mxu0 0
  %2305 = vmatprep.mubr.bf16.mxu0 0
  %2306 = vmatmul.mubr.bf16.gmra.mrb[0].mxu0 %v2230
  %v2307 = vpop.f32.mrb[0].mxu0
  %v2308 = vadd.f32 0.0, %v2307
  %v2309 = vpop.f32.mrb[0].mxu0
  %v2310 = vpop.f32.mrb[0].mxu0
  %v2311 = vpop.f32.mrb[0].mxu0
  %2312 = vdwg.mxu0
  %v2314 = vrot.slane %v2267, 4
  %v2316 = vadd.f32 %v1947, %v2314
  %v2317 = vxor.u32 %v2316, 2147483648
  %v2318 = vmul.f32 %v2317, 1.442695
  %v2319 = vpow.pop %v2318
  %v2320 = vadd.f32 %v2319, 1.0
  %v2321 = vrcp.pop %v2320
  %v2322 = vmul.f32 1.0, %v2321
  %v2324 = vrot.slane %v2269, 4
  %v2326 = vadd.f32 %v1949, %v2324
  %v2327 = vxor.u32 %v2326, 2147483648
  %v2328 = vmul.f32 %v2327, 1.442695
  %v2329 = vpow.pop %v2328
  %v2330 = vadd.f32 %v2329, 1.0
  %v2331 = vrcp.pop %v2330
  %v2332 = vmul.f32 1.0, %v2331
  %v2333 = vadd.f32 %v2308, %v2001
  %v2335 = vrot.slane %v2333, 4
  %v2337 = vmul.f32 %v2322, %v2335
  %v2338 = vadd.f32 %v1990, %v2337
  %v2339 = vtanh.pop %v2338
  %v2341 = vrot.slane %v2339, 2
  %v2343 = vsub.f32 %v2225, %v2341
  %v2345 = vrot.slane %v2343, 6
  %v2347 = vmul.f32 %v2332, %v2345
  %v2348 = vadd.f32 %v2339, %v2347
  %v2349 = vpack.c.bf16 %v2348, %v2348
  %v2351 = vrot.slane %v2349, 2
  %v2353 = vsel %vm891, %v2351, 0
  %2355 = vmatprep.subr.bf16.mxu0 %v1890
  %2356 = vmatpush1.bf16.msra.mxu0 %v1889
  %2357 = vmatprep.subr.bf16.mxu0 %v1893
  %2358 = vmatpush1.bf16.msra.mxu0 %v1892
  %2359 = vmatprep.subr.bf16.mxu0 0
  %2360 = vmatpush1.bf16.msra.mxu0 0
  %2361 = vmatprep.subr.bf16.mxu0 0
  %2362 = vmatpush1.bf16.msra.mxu0 0
  %2363 = vmatprep.subr.bf16.mxu0 0
  %2364 = vmatpush1.bf16.msra.mxu0 0
  %2365 = vmatprep.subr.bf16.mxu0 0
  %2366 = vmatpush1.bf16.msra.mxu0 0
  %2367 = vmatprep.subr.bf16.mxu0 0
  %2368 = vmatpush1.bf16.msra.mxu0 0
  %2369 = vmatprep.subr.bf16.mxu0 0
  %2370 = vmatpush1.bf16.msra.mxu0 0
  %2371 = vmatprep.subr.bf16.mxu0 0
  %2372 = vmatpush1.bf16.msra.mxu0 0
  %2373 = vmatprep.subr.bf16.mxu0 0
  %2374 = vmatpush1.bf16.msra.mxu0 0
  %2375 = vmatprep.subr.bf16.mxu0 0
  %2376 = vmatpush1.bf16.msra.mxu0 0
  %2377 = vmatprep.subr.bf16.mxu0 0
  %2378 = vmatpush1.bf16.msra.mxu0 0
  %2379 = vmatprep.subr.bf16.mxu0 0
  %2380 = vmatpush1.bf16.msra.mxu0 0
  %2381 = vmatprep.subr.bf16.mxu0 0
  %2382 = vmatpush1.bf16.msra.mxu0 0
  %2383 = vmatprep.subr.bf16.mxu0 0
  %2384 = vmatpush1.bf16.msra.mxu0 0
  %2385 = vmatprep.subr.bf16.mxu0 0
  %2386 = vmatpush1.bf16.msra.mxu0 0
  %2387 = vmatprep.mubr.bf16.mxu0 0
  %2388 = vmatmul.mubr.bf16.gmra.mrb[0].mxu0 %v2353
  %v2389 = vpop.f32.mrb[0].mxu0
  %v2390 = vadd.f32 0.0, %v2389
  %v2391 = vpop.f32.mrb[0].mxu0
  %v2392 = vadd.f32 0.0, %v2391
  %v2393 = vpop.f32.mrb[0].mxu0
  %v2394 = vpop.f32.mrb[0].mxu0
  %2395 = vdwg.mxu0
  %2396 = vmatprep.subr.bf16.mxu0 0
  %2397 = vmatpush1.bf16.msra.mxu0 %v1891
  %2398 = vmatprep.subr.bf16.mxu0 0
  %2399 = vmatpush1.bf16.msra.mxu0 %v1894
  %2400 = vmatprep.subr.bf16.mxu0 0
  %2401 = vmatpush1.bf16.msra.mxu0 0
  %2402 = vmatprep.subr.bf16.mxu0 0
  %2403 = vmatpush1.bf16.msra.mxu0 0
  %2404 = vmatprep.subr.bf16.mxu0 0
  %2405 = vmatpush1.bf16.msra.mxu0 0
  %2406 = vmatprep.subr.bf16.mxu0 0
  %2407 = vmatpush1.bf16.msra.mxu0 0
  %2408 = vmatprep.subr.bf16.mxu0 0
  %2409 = vmatpush1.bf16.msra.mxu0 0
  %2410 = vmatprep.subr.bf16.mxu0 0
  %2411 = vmatpush1.bf16.msra.mxu0 0
  %2412 = vmatprep.subr.bf16.mxu0 0
  %2413 = vmatpush1.bf16.msra.mxu0 0
  %2414 = vmatprep.subr.bf16.mxu0 0
  %2415 = vmatpush1.bf16.msra.mxu0 0
  %2416 = vmatprep.subr.bf16.mxu0 0
  %2417 = vmatpush1.bf16.msra.mxu0 0
  %2418 = vmatprep.subr.bf16.mxu0 0
  %2419 = vmatpush1.bf16.msra.mxu0 0
  %2420 = vmatprep.subr.bf16.mxu0 0
  %2421 = vmatpush1.bf16.msra.mxu0 0
  %2422 = vmatprep.subr.bf16.mxu0 0
  %2423 = vmatpush1.bf16.msra.mxu0 0
  %2424 = vmatprep.subr.bf16.mxu0 0
  %2425 = vmatpush1.bf16.msra.mxu0 0
  %2426 = vmatprep.subr.bf16.mxu0 0
  %2427 = vmatpush1.bf16.msra.mxu0 0
  %2428 = vmatprep.mubr.bf16.mxu0 0
  %2429 = vmatmul.mubr.bf16.gmra.mrb[0].mxu0 %v2353
  %v2430 = vpop.f32.mrb[0].mxu0
  %v2431 = vadd.f32 0.0, %v2430
  %v2432 = vpop.f32.mrb[0].mxu0
  %v2433 = vpop.f32.mrb[0].mxu0
  %v2434 = vpop.f32.mrb[0].mxu0
  %2435 = vdwg.mxu0
  %v2437 = vrot.slane %v2390, 2
  %v2439 = vadd.f32 %v1947, %v2437
  %v2440 = vxor.u32 %v2439, 2147483648
  %v2441 = vmul.f32 %v2440, 1.442695
  %v2442 = vpow.pop %v2441
  %v2443 = vadd.f32 %v2442, 1.0
  %v2444 = vrcp.pop %v2443
  %v2445 = vmul.f32 1.0, %v2444
  %v2447 = vrot.slane %v2392, 2
  %v2449 = vadd.f32 %v1949, %v2447
  %v2450 = vxor.u32 %v2449, 2147483648
  %v2451 = vmul.f32 %v2450, 1.442695
  %v2452 = vpow.pop %v2451
  %v2453 = vadd.f32 %v2452, 1.0
  %v2454 = vrcp.pop %v2453
  %v2455 = vmul.f32 1.0, %v2454
  %v2456 = vadd.f32 %v2431, %v2001
  %v2458 = vrot.slane %v2456, 2
  %v2460 = vmul.f32 %v2445, %v2458
  %v2461 = vadd.f32 %v1990, %v2460
  %v2462 = vtanh.pop %v2461
  %v2464 = vrot.slane %v2462, 2
  %v2466 = vsub.f32 %v2348, %v2464
  %v2468 = vrot.slane %v2466, 6
  %v2470 = vmul.f32 %v2455, %v2468
  %v2471 = vadd.f32 %v2462, %v2470
  %v2472 = vpack.c.bf16 %v2471, %v2471
  %v2474 = vrot.slane %v2472, 3
  %v2476 = vsel %vm891, %v2474, 0
  %2478 = vmatprep.subr.bf16.mxu0 %v1890
  %2479 = vmatpush1.bf16.msra.mxu0 %v1889
  %2480 = vmatprep.subr.bf16.mxu0 %v1893
  %2481 = vmatpush1.bf16.msra.mxu0 %v1892
  %2482 = vmatprep.subr.bf16.mxu0 0
  %2483 = vmatpush1.bf16.msra.mxu0 0
  %2484 = vmatprep.subr.bf16.mxu0 0
  %2485 = vmatpush1.bf16.msra.mxu0 0
  %2486 = vmatprep.subr.bf16.mxu0 0
  %2487 = vmatpush1.bf16.msra.mxu0 0
  %2488 = vmatprep.subr.bf16.mxu0 0
  %2489 = vmatpush1.bf16.msra.mxu0 0
  %2490 = vmatprep.subr.bf16.mxu0 0
  %2491 = vmatpush1.bf16.msra.mxu0 0
  %2492 = vmatprep.subr.bf16.mxu0 0
  %2493 = vmatpush1.bf16.msra.mxu0 0
  %2494 = vmatprep.subr.bf16.mxu0 0
  %2495 = vmatpush1.bf16.msra.mxu0 0
  %2496 = vmatprep.subr.bf16.mxu0 0
  %2497 = vmatpush1.bf16.msra.mxu0 0
  %2498 = vmatprep.subr.bf16.mxu0 0
  %2499 = vmatpush1.bf16.msra.mxu0 0
  %2500 = vmatprep.subr.bf16.mxu0 0
  %2501 = vmatpush1.bf16.msra.mxu0 0
  %2502 = vmatprep.subr.bf16.mxu0 0
  %2503 = vmatpush1.bf16.msra.mxu0 0
  %2504 = vmatprep.subr.bf16.mxu0 0
  %2505 = vmatpush1.bf16.msra.mxu0 0
  %2506 = vmatprep.subr.bf16.mxu0 0
  %2507 = vmatpush1.bf16.msra.mxu0 0
  %2508 = vmatprep.subr.bf16.mxu0 0
  %2509 = vmatpush1.bf16.msra.mxu0 0
  %2510 = vmatprep.mubr.bf16.mxu0 0
  %2511 = vmatmul.mubr.bf16.gmra.mrb[0].mxu0 %v2476
  %v2512 = vpop.f32.mrb[0].mxu0
  %v2513 = vadd.f32 0.0, %v2512
  %v2514 = vpop.f32.mrb[0].mxu0
  %v2515 = vadd.f32 0.0, %v2514
  %v2516 = vpop.f32.mrb[0].mxu0
  %v2517 = vpop.f32.mrb[0].mxu0
  %2518 = vdwg.mxu0
  %2519 = vmatprep.subr.bf16.mxu0 0
  %2520 = vmatpush1.bf16.msra.mxu0 %v1891
  %2521 = vmatprep.subr.bf16.mxu0 0
  %2522 = vmatpush1.bf16.msra.mxu0 %v1894
  %2523 = vmatprep.subr.bf16.mxu0 0
  %2524 = vmatpush1.bf16.msra.mxu0 0
  %2525 = vmatprep.subr.bf16.mxu0 0
  %2526 = vmatpush1.bf16.msra.mxu0 0
  %2527 = vmatprep.subr.bf16.mxu0 0
  %2528 = vmatpush1.bf16.msra.mxu0 0
  %2529 = vmatprep.subr.bf16.mxu0 0
  %2530 = vmatpush1.bf16.msra.mxu0 0
  %2531 = vmatprep.subr.bf16.mxu0 0
  %2532 = vmatpush1.bf16.msra.mxu0 0
  %2533 = vmatprep.subr.bf16.mxu0 0
  %2534 = vmatpush1.bf16.msra.mxu0 0
  %2535 = vmatprep.subr.bf16.mxu0 0
  %2536 = vmatpush1.bf16.msra.mxu0 0
  %2537 = vmatprep.subr.bf16.mxu0 0
  %2538 = vmatpush1.bf16.msra.mxu0 0
  %2539 = vmatprep.subr.bf16.mxu0 0
  %2540 = vmatpush1.bf16.msra.mxu0 0
  %2541 = vmatprep.subr.bf16.mxu0 0
  %2542 = vmatpush1.bf16.msra.mxu0 0
  %2543 = vmatprep.subr.bf16.mxu0 0
  %2544 = vmatpush1.bf16.msra.mxu0 0
  %2545 = vmatprep.subr.bf16.mxu0 0
  %2546 = vmatpush1.bf16.msra.mxu0 0
  %2547 = vmatprep.subr.bf16.mxu0 0
  %2548 = vmatpush1.bf16.msra.mxu0 0
  %2549 = vmatprep.subr.bf16.mxu0 0
  %2550 = vmatpush1.bf16.msra.mxu0 0
  %2551 = vmatprep.mubr.bf16.mxu0 0
  %2552 = vmatmul.mubr.bf16.gmra.mrb[0].mxu0 %v2476
  %v2553 = vpop.f32.mrb[0].mxu0
  %v2554 = vadd.f32 0.0, %v2553
  %v2555 = vpop.f32.mrb[0].mxu0
  %v2556 = vpop.f32.mrb[0].mxu0
  %v2557 = vpop.f32.mrb[0].mxu0
  %2558 = vdwg.mxu0
  %v2559 = vadd.f32 %v1951, %v2513
  %v2560 = vxor.u32 %v2559, 2147483648
  %v2561 = vmul.f32 %v2560, 1.442695
  %v2562 = vpow.pop %v2561
  %v2563 = vadd.f32 %v2562, 1.0
  %v2564 = vrcp.pop %v2563
  %v2565 = vmul.f32 1.0, %v2564
  %v2566 = vadd.f32 %v1953, %v2515
  %v2567 = vxor.u32 %v2566, 2147483648
  %v2568 = vmul.f32 %v2567, 1.442695
  %v2569 = vpow.pop %v2568
  %v2570 = vadd.f32 %v2569, 1.0
  %v2571 = vrcp.pop %v2570
  %v2572 = vmul.f32 1.0, %v2571
  %v2573 = vadd.f32 %v2554, %v2001
  %v2574 = vmul.f32 %v2565, %v2573
  %v2575 = vadd.f32 %v1993, %v2574
  %v2576 = vtanh.pop %v2575
  %v2578 = vrot.slane %v2576, 2
  %v2580 = vsub.f32 %v2471, %v2578
  %v2582 = vrot.slane %v2580, 6
  %v2584 = vmul.f32 %v2572, %v2582
  %v2585 = vadd.f32 %v2576, %v2584
  %v2586 = vpack.c.bf16 %v2585, %v2585
  %v2588 = vsel %vm891, %v2586, 0
  %2590 = vmatprep.subr.bf16.mxu0 %v1890
  %2591 = vmatpush1.bf16.msra.mxu0 %v1889
  %2592 = vmatprep.subr.bf16.mxu0 %v1893
  %2593 = vmatpush1.bf16.msra.mxu0 %v1892
  %2594 = vmatprep.subr.bf16.mxu0 0
  %2595 = vmatpush1.bf16.msra.mxu0 0
  %2596 = vmatprep.subr.bf16.mxu0 0
  %2597 = vmatpush1.bf16.msra.mxu0 0
  %2598 = vmatprep.subr.bf16.mxu0 0
  %2599 = vmatpush1.bf16.msra.mxu0 0
  %2600 = vmatprep.subr.bf16.mxu0 0
  %2601 = vmatpush1.bf16.msra.mxu0 0
  %2602 = vmatprep.subr.bf16.mxu0 0
  %2603 = vmatpush1.bf16.msra.mxu0 0
  %2604 = vmatprep.subr.bf16.mxu0 0
  %2605 = vmatpush1.bf16.msra.mxu0 0
  %2606 = vmatprep.subr.bf16.mxu0 0
  %2607 = vmatpush1.bf16.msra.mxu0 0
  %2608 = vmatprep.subr.bf16.mxu0 0
  %2609 = vmatpush1.bf16.msra.mxu0 0
  %2610 = vmatprep.subr.bf16.mxu0 0
  %2611 = vmatpush1.bf16.msra.mxu0 0
  %2612 = vmatprep.subr.bf16.mxu0 0
  %2613 = vmatpush1.bf16.msra.mxu0 0
  %2614 = vmatprep.subr.bf16.mxu0 0
  %2615 = vmatpush1.bf16.msra.mxu0 0
  %2616 = vmatprep.subr.bf16.mxu0 0
  %2617 = vmatpush1.bf16.msra.mxu0 0
  %2618 = vmatprep.subr.bf16.mxu0 0
  %2619 = vmatpush1.bf16.msra.mxu0 0
  %2620 = vmatprep.subr.bf16.mxu0 0
  %2621 = vmatpush1.bf16.msra.mxu0 0
  %2622 = vmatprep.mubr.bf16.mxu0 0
  %2623 = vmatmul.mubr.bf16.gmra.mrb[0].mxu0 %v2588
  %v2624 = vpop.f32.mrb[0].mxu0
  %v2625 = vadd.f32 0.0, %v2624
  %v2626 = vpop.f32.mrb[0].mxu0
  %v2627 = vadd.f32 0.0, %v2626
  %v2628 = vpop.f32.mrb[0].mxu0
  %v2629 = vpop.f32.mrb[0].mxu0
  %2630 = vdwg.mxu0
  %2631 = vmatprep.subr.bf16.mxu0 0
  %2632 = vmatpush1.bf16.msra.mxu0 %v1891
  %2633 = vmatprep.subr.bf16.mxu0 0
  %2634 = vmatpush1.bf16.msra.mxu0 %v1894
  %2635 = vmatprep.subr.bf16.mxu0 0
  %2636 = vmatpush1.bf16.msra.mxu0 0
  %2637 = vmatprep.subr.bf16.mxu0 0
  %2638 = vmatpush1.bf16.msra.mxu0 0
  %2639 = vmatprep.subr.bf16.mxu0 0
  %2640 = vmatpush1.bf16.msra.mxu0 0
  %2641 = vmatprep.subr.bf16.mxu0 0
  %2642 = vmatpush1.bf16.msra.mxu0 0
  %2643 = vmatprep.subr.bf16.mxu0 0
  %2644 = vmatpush1.bf16.msra.mxu0 0
  %2645 = vmatprep.subr.bf16.mxu0 0
  %2646 = vmatpush1.bf16.msra.mxu0 0
  %2647 = vmatprep.subr.bf16.mxu0 0
  %2648 = vmatpush1.bf16.msra.mxu0 0
  %2649 = vmatprep.subr.bf16.mxu0 0
  %2650 = vmatpush1.bf16.msra.mxu0 0
  %2651 = vmatprep.subr.bf16.mxu0 0
  %2652 = vmatpush1.bf16.msra.mxu0 0
  %2653 = vmatprep.subr.bf16.mxu0 0
  %2654 = vmatpush1.bf16.msra.mxu0 0
  %2655 = vmatprep.subr.bf16.mxu0 0
  %2656 = vmatpush1.bf16.msra.mxu0 0
  %2657 = vmatprep.subr.bf16.mxu0 0
  %2658 = vmatpush1.bf16.msra.mxu0 0
  %2659 = vmatprep.subr.bf16.mxu0 0
  %2660 = vmatpush1.bf16.msra.mxu0 0
  %2661 = vmatprep.subr.bf16.mxu0 0
  %2662 = vmatpush1.bf16.msra.mxu0 0
  %2663 = vmatprep.mubr.bf16.mxu0 0
  %2664 = vmatmul.mubr.bf16.gmra.mrb[0].mxu0 %v2588
  %v2665 = vpop.f32.mrb[0].mxu0
  %v2666 = vadd.f32 0.0, %v2665
  %v2667 = vpop.f32.mrb[0].mxu0
  %v2668 = vpop.f32.mrb[0].mxu0
  %v2669 = vpop.f32.mrb[0].mxu0
  %2670 = vdwg.mxu0
  %v2672 = vrot.slane %v2625, 6
  %v2674 = vadd.f32 %v1951, %v2672
  %v2675 = vxor.u32 %v2674, 2147483648
  %v2676 = vmul.f32 %v2675, 1.442695
  %v2677 = vpow.pop %v2676
  %v2678 = vadd.f32 %v2677, 1.0
  %v2679 = vrcp.pop %v2678
  %v2680 = vmul.f32 1.0, %v2679
  %v2682 = vrot.slane %v2627, 6
  %v2684 = vadd.f32 %v1953, %v2682
  %v2685 = vxor.u32 %v2684, 2147483648
  %v2686 = vmul.f32 %v2685, 1.442695
  %v2687 = vpow.pop %v2686
  %v2688 = vadd.f32 %v2687, 1.0
  %v2689 = vrcp.pop %v2688
  %v2690 = vmul.f32 1.0, %v2689
  %v2691 = vadd.f32 %v2666, %v2001
  %v2693 = vrot.slane %v2691, 6
  %v2695 = vmul.f32 %v2680, %v2693
  %v2696 = vadd.f32 %v1993, %v2695
  %v2697 = vtanh.pop %v2696
  %v2699 = vrot.slane %v2697, 2
  %v2701 = vsub.f32 %v2585, %v2699
  %v2703 = vrot.slane %v2701, 6
  %v2705 = vmul.f32 %v2690, %v2703
  %v2706 = vadd.f32 %v2697, %v2705
  %v2707 = vpack.c.bf16 %v2706, %v2706
  %v2709 = vrot.slane %v2707, 1
  %v2711 = vsel %vm891, %v2709, 0
  %2713 = vmatprep.subr.bf16.mxu0 %v1890
  %2714 = vmatpush1.bf16.msra.mxu0 %v1889
  %2715 = vmatprep.subr.bf16.mxu0 %v1893
  %2716 = vmatpush1.bf16.msra.mxu0 %v1892
  %2717 = vmatprep.subr.bf16.mxu0 0
  %2718 = vmatpush1.bf16.msra.mxu0 0
  %2719 = vmatprep.subr.bf16.mxu0 0
  %2720 = vmatpush1.bf16.msra.mxu0 0
  %2721 = vmatprep.subr.bf16.mxu0 0
  %2722 = vmatpush1.bf16.msra.mxu0 0
  %2723 = vmatprep.subr.bf16.mxu0 0
  %2724 = vmatpush1.bf16.msra.mxu0 0
  %2725 = vmatprep.subr.bf16.mxu0 0
  %2726 = vmatpush1.bf16.msra.mxu0 0
  %2727 = vmatprep.subr.bf16.mxu0 0
  %2728 = vmatpush1.bf16.msra.mxu0 0
  %2729 = vmatprep.subr.bf16.mxu0 0
  %2730 = vmatpush1.bf16.msra.mxu0 0
  %2731 = vmatprep.subr.bf16.mxu0 0
  %2732 = vmatpush1.bf16.msra.mxu0 0
  %2733 = vmatprep.subr.bf16.mxu0 0
  %2734 = vmatpush1.bf16.msra.mxu0 0
  %2735 = vmatprep.subr.bf16.mxu0 0
  %2736 = vmatpush1.bf16.msra.mxu0 0
  %2737 = vmatprep.subr.bf16.mxu0 0
  %2738 = vmatpush1.bf16.msra.mxu0 0
  %2739 = vmatprep.subr.bf16.mxu0 0
  %2740 = vmatpush1.bf16.msra.mxu0 0
  %2741 = vmatprep.subr.bf16.mxu0 0
  %2742 = vmatpush1.bf16.msra.mxu0 0
  %2743 = vmatprep.subr.bf16.mxu0 0
  %2744 = vmatpush1.bf16.msra.mxu0 0
  %2745 = vmatprep.mubr.bf16.mxu0 0
  %2746 = vmatmul.mubr.bf16.gmra.mrb[0].mxu0 %v2711
  %v2747 = vpop.f32.mrb[0].mxu0
  %v2748 = vadd.f32 0.0, %v2747
  %v2749 = vpop.f32.mrb[0].mxu0
  %v2750 = vadd.f32 0.0, %v2749
  %v2751 = vpop.f32.mrb[0].mxu0
  %v2752 = vpop.f32.mrb[0].mxu0
  %2753 = vdwg.mxu0
  %2754 = vmatprep.subr.bf16.mxu0 0
  %2755 = vmatpush1.bf16.msra.mxu0 %v1891
  %2756 = vmatprep.subr.bf16.mxu0 0
  %2757 = vmatpush1.bf16.msra.mxu0 %v1894
  %2758 = vmatprep.subr.bf16.mxu0 0
  %2759 = vmatpush1.bf16.msra.mxu0 0
  %2760 = vmatprep.subr.bf16.mxu0 0
  %2761 = vmatpush1.bf16.msra.mxu0 0
  %2762 = vmatprep.subr.bf16.mxu0 0
  %2763 = vmatpush1.bf16.msra.mxu0 0
  %2764 = vmatprep.subr.bf16.mxu0 0
  %2765 = vmatpush1.bf16.msra.mxu0 0
  %2766 = vmatprep.subr.bf16.mxu0 0
  %2767 = vmatpush1.bf16.msra.mxu0 0
  %2768 = vmatprep.subr.bf16.mxu0 0
  %2769 = vmatpush1.bf16.msra.mxu0 0
  %2770 = vmatprep.subr.bf16.mxu0 0
  %2771 = vmatpush1.bf16.msra.mxu0 0
  %2772 = vmatprep.subr.bf16.mxu0 0
  %2773 = vmatpush1.bf16.msra.mxu0 0
  %2774 = vmatprep.subr.bf16.mxu0 0
  %2775 = vmatpush1.bf16.msra.mxu0 0
  %2776 = vmatprep.subr.bf16.mxu0 0
  %2777 = vmatpush1.bf16.msra.mxu0 0
  %2778 = vmatprep.subr.bf16.mxu0 0
  %2779 = vmatpush1.bf16.msra.mxu0 0
  %2780 = vmatprep.subr.bf16.mxu0 0
  %2781 = vmatpush1.bf16.msra.mxu0 0
  %2782 = vmatprep.subr.bf16.mxu0 0
  %2783 = vmatpush1.bf16.msra.mxu0 0
  %2784 = vmatprep.subr.bf16.mxu0 0
  %2785 = vmatpush1.bf16.msra.mxu0 0
  %2786 = vmatprep.mubr.bf16.mxu0 0
  %2787 = vmatmul.mubr.bf16.gmra.mrb[0].mxu0 %v2711
  %v2788 = vpop.f32.mrb[0].mxu0
  %v2789 = vadd.f32 0.0, %v2788
  %v2790 = vpop.f32.mrb[0].mxu0
  %v2791 = vpop.f32.mrb[0].mxu0
  %v2792 = vpop.f32.mrb[0].mxu0
  %2793 = vdwg.mxu0
  %v2795 = vrot.slane %v2748, 4
  %v2797 = vadd.f32 %v1951, %v2795
  %v2798 = vxor.u32 %v2797, 2147483648
  %v2799 = vmul.f32 %v2798, 1.442695
  %v2800 = vpow.pop %v2799
  %v2801 = vadd.f32 %v2800, 1.0
  %v2802 = vrcp.pop %v2801
  %v2803 = vmul.f32 1.0, %v2802
  %v2805 = vrot.slane %v2750, 4
  %v2807 = vadd.f32 %v1953, %v2805
  %v2808 = vxor.u32 %v2807, 2147483648
  %v2809 = vmul.f32 %v2808, 1.442695
  %v2810 = vpow.pop %v2809
  %v2811 = vadd.f32 %v2810, 1.0
  %v2812 = vrcp.pop %v2811
  %v2813 = vmul.f32 1.0, %v2812
  %v2814 = vadd.f32 %v2789, %v2001
  %v2816 = vrot.slane %v2814, 4
  %v2818 = vmul.f32 %v2803, %v2816
  %v2819 = vadd.f32 %v1993, %v2818
  %v2820 = vtanh.pop %v2819
  %v2822 = vrot.slane %v2820, 2
  %v2824 = vsub.f32 %v2706, %v2822
  %v2826 = vrot.slane %v2824, 6
  %v2828 = vmul.f32 %v2813, %v2826
  %v2829 = vadd.f32 %v2820, %v2828
  %v2830 = vpack.c.bf16 %v2829, %v2829
  %v2832 = vrot.slane %v2830, 2
  %v2834 = vsel %vm891, %v2832, 0
  %2836 = vmatprep.subr.bf16.mxu0 %v1890
  %2837 = vmatpush1.bf16.msra.mxu0 %v1889
  %2838 = vmatprep.subr.bf16.mxu0 %v1893
  %2839 = vmatpush1.bf16.msra.mxu0 %v1892
  %2840 = vmatprep.subr.bf16.mxu0 0
  %2841 = vmatpush1.bf16.msra.mxu0 0
  %2842 = vmatprep.subr.bf16.mxu0 0
  %2843 = vmatpush1.bf16.msra.mxu0 0
  %2844 = vmatprep.subr.bf16.mxu0 0
  %2845 = vmatpush1.bf16.msra.mxu0 0
  %2846 = vmatprep.subr.bf16.mxu0 0
  %2847 = vmatpush1.bf16.msra.mxu0 0
  %2848 = vmatprep.subr.bf16.mxu0 0
  %2849 = vmatpush1.bf16.msra.mxu0 0
  %2850 = vmatprep.subr.bf16.mxu0 0
  %2851 = vmatpush1.bf16.msra.mxu0 0
  %2852 = vmatprep.subr.bf16.mxu0 0
  %2853 = vmatpush1.bf16.msra.mxu0 0
  %2854 = vmatprep.subr.bf16.mxu0 0
  %2855 = vmatpush1.bf16.msra.mxu0 0
  %2856 = vmatprep.subr.bf16.mxu0 0
  %2857 = vmatpush1.bf16.msra.mxu0 0
  %2858 = vmatprep.subr.bf16.mxu0 0
  %2859 = vmatpush1.bf16.msra.mxu0 0
  %2860 = vmatprep.subr.bf16.mxu0 0
  %2861 = vmatpush1.bf16.msra.mxu0 0
  %2862 = vmatprep.subr.bf16.mxu0 0
  %2863 = vmatpush1.bf16.msra.mxu0 0
  %2864 = vmatprep.subr.bf16.mxu0 0
  %2865 = vmatpush1.bf16.msra.mxu0 0
  %2866 = vmatprep.subr.bf16.mxu0 0
  %2867 = vmatpush1.bf16.msra.mxu0 0
  %2868 = vmatprep.mubr.bf16.mxu0 0
  %2869 = vmatmul.mubr.bf16.gmra.mrb[0].mxu0 %v2834
  %v2870 = vpop.f32.mrb[0].mxu0
  %v2871 = vadd.f32 0.0, %v2870
  %v2872 = vpop.f32.mrb[0].mxu0
  %v2873 = vadd.f32 0.0, %v2872
  %v2874 = vpop.f32.mrb[0].mxu0
  %v2875 = vpop.f32.mrb[0].mxu0
  %2876 = vdwg.mxu0
  %2877 = vmatprep.subr.bf16.mxu0 0
  %2878 = vmatpush1.bf16.msra.mxu0 %v1891
  %2879 = vmatprep.subr.bf16.mxu0 0
  %2880 = vmatpush1.bf16.msra.mxu0 %v1894
  %2881 = vmatprep.subr.bf16.mxu0 0
  %2882 = vmatpush1.bf16.msra.mxu0 0
  %2883 = vmatprep.subr.bf16.mxu0 0
  %2884 = vmatpush1.bf16.msra.mxu0 0
  %2885 = vmatprep.subr.bf16.mxu0 0
  %2886 = vmatpush1.bf16.msra.mxu0 0
  %2887 = vmatprep.subr.bf16.mxu0 0
  %2888 = vmatpush1.bf16.msra.mxu0 0
  %2889 = vmatprep.subr.bf16.mxu0 0
  %2890 = vmatpush1.bf16.msra.mxu0 0
  %2891 = vmatprep.subr.bf16.mxu0 0
  %2892 = vmatpush1.bf16.msra.mxu0 0
  %2893 = vmatprep.subr.bf16.mxu0 0
  %2894 = vmatpush1.bf16.msra.mxu0 0
  %2895 = vmatprep.subr.bf16.mxu0 0
  %2896 = vmatpush1.bf16.msra.mxu0 0
  %2897 = vmatprep.subr.bf16.mxu0 0
  %2898 = vmatpush1.bf16.msra.mxu0 0
  %2899 = vmatprep.subr.bf16.mxu0 0
  %2900 = vmatpush1.bf16.msra.mxu0 0
  %2901 = vmatprep.subr.bf16.mxu0 0
  %2902 = vmatpush1.bf16.msra.mxu0 0
  %2903 = vmatprep.subr.bf16.mxu0 0
  %2904 = vmatpush1.bf16.msra.mxu0 0
  %2905 = vmatprep.subr.bf16.mxu0 0
  %2906 = vmatpush1.bf16.msra.mxu0 0
  %2907 = vmatprep.subr.bf16.mxu0 0
  %2908 = vmatpush1.bf16.msra.mxu0 0
  %2909 = vmatprep.mubr.bf16.mxu0 0
  %2910 = vmatmul.mubr.bf16.gmra.mrb[0].mxu0 %v2834
  %v2911 = vpop.f32.mrb[0].mxu0
  %v2912 = vadd.f32 0.0, %v2911
  %v2913 = vpop.f32.mrb[0].mxu0
  %v2914 = vpop.f32.mrb[0].mxu0
  %v2915 = vpop.f32.mrb[0].mxu0
  %2916 = vdwg.mxu0
  %v2918 = vrot.slane %v2871, 2
  %v2920 = vadd.f32 %v1951, %v2918
  %v2921 = vxor.u32 %v2920, 2147483648
  %v2922 = vmul.f32 %v2921, 1.442695
  %v2923 = vpow.pop %v2922
  %v2924 = vadd.f32 %v2923, 1.0
  %v2925 = vrcp.pop %v2924
  %v2926 = vmul.f32 1.0, %v2925
  %v2928 = vrot.slane %v2873, 2
  %v2930 = vadd.f32 %v1953, %v2928
  %v2931 = vxor.u32 %v2930, 2147483648
  %v2932 = vmul.f32 %v2931, 1.442695
  %v2933 = vpow.pop %v2932
  %v2934 = vadd.f32 %v2933, 1.0
  %v2935 = vrcp.pop %v2934
  %v2936 = vmul.f32 1.0, %v2935
  %v2937 = vadd.f32 %v2912, %v2001
  %v2939 = vrot.slane %v2937, 2
  %v2941 = vmul.f32 %v2926, %v2939
  %v2942 = vadd.f32 %v1993, %v2941
  %v2943 = vtanh.pop %v2942
  %v2945 = vrot.slane %v2943, 2
  %v2947 = vsub.f32 %v2829, %v2945
  %v2949 = vrot.slane %v2947, 6
  %v2951 = vmul.f32 %v2936, %v2949
  %v2952 = vadd.f32 %v2943, %v2951
  %v2953 = vsel %vm1845, %v2104, %v2225
  %v2954 = vsel %vm1847, %v2953, %v2348
  %v2955 = vsel %vm1849, %v2954, %v2471
  %v2956 = vsel %vm1845, %v2585, %v2706
  %v2957 = vsel %vm1847, %v2956, %v2829
  %v2958 = vsel %vm1849, %v2957, %v2952
  %s2959 = scalar_lea.vmem %s13, 16
  %2960 = vst [vmem:[%s2959] sm:$0xff] %v2955
  %2961 = vst [vmem:[%s2959 + $0x8] sm:$0xff] %v2958
  %v2962 = vpack.c.bf16 %v2958, %v2955
  %s2963 = sshll.u32 %s1858, 4
  %2964 = dma.done %s374, %s2963
  %s2965 = sshll.u32 %s1862, 4
  %2966 = dma.done %s615, %s2965
  %v2967 = vld [vmem:[#allocation4] sm:$0xff]
  %v2968 = vld [vmem:[#allocation4 + $0x8] sm:$0xff]
  %v2969 = vld [vmem:[#allocation4 + $0x10] sm:$0xff]
  %v2970 = vld [vmem:[#allocation4 + $0x18] sm:$0xff]
  %v2971 = vld [vmem:[#allocation4 + $0x20] sm:$0xff]
  %v2972 = vld [vmem:[#allocation4 + $0x28] sm:$0xff]
  %v2973 = vld [vmem:[#allocation4 + $0x30] sm:$0xff]
  %v2974 = vld [vmem:[#allocation4 + $0x38] sm:$0xff]
  %v2975 = vld [vmem:[#allocation4 + $0x40] sm:$0xff]
  %v2976 = vld [vmem:[#allocation4 + $0x48] sm:$0xff]
  %v2977 = vld [vmem:[#allocation4 + $0x50] sm:$0xff]
  %v2978 = vld [vmem:[#allocation4 + $0x58] sm:$0xff]
  %v2979 = vld [vmem:[#allocation4 + $0x60] sm:$0xff]
  %v2980 = vld [vmem:[#allocation4 + $0x68] sm:$0xff]
  %v2981 = vld [vmem:[#allocation4 + $0x70] sm:$0xff]
  %v2982 = vld [vmem:[#allocation4 + $0x78] sm:$0xff]
  %v2983 = vld [vmem:[#allocation4 + $0x80] sm:$0xff]
  %v2984 = vld [vmem:[#allocation4 + $0x88] sm:$0xff]
  %v2985 = vld [vmem:[#allocation4 + $0x90] sm:$0xff]
  %v2986 = vld [vmem:[#allocation4 + $0x98] sm:$0xff]
  %v2987 = vld [vmem:[#allocation4 + $0xa0] sm:$0xff]
  %v2988 = vld [vmem:[#allocation4 + $0xa8] sm:$0xff]
  %v2989 = vld [vmem:[#allocation4 + $0xb0] sm:$0xff]
  %v2990 = vld [vmem:[#allocation4 + $0xb8] sm:$0xff]
  %v2991 = vld [vmem:[#allocation5] sm:$0xff]
  %v2992 = vld [vmem:[#allocation5 + $0x8] sm:$0xff]
  %v2993 = vld [vmem:[#allocation5 + $0x10] sm:$0xff]
  %v2994 = vld [vmem:[#allocation5 + $0x18] sm:$0xff]
  %v2995 = vld [vmem:[#allocation5 + $0x20] sm:$0xff]
  %v2996 = vld [vmem:[#allocation5 + $0x28] sm:$0xff]
  %v2997 = vld [vmem:[%s11] sm:$0x7]
  %v2999 = vlaneseq
  %v3000 = vshrl.u32 %v2999, 7
  %v3001 = vsub.s32 0, %v3000
  %v3002 = vrot.slane %v2997, %v3001
  %v3003 = vlaneseq
  %v3004 = vshrl.u32 %v3003, 7
  %v3005 = vsub.s32 1, %v3004
  %v3006 = vrot.slane %v2997, %v3005
  %v3007 = vlaneseq
  %v3008 = vshrl.u32 %v3007, 7
  %v3009 = vsub.s32 2, %v3008
  %v3010 = vrot.slane %v2997, %v3009
  %3014 = vmatprep.subr.bf16.mxu0 %v2968
  %3015 = vmatpush1.bf16.msra.mxu0 %v2967
  %3016 = vmatprep.subr.bf16.mxu0 %v2971
  %3017 = vmatpush1.bf16.msra.mxu0 %v2970
  %3018 = vmatprep.subr.bf16.mxu0 %v2974
  %3019 = vmatpush1.bf16.msra.mxu0 %v2973
  %3020 = vmatprep.subr.bf16.mxu0 %v2977
  %3021 = vmatpush1.bf16.msra.mxu0 %v2976
  %3022 = vmatprep.subr.bf16.mxu0 %v2980
  %3023 = vmatpush1.bf16.msra.mxu0 %v2979
  %3024 = vmatprep.subr.bf16.mxu0 %v2983
  %3025 = vmatpush1.bf16.msra.mxu0 %v2982
  %3026 = vmatprep.subr.bf16.mxu0 %v2986
  %3027 = vmatpush1.bf16.msra.mxu0 %v2985
  %3028 = vmatprep.subr.bf16.mxu0 %v2989
  %3029 = vmatpush1.bf16.msra.mxu0 %v2988
  %3030 = vmatprep.subr.bf16.mxu0 0
  %3031 = vmatpush1.bf16.msra.mxu0 0
  %3032 = vmatprep.subr.bf16.mxu0 0
  %3033 = vmatpush1.bf16.msra.mxu0 0
  %3034 = vmatprep.subr.bf16.mxu0 0
  %3035 = vmatpush1.bf16.msra.mxu0 0
  %3036 = vmatprep.subr.bf16.mxu0 0
  %3037 = vmatpush1.bf16.msra.mxu0 0
  %3038 = vmatprep.subr.bf16.mxu0 0
  %3039 = vmatpush1.bf16.msra.mxu0 0
  %3040 = vmatprep.subr.bf16.mxu0 0
  %3041 = vmatpush1.bf16.msra.mxu0 0
  %3042 = vmatprep.subr.bf16.mxu0 0
  %3043 = vmatpush1.bf16.msra.mxu0 0
  %3044 = vmatprep.subr.bf16.mxu0 0
  %3045 = vmatpush1.bf16.msra.mxu0 0
  %3046 = vmatprep.mubr.bf16.mxu0 0
  %3047 = vmatmul.mubr.bf16.gmra.mrb[0].mxu0 %v2962
  %v3048 = vpop.f32.mrb[0].mxu0
  %v3049 = vadd.f32 %v3002, %v3048
  %v3050 = vpop.f32.mrb[0].mxu0
  %v3051 = vadd.f32 %v3006, %v3050
  %v3052 = vpop.f32.mrb[0].mxu0
  %v3053 = vadd.f32 %v3002, %v3052
  %v3054 = vpop.f32.mrb[0].mxu0
  %v3055 = vadd.f32 %v3006, %v3054
  %3056 = vdwg.mxu0
  %3057 = vmatprep.subr.bf16.mxu0 0
  %3058 = vmatpush1.bf16.msra.mxu0 %v2969
  %3059 = vmatprep.subr.bf16.mxu0 0
  %3060 = vmatpush1.bf16.msra.mxu0 %v2972
  %3061 = vmatprep.subr.bf16.mxu0 0
  %3062 = vmatpush1.bf16.msra.mxu0 %v2975
  %3063 = vmatprep.subr.bf16.mxu0 0
  %3064 = vmatpush1.bf16.msra.mxu0 %v2978
  %3065 = vmatprep.subr.bf16.mxu0 0
  %3066 = vmatpush1.bf16.msra.mxu0 %v2981
  %3067 = vmatprep.subr.bf16.mxu0 0
  %3068 = vmatpush1.bf16.msra.mxu0 %v2984
  %3069 = vmatprep.subr.bf16.mxu0 0
  %3070 = vmatpush1.bf16.msra.mxu0 %v2987
  %3071 = vmatprep.subr.bf16.mxu0 0
  %3072 = vmatpush1.bf16.msra.mxu0 %v2990
  %3073 = vmatprep.subr.bf16.mxu0 0
  %3074 = vmatpush1.bf16.msra.mxu0 0
  %3075 = vmatprep.subr.bf16.mxu0 0
  %3076 = vmatpush1.bf16.msra.mxu0 0
  %3077 = vmatprep.subr.bf16.mxu0 0
  %3078 = vmatpush1.bf16.msra.mxu0 0
  %3079 = vmatprep.subr.bf16.mxu0 0
  %3080 = vmatpush1.bf16.msra.mxu0 0
  %3081 = vmatprep.subr.bf16.mxu0 0
  %3082 = vmatpush1.bf16.msra.mxu0 0
  %3083 = vmatprep.subr.bf16.mxu0 0
  %3084 = vmatpush1.bf16.msra.mxu0 0
  %3085 = vmatprep.subr.bf16.mxu0 0
  %3086 = vmatpush1.bf16.msra.mxu0 0
  %3087 = vmatprep.subr.bf16.mxu0 0
  %3088 = vmatpush1.bf16.msra.mxu0 0
  %3089 = vmatprep.mubr.bf16.mxu0 0
  %3090 = vmatmul.mubr.bf16.gmra.mrb[0].mxu0 %v2962
  %v3091 = vpop.f32.mrb[0].mxu0
  %v3092 = vadd.f32 %v3010, %v3091
  %v3093 = vpop.f32.mrb[0].mxu0
  %v3094 = vpop.f32.mrb[0].mxu0
  %v3095 = vadd.f32 %v3010, %v3094
  %v3096 = vpop.f32.mrb[0].mxu0
  %3097 = vdwg.mxu0
  %v3098 = vld [vmem:[%s12] sm:$0x1]
  %v3100 = vlaneseq
  %v3101 = vshrl.u32 %v3100, 7
  %v3102 = vsub.s32 0, %v3101
  %v3103 = vrot.slane %v3098, %v3102
  %3105 = vmatprep.subr.bf16.mxu0 %v2992
  %3106 = vmatpush1.bf16.msra.mxu0 %v2991
  %3107 = vmatprep.subr.bf16.mxu0 %v2995
  %3108 = vmatpush1.bf16.msra.mxu0 %v2994
  %3109 = vmatprep.subr.bf16.mxu0 0
  %3110 = vmatpush1.bf16.msra.mxu0 0
  %3111 = vmatprep.subr.bf16.mxu0 0
  %3112 = vmatpush1.bf16.msra.mxu0 0
  %3113 = vmatprep.subr.bf16.mxu0 0
  %3114 = vmatpush1.bf16.msra.mxu0 0
  %3115 = vmatprep.subr.bf16.mxu0 0
  %3116 = vmatpush1.bf16.msra.mxu0 0
  %3117 = vmatprep.subr.bf16.mxu0 0
  %3118 = vmatpush1.bf16.msra.mxu0 0
  %3119 = vmatprep.subr.bf16.mxu0 0
  %3120 = vmatpush1.bf16.msra.mxu0 0
  %3121 = vmatprep.subr.bf16.mxu0 0
  %3122 = vmatpush1.bf16.msra.mxu0 0
  %3123 = vmatprep.subr.bf16.mxu0 0
  %3124 = vmatpush1.bf16.msra.mxu0 0
  %3125 = vmatprep.subr.bf16.mxu0 0
  %3126 = vmatpush1.bf16.msra.mxu0 0
  %3127 = vmatprep.subr.bf16.mxu0 0
  %3128 = vmatpush1.bf16.msra.mxu0 0
  %3129 = vmatprep.subr.bf16.mxu0 0
  %3130 = vmatpush1.bf16.msra.mxu0 0
  %3131 = vmatprep.subr.bf16.mxu0 0
  %3132 = vmatpush1.bf16.msra.mxu0 0
  %3133 = vmatprep.subr.bf16.mxu0 0
  %3134 = vmatpush1.bf16.msra.mxu0 0
  %3135 = vmatprep.subr.bf16.mxu0 0
  %3136 = vmatpush1.bf16.msra.mxu0 0
  %3137 = vmatprep.mubr.bf16.mxu0 0
  %3138 = vmatmul.mubr.bf16.gmra.mrb[0].mxu0 %v893
  %v3139 = vpop.f32.mrb[0].mxu0
  %v3140 = vadd.f32 0.0, %v3139
  %v3141 = vpop.f32.mrb[0].mxu0
  %v3142 = vadd.f32 0.0, %v3141
  %v3143 = vpop.f32.mrb[0].mxu0
  %v3144 = vpop.f32.mrb[0].mxu0
  %3145 = vdwg.mxu0
  %3146 = vmatprep.subr.bf16.mxu0 0
  %3147 = vmatpush1.bf16.msra.mxu0 %v2993
  %3148 = vmatprep.subr.bf16.mxu0 0
  %3149 = vmatpush1.bf16.msra.mxu0 %v2996
  %3150 = vmatprep.subr.bf16.mxu0 0
  %3151 = vmatpush1.bf16.msra.mxu0 0
  %3152 = vmatprep.subr.bf16.mxu0 0
  %3153 = vmatpush1.bf16.msra.mxu0 0
  %3154 = vmatprep.subr.bf16.mxu0 0
  %3155 = vmatpush1.bf16.msra.mxu0 0
  %3156 = vmatprep.subr.bf16.mxu0 0
  %3157 = vmatpush1.bf16.msra.mxu0 0
  %3158 = vmatprep.subr.bf16.mxu0 0
  %3159 = vmatpush1.bf16.msra.mxu0 0
  %3160 = vmatprep.subr.bf16.mxu0 0
  %3161 = vmatpush1.bf16.msra.mxu0 0
  %3162 = vmatprep.subr.bf16.mxu0 0
  %3163 = vmatpush1.bf16.msra.mxu0 0
  %3164 = vmatprep.subr.bf16.mxu0 0
  %3165 = vmatpush1.bf16.msra.mxu0 0
  %3166 = vmatprep.subr.bf16.mxu0 0
  %3167 = vmatpush1.bf16.msra.mxu0 0
  %3168 = vmatprep.subr.bf16.mxu0 0
  %3169 = vmatpush1.bf16.msra.mxu0 0
  %3170 = vmatprep.subr.bf16.mxu0 0
  %3171 = vmatpush1.bf16.msra.mxu0 0
  %3172 = vmatprep.subr.bf16.mxu0 0
  %3173 = vmatpush1.bf16.msra.mxu0 0
  %3174 = vmatprep.subr.bf16.mxu0 0
  %3175 = vmatpush1.bf16.msra.mxu0 0
  %3176 = vmatprep.subr.bf16.mxu0 0
  %3177 = vmatpush1.bf16.msra.mxu0 0
  %3178 = vmatprep.mubr.bf16.mxu0 0
  %3179 = vmatmul.mubr.bf16.gmra.mrb[0].mxu0 %v893
  %v3180 = vpop.f32.mrb[0].mxu0
  %v3181 = vadd.f32 0.0, %v3180
  %v3182 = vpop.f32.mrb[0].mxu0
  %v3183 = vpop.f32.mrb[0].mxu0
  %v3184 = vpop.f32.mrb[0].mxu0
  %3185 = vdwg.mxu0
  %v3186 = vadd.f32 %v3049, %v3140
  %v3187 = vxor.u32 %v3186, 2147483648
  %v3188 = vmul.f32 %v3187, 1.442695
  %v3189 = vpow.pop %v3188
  %v3190 = vadd.f32 %v3189, 1.0
  %v3191 = vrcp.pop %v3190
  %v3192 = vmul.f32 1.0, %v3191
  %v3193 = vadd.f32 %v3051, %v3142
  %v3194 = vxor.u32 %v3193, 2147483648
  %v3195 = vmul.f32 %v3194, 1.442695
  %v3196 = vpow.pop %v3195
  %v3197 = vadd.f32 %v3196, 1.0
  %v3198 = vrcp.pop %v3197
  %v3199 = vmul.f32 1.0, %v3198
  %v3200 = vadd.f32 %v3181, %v3103
  %v3201 = vmul.f32 %v3192, %v3200
  %v3202 = vadd.f32 %v3092, %v3201
  %v3203 = vtanh.pop %v3202
  %v3204 = vsub.f32 0.0, %v3203
  %v3205 = vmul.f32 %v3199, %v3204
  %v3206 = vadd.f32 %v3203, %v3205
  %v3207 = vpack.c.bf16 %v3206, %v3206
  %v3209 = vsel %vm891, %v3207, 0
  %3211 = vmatprep.subr.bf16.mxu0 %v2992
  %3212 = vmatpush1.bf16.msra.mxu0 %v2991
  %3213 = vmatprep.subr.bf16.mxu0 %v2995
  %3214 = vmatpush1.bf16.msra.mxu0 %v2994
  %3215 = vmatprep.subr.bf16.mxu0 0
  %3216 = vmatpush1.bf16.msra.mxu0 0
  %3217 = vmatprep.subr.bf16.mxu0 0
  %3218 = vmatpush1.bf16.msra.mxu0 0
  %3219 = vmatprep.subr.bf16.mxu0 0
  %3220 = vmatpush1.bf16.msra.mxu0 0
  %3221 = vmatprep.subr.bf16.mxu0 0
  %3222 = vmatpush1.bf16.msra.mxu0 0
  %3223 = vmatprep.subr.bf16.mxu0 0
  %3224 = vmatpush1.bf16.msra.mxu0 0
  %3225 = vmatprep.subr.bf16.mxu0 0
  %3226 = vmatpush1.bf16.msra.mxu0 0
  %3227 = vmatprep.subr.bf16.mxu0 0
  %3228 = vmatpush1.bf16.msra.mxu0 0
  %3229 = vmatprep.subr.bf16.mxu0 0
  %3230 = vmatpush1.bf16.msra.mxu0 0
  %3231 = vmatprep.subr.bf16.mxu0 0
  %3232 = vmatpush1.bf16.msra.mxu0 0
  %3233 = vmatprep.subr.bf16.mxu0 0
  %3234 = vmatpush1.bf16.msra.mxu0 0
  %3235 = vmatprep.subr.bf16.mxu0 0
  %3236 = vmatpush1.bf16.msra.mxu0 0
  %3237 = vmatprep.subr.bf16.mxu0 0
  %3238 = vmatpush1.bf16.msra.mxu0 0
  %3239 = vmatprep.subr.bf16.mxu0 0
  %3240 = vmatpush1.bf16.msra.mxu0 0
  %3241 = vmatprep.subr.bf16.mxu0 0
  %3242 = vmatpush1.bf16.msra.mxu0 0
  %3243 = vmatprep.mubr.bf16.mxu0 0
  %3244 = vmatmul.mubr.bf16.gmra.mrb[0].mxu0 %v3209
  %v3245 = vpop.f32.mrb[0].mxu0
  %v3246 = vadd.f32 0.0, %v3245
  %v3247 = vpop.f32.mrb[0].mxu0
  %v3248 = vadd.f32 0.0, %v3247
  %v3249 = vpop.f32.mrb[0].mxu0
  %v3250 = vpop.f32.mrb[0].mxu0
  %3251 = vdwg.mxu0
  %3252 = vmatprep.subr.bf16.mxu0 0
  %3253 = vmatpush1.bf16.msra.mxu0 %v2993
  %3254 = vmatprep.subr.bf16.mxu0 0
  %3255 = vmatpush1.bf16.msra.mxu0 %v2996
  %3256 = vmatprep.subr.bf16.mxu0 0
  %3257 = vmatpush1.bf16.msra.mxu0 0
  %3258 = vmatprep.subr.bf16.mxu0 0
  %3259 = vmatpush1.bf16.msra.mxu0 0
  %3260 = vmatprep.subr.bf16.mxu0 0
  %3261 = vmatpush1.bf16.msra.mxu0 0
  %3262 = vmatprep.subr.bf16.mxu0 0
  %3263 = vmatpush1.bf16.msra.mxu0 0
  %3264 = vmatprep.subr.bf16.mxu0 0
  %3265 = vmatpush1.bf16.msra.mxu0 0
  %3266 = vmatprep.subr.bf16.mxu0 0
  %3267 = vmatpush1.bf16.msra.mxu0 0
  %3268 = vmatprep.subr.bf16.mxu0 0
  %3269 = vmatpush1.bf16.msra.mxu0 0
  %3270 = vmatprep.subr.bf16.mxu0 0
  %3271 = vmatpush1.bf16.msra.mxu0 0
  %3272 = vmatprep.subr.bf16.mxu0 0
  %3273 = vmatpush1.bf16.msra.mxu0 0
  %3274 = vmatprep.subr.bf16.mxu0 0
  %3275 = vmatpush1.bf16.msra.mxu0 0
  %3276 = vmatprep.subr.bf16.mxu0 0
  %3277 = vmatpush1.bf16.msra.mxu0 0
  %3278 = vmatprep.subr.bf16.mxu0 0
  %3279 = vmatpush1.bf16.msra.mxu0 0
  %3280 = vmatprep.subr.bf16.mxu0 0
  %3281 = vmatpush1.bf16.msra.mxu0 0
  %3282 = vmatprep.subr.bf16.mxu0 0
  %3283 = vmatpush1.bf16.msra.mxu0 0
  %3284 = vmatprep.mubr.bf16.mxu0 0
  %3285 = vmatmul.mubr.bf16.gmra.mrb[0].mxu0 %v3209
  %v3286 = vpop.f32.mrb[0].mxu0
  %v3287 = vadd.f32 0.0, %v3286
  %v3288 = vpop.f32.mrb[0].mxu0
  %v3289 = vpop.f32.mrb[0].mxu0
  %v3290 = vpop.f32.mrb[0].mxu0
  %3291 = vdwg.mxu0
  %v3293 = vrot.slane %v3246, 6
  %v3295 = vadd.f32 %v3049, %v3293
  %v3296 = vxor.u32 %v3295, 2147483648
  %v3297 = vmul.f32 %v3296, 1.442695
  %v3298 = vpow.pop %v3297
  %v3299 = vadd.f32 %v3298, 1.0
  %v3300 = vrcp.pop %v3299
  %v3301 = vmul.f32 1.0, %v3300
  %v3303 = vrot.slane %v3248, 6
  %v3305 = vadd.f32 %v3051, %v3303
  %v3306 = vxor.u32 %v3305, 2147483648
  %v3307 = vmul.f32 %v3306, 1.442695
  %v3308 = vpow.pop %v3307
  %v3309 = vadd.f32 %v3308, 1.0
  %v3310 = vrcp.pop %v3309
  %v3311 = vmul.f32 1.0, %v3310
  %v3312 = vadd.f32 %v3287, %v3103
  %v3314 = vrot.slane %v3312, 6
  %v3316 = vmul.f32 %v3301, %v3314
  %v3317 = vadd.f32 %v3092, %v3316
  %v3318 = vtanh.pop %v3317
  %v3320 = vrot.slane %v3318, 2
  %v3322 = vsub.f32 %v3206, %v3320
  %v3324 = vrot.slane %v3322, 6
  %v3326 = vmul.f32 %v3311, %v3324
  %v3327 = vadd.f32 %v3318, %v3326
  %v3328 = vpack.c.bf16 %v3327, %v3327
  %v3330 = vrot.slane %v3328, 1
  %v3332 = vsel %vm891, %v3330, 0
  %3334 = vmatprep.subr.bf16.mxu0 %v2992
  %3335 = vmatpush1.bf16.msra.mxu0 %v2991
  %3336 = vmatprep.subr.bf16.mxu0 %v2995
  %3337 = vmatpush1.bf16.msra.mxu0 %v2994
  %3338 = vmatprep.subr.bf16.mxu0 0
  %3339 = vmatpush1.bf16.msra.mxu0 0
  %3340 = vmatprep.subr.bf16.mxu0 0
  %3341 = vmatpush1.bf16.msra.mxu0 0
  %3342 = vmatprep.subr.bf16.mxu0 0
  %3343 = vmatpush1.bf16.msra.mxu0 0
  %3344 = vmatprep.subr.bf16.mxu0 0
  %3345 = vmatpush1.bf16.msra.mxu0 0
  %3346 = vmatprep.subr.bf16.mxu0 0
  %3347 = vmatpush1.bf16.msra.mxu0 0
  %3348 = vmatprep.subr.bf16.mxu0 0
  %3349 = vmatpush1.bf16.msra.mxu0 0
  %3350 = vmatprep.subr.bf16.mxu0 0
  %3351 = vmatpush1.bf16.msra.mxu0 0
  %3352 = vmatprep.subr.bf16.mxu0 0
  %3353 = vmatpush1.bf16.msra.mxu0 0
  %3354 = vmatprep.subr.bf16.mxu0 0
  %3355 = vmatpush1.bf16.msra.mxu0 0
  %3356 = vmatprep.subr.bf16.mxu0 0
  %3357 = vmatpush1.bf16.msra.mxu0 0
  %3358 = vmatprep.subr.bf16.mxu0 0
  %3359 = vmatpush1.bf16.msra.mxu0 0
  %3360 = vmatprep.subr.bf16.mxu0 0
  %3361 = vmatpush1.bf16.msra.mxu0 0
  %3362 = vmatprep.subr.bf16.mxu0 0
  %3363 = vmatpush1.bf16.msra.mxu0 0
  %3364 = vmatprep.subr.bf16.mxu0 0
  %3365 = vmatpush1.bf16.msra.mxu0 0
  %3366 = vmatprep.mubr.bf16.mxu0 0
  %3367 = vmatmul.mubr.bf16.gmra.mrb[0].mxu0 %v3332
  %v3368 = vpop.f32.mrb[0].mxu0
  %v3369 = vadd.f32 0.0, %v3368
  %v3370 = vpop.f32.mrb[0].mxu0
  %v3371 = vadd.f32 0.0, %v3370
  %v3372 = vpop.f32.mrb[0].mxu0
  %v3373 = vpop.f32.mrb[0].mxu0
  %3374 = vdwg.mxu0
  %3375 = vmatprep.subr.bf16.mxu0 0
  %3376 = vmatpush1.bf16.msra.mxu0 %v2993
  %3377 = vmatprep.subr.bf16.mxu0 0
  %3378 = vmatpush1.bf16.msra.mxu0 %v2996
  %3379 = vmatprep.subr.bf16.mxu0 0
  %3380 = vmatpush1.bf16.msra.mxu0 0
  %3381 = vmatprep.subr.bf16.mxu0 0
  %3382 = vmatpush1.bf16.msra.mxu0 0
  %3383 = vmatprep.subr.bf16.mxu0 0
  %3384 = vmatpush1.bf16.msra.mxu0 0
  %3385 = vmatprep.subr.bf16.mxu0 0
  %3386 = vmatpush1.bf16.msra.mxu0 0
  %3387 = vmatprep.subr.bf16.mxu0 0
  %3388 = vmatpush1.bf16.msra.mxu0 0
  %3389 = vmatprep.subr.bf16.mxu0 0
  %3390 = vmatpush1.bf16.msra.mxu0 0
  %3391 = vmatprep.subr.bf16.mxu0 0
  %3392 = vmatpush1.bf16.msra.mxu0 0
  %3393 = vmatprep.subr.bf16.mxu0 0
  %3394 = vmatpush1.bf16.msra.mxu0 0
  %3395 = vmatprep.subr.bf16.mxu0 0
  %3396 = vmatpush1.bf16.msra.mxu0 0
  %3397 = vmatprep.subr.bf16.mxu0 0
  %3398 = vmatpush1.bf16.msra.mxu0 0
  %3399 = vmatprep.subr.bf16.mxu0 0
  %3400 = vmatpush1.bf16.msra.mxu0 0
  %3401 = vmatprep.subr.bf16.mxu0 0
  %3402 = vmatpush1.bf16.msra.mxu0 0
  %3403 = vmatprep.subr.bf16.mxu0 0
  %3404 = vmatpush1.bf16.msra.mxu0 0
  %3405 = vmatprep.subr.bf16.mxu0 0
  %3406 = vmatpush1.bf16.msra.mxu0 0
  %3407 = vmatprep.mubr.bf16.mxu0 0
  %3408 = vmatmul.mubr.bf16.gmra.mrb[0].mxu0 %v3332
  %v3409 = vpop.f32.mrb[0].mxu0
  %v3410 = vadd.f32 0.0, %v3409
  %v3411 = vpop.f32.mrb[0].mxu0
  %v3412 = vpop.f32.mrb[0].mxu0
  %v3413 = vpop.f32.mrb[0].mxu0
  %3414 = vdwg.mxu0
  %v3416 = vrot.slane %v3369, 4
  %v3418 = vadd.f32 %v3049, %v3416
  %v3419 = vxor.u32 %v3418, 2147483648
  %v3420 = vmul.f32 %v3419, 1.442695
  %v3421 = vpow.pop %v3420
  %v3422 = vadd.f32 %v3421, 1.0
  %v3423 = vrcp.pop %v3422
  %v3424 = vmul.f32 1.0, %v3423
  %v3426 = vrot.slane %v3371, 4
  %v3428 = vadd.f32 %v3051, %v3426
  %v3429 = vxor.u32 %v3428, 2147483648
  %v3430 = vmul.f32 %v3429, 1.442695
  %v3431 = vpow.pop %v3430
  %v3432 = vadd.f32 %v3431, 1.0
  %v3433 = vrcp.pop %v3432
  %v3434 = vmul.f32 1.0, %v3433
  %v3435 = vadd.f32 %v3410, %v3103
  %v3437 = vrot.slane %v3435, 4
  %v3439 = vmul.f32 %v3424, %v3437
  %v3440 = vadd.f32 %v3092, %v3439
  %v3441 = vtanh.pop %v3440
  %v3443 = vrot.slane %v3441, 2
  %v3445 = vsub.f32 %v3327, %v3443
  %v3447 = vrot.slane %v3445, 6
  %v3449 = vmul.f32 %v3434, %v3447
  %v3450 = vadd.f32 %v3441, %v3449
  %v3451 = vpack.c.bf16 %v3450, %v3450
  %v3453 = vrot.slane %v3451, 2
  %v3455 = vsel %vm891, %v3453, 0
  %3457 = vmatprep.subr.bf16.mxu0 %v2992
  %3458 = vmatpush1.bf16.msra.mxu0 %v2991
  %3459 = vmatprep.subr.bf16.mxu0 %v2995
  %3460 = vmatpush1.bf16.msra.mxu0 %v2994
  %3461 = vmatprep.subr.bf16.mxu0 0
  %3462 = vmatpush1.bf16.msra.mxu0 0
  %3463 = vmatprep.subr.bf16.mxu0 0
  %3464 = vmatpush1.bf16.msra.mxu0 0
  %3465 = vmatprep.subr.bf16.mxu0 0
  %3466 = vmatpush1.bf16.msra.mxu0 0
  %3467 = vmatprep.subr.bf16.mxu0 0
  %3468 = vmatpush1.bf16.msra.mxu0 0
  %3469 = vmatprep.subr.bf16.mxu0 0
  %3470 = vmatpush1.bf16.msra.mxu0 0
  %3471 = vmatprep.subr.bf16.mxu0 0
  %3472 = vmatpush1.bf16.msra.mxu0 0
  %3473 = vmatprep.subr.bf16.mxu0 0
  %3474 = vmatpush1.bf16.msra.mxu0 0
  %3475 = vmatprep.subr.bf16.mxu0 0
  %3476 = vmatpush1.bf16.msra.mxu0 0
  %3477 = vmatprep.subr.bf16.mxu0 0
  %3478 = vmatpush1.bf16.msra.mxu0 0
  %3479 = vmatprep.subr.bf16.mxu0 0
  %3480 = vmatpush1.bf16.msra.mxu0 0
  %3481 = vmatprep.subr.bf16.mxu0 0
  %3482 = vmatpush1.bf16.msra.mxu0 0
  %3483 = vmatprep.subr.bf16.mxu0 0
  %3484 = vmatpush1.bf16.msra.mxu0 0
  %3485 = vmatprep.subr.bf16.mxu0 0
  %3486 = vmatpush1.bf16.msra.mxu0 0
  %3487 = vmatprep.subr.bf16.mxu0 0
  %3488 = vmatpush1.bf16.msra.mxu0 0
  %3489 = vmatprep.mubr.bf16.mxu0 0
  %3490 = vmatmul.mubr.bf16.gmra.mrb[0].mxu0 %v3455
  %v3491 = vpop.f32.mrb[0].mxu0
  %v3492 = vadd.f32 0.0, %v3491
  %v3493 = vpop.f32.mrb[0].mxu0
  %v3494 = vadd.f32 0.0, %v3493
  %v3495 = vpop.f32.mrb[0].mxu0
  %v3496 = vpop.f32.mrb[0].mxu0
  %3497 = vdwg.mxu0
  %3498 = vmatprep.subr.bf16.mxu0 0
  %3499 = vmatpush1.bf16.msra.mxu0 %v2993
  %3500 = vmatprep.subr.bf16.mxu0 0
  %3501 = vmatpush1.bf16.msra.mxu0 %v2996
  %3502 = vmatprep.subr.bf16.mxu0 0
  %3503 = vmatpush1.bf16.msra.mxu0 0
  %3504 = vmatprep.subr.bf16.mxu0 0
  %3505 = vmatpush1.bf16.msra.mxu0 0
  %3506 = vmatprep.subr.bf16.mxu0 0
  %3507 = vmatpush1.bf16.msra.mxu0 0
  %3508 = vmatprep.subr.bf16.mxu0 0
  %3509 = vmatpush1.bf16.msra.mxu0 0
  %3510 = vmatprep.subr.bf16.mxu0 0
  %3511 = vmatpush1.bf16.msra.mxu0 0
  %3512 = vmatprep.subr.bf16.mxu0 0
  %3513 = vmatpush1.bf16.msra.mxu0 0
  %3514 = vmatprep.subr.bf16.mxu0 0
  %3515 = vmatpush1.bf16.msra.mxu0 0
  %3516 = vmatprep.subr.bf16.mxu0 0
  %3517 = vmatpush1.bf16.msra.mxu0 0
  %3518 = vmatprep.subr.bf16.mxu0 0
  %3519 = vmatpush1.bf16.msra.mxu0 0
  %3520 = vmatprep.subr.bf16.mxu0 0
  %3521 = vmatpush1.bf16.msra.mxu0 0
  %3522 = vmatprep.subr.bf16.mxu0 0
  %3523 = vmatpush1.bf16.msra.mxu0 0
  %3524 = vmatprep.subr.bf16.mxu0 0
  %3525 = vmatpush1.bf16.msra.mxu0 0
  %3526 = vmatprep.subr.bf16.mxu0 0
  %3527 = vmatpush1.bf16.msra.mxu0 0
  %3528 = vmatprep.subr.bf16.mxu0 0
  %3529 = vmatpush1.bf16.msra.mxu0 0
  %3530 = vmatprep.mubr.bf16.mxu0 0
  %3531 = vmatmul.mubr.bf16.gmra.mrb[0].mxu0 %v3455
  %v3532 = vpop.f32.mrb[0].mxu0
  %v3533 = vadd.f32 0.0, %v3532
  %v3534 = vpop.f32.mrb[0].mxu0
  %v3535 = vpop.f32.mrb[0].mxu0
  %v3536 = vpop.f32.mrb[0].mxu0
  %3537 = vdwg.mxu0
  %v3539 = vrot.slane %v3492, 2
  %v3541 = vadd.f32 %v3049, %v3539
  %v3542 = vxor.u32 %v3541, 2147483648
  %v3543 = vmul.f32 %v3542, 1.442695
  %v3544 = vpow.pop %v3543
  %v3545 = vadd.f32 %v3544, 1.0
  %v3546 = vrcp.pop %v3545
  %v3547 = vmul.f32 1.0, %v3546
  %v3549 = vrot.slane %v3494, 2
  %v3551 = vadd.f32 %v3051, %v3549
  %v3552 = vxor.u32 %v3551, 2147483648
  %v3553 = vmul.f32 %v3552, 1.442695
  %v3554 = vpow.pop %v3553
  %v3555 = vadd.f32 %v3554, 1.0
  %v3556 = vrcp.pop %v3555
  %v3557 = vmul.f32 1.0, %v3556
  %v3558 = vadd.f32 %v3533, %v3103
  %v3560 = vrot.slane %v3558, 2
  %v3562 = vmul.f32 %v3547, %v3560
  %v3563 = vadd.f32 %v3092, %v3562
  %v3564 = vtanh.pop %v3563
  %v3566 = vrot.slane %v3564, 2
  %v3568 = vsub.f32 %v3450, %v3566
  %v3570 = vrot.slane %v3568, 6
  %v3572 = vmul.f32 %v3557, %v3570
  %v3573 = vadd.f32 %v3564, %v3572
  %v3574 = vpack.c.bf16 %v3573, %v3573
  %v3576 = vrot.slane %v3574, 3
  %v3578 = vsel %vm891, %v3576, 0
  %3580 = vmatprep.subr.bf16.mxu0 %v2992
  %3581 = vmatpush1.bf16.msra.mxu0 %v2991
  %3582 = vmatprep.subr.bf16.mxu0 %v2995
  %3583 = vmatpush1.bf16.msra.mxu0 %v2994
  %3584 = vmatprep.subr.bf16.mxu0 0
  %3585 = vmatpush1.bf16.msra.mxu0 0
  %3586 = vmatprep.subr.bf16.mxu0 0
  %3587 = vmatpush1.bf16.msra.mxu0 0
  %3588 = vmatprep.subr.bf16.mxu0 0
  %3589 = vmatpush1.bf16.msra.mxu0 0
  %3590 = vmatprep.subr.bf16.mxu0 0
  %3591 = vmatpush1.bf16.msra.mxu0 0
  %3592 = vmatprep.subr.bf16.mxu0 0
  %3593 = vmatpush1.bf16.msra.mxu0 0
  %3594 = vmatprep.subr.bf16.mxu0 0
  %3595 = vmatpush1.bf16.msra.mxu0 0
  %3596 = vmatprep.subr.bf16.mxu0 0
  %3597 = vmatpush1.bf16.msra.mxu0 0
  %3598 = vmatprep.subr.bf16.mxu0 0
  %3599 = vmatpush1.bf16.msra.mxu0 0
  %3600 = vmatprep.subr.bf16.mxu0 0
  %3601 = vmatpush1.bf16.msra.mxu0 0
  %3602 = vmatprep.subr.bf16.mxu0 0
  %3603 = vmatpush1.bf16.msra.mxu0 0
  %3604 = vmatprep.subr.bf16.mxu0 0
  %3605 = vmatpush1.bf16.msra.mxu0 0
  %3606 = vmatprep.subr.bf16.mxu0 0
  %3607 = vmatpush1.bf16.msra.mxu0 0
  %3608 = vmatprep.subr.bf16.mxu0 0
  %3609 = vmatpush1.bf16.msra.mxu0 0
  %3610 = vmatprep.subr.bf16.mxu0 0
  %3611 = vmatpush1.bf16.msra.mxu0 0
  %3612 = vmatprep.mubr.bf16.mxu0 0
  %3613 = vmatmul.mubr.bf16.gmra.mrb[0].mxu0 %v3578
  %v3614 = vpop.f32.mrb[0].mxu0
  %v3615 = vadd.f32 0.0, %v3614
  %v3616 = vpop.f32.mrb[0].mxu0
  %v3617 = vadd.f32 0.0, %v3616
  %v3618 = vpop.f32.mrb[0].mxu0
  %v3619 = vpop.f32.mrb[0].mxu0
  %3620 = vdwg.mxu0
  %3621 = vmatprep.subr.bf16.mxu0 0
  %3622 = vmatpush1.bf16.msra.mxu0 %v2993
  %3623 = vmatprep.subr.bf16.mxu0 0
  %3624 = vmatpush1.bf16.msra.mxu0 %v2996
  %3625 = vmatprep.subr.bf16.mxu0 0
  %3626 = vmatpush1.bf16.msra.mxu0 0
  %3627 = vmatprep.subr.bf16.mxu0 0
  %3628 = vmatpush1.bf16.msra.mxu0 0
  %3629 = vmatprep.subr.bf16.mxu0 0
  %3630 = vmatpush1.bf16.msra.mxu0 0
  %3631 = vmatprep.subr.bf16.mxu0 0
  %3632 = vmatpush1.bf16.msra.mxu0 0
  %3633 = vmatprep.subr.bf16.mxu0 0
  %3634 = vmatpush1.bf16.msra.mxu0 0
  %3635 = vmatprep.subr.bf16.mxu0 0
  %3636 = vmatpush1.bf16.msra.mxu0 0
  %3637 = vmatprep.subr.bf16.mxu0 0
  %3638 = vmatpush1.bf16.msra.mxu0 0
  %3639 = vmatprep.subr.bf16.mxu0 0
  %3640 = vmatpush1.bf16.msra.mxu0 0
  %3641 = vmatprep.subr.bf16.mxu0 0
  %3642 = vmatpush1.bf16.msra.mxu0 0
  %3643 = vmatprep.subr.bf16.mxu0 0
  %3644 = vmatpush1.bf16.msra.mxu0 0
  %3645 = vmatprep.subr.bf16.mxu0 0
  %3646 = vmatpush1.bf16.msra.mxu0 0
  %3647 = vmatprep.subr.bf16.mxu0 0
  %3648 = vmatpush1.bf16.msra.mxu0 0
  %3649 = vmatprep.subr.bf16.mxu0 0
  %3650 = vmatpush1.bf16.msra.mxu0 0
  %3651 = vmatprep.subr.bf16.mxu0 0
  %3652 = vmatpush1.bf16.msra.mxu0 0
  %3653 = vmatprep.mubr.bf16.mxu0 0
  %3654 = vmatmul.mubr.bf16.gmra.mrb[0].mxu0 %v3578
  %v3655 = vpop.f32.mrb[0].mxu0
  %v3656 = vadd.f32 0.0, %v3655
  %v3657 = vpop.f32.mrb[0].mxu0
  %v3658 = vpop.f32.mrb[0].mxu0
  %v3659 = vpop.f32.mrb[0].mxu0
  %3660 = vdwg.mxu0
  %v3661 = vadd.f32 %v3053, %v3615
  %v3662 = vxor.u32 %v3661, 2147483648
  %v3663 = vmul.f32 %v3662, 1.442695
  %v3664 = vpow.pop %v3663
  %v3665 = vadd.f32 %v3664, 1.0
  %v3666 = vrcp.pop %v3665
  %v3667 = vmul.f32 1.0, %v3666
  %v3668 = vadd.f32 %v3055, %v3617
  %v3669 = vxor.u32 %v3668, 2147483648
  %v3670 = vmul.f32 %v3669, 1.442695
  %v3671 = vpow.pop %v3670
  %v3672 = vadd.f32 %v3671, 1.0
  %v3673 = vrcp.pop %v3672
  %v3674 = vmul.f32 1.0, %v3673
  %v3675 = vadd.f32 %v3656, %v3103
  %v3676 = vmul.f32 %v3667, %v3675
  %v3677 = vadd.f32 %v3095, %v3676
  %v3678 = vtanh.pop %v3677
  %v3680 = vrot.slane %v3678, 2
  %v3682 = vsub.f32 %v3573, %v3680
  %v3684 = vrot.slane %v3682, 6
  %v3686 = vmul.f32 %v3674, %v3684
  %v3687 = vadd.f32 %v3678, %v3686
  %v3688 = vpack.c.bf16 %v3687, %v3687
  %v3690 = vsel %vm891, %v3688, 0
  %3692 = vmatprep.subr.bf16.mxu0 %v2992
  %3693 = vmatpush1.bf16.msra.mxu0 %v2991
  %3694 = vmatprep.subr.bf16.mxu0 %v2995
  %3695 = vmatpush1.bf16.msra.mxu0 %v2994
  %3696 = vmatprep.subr.bf16.mxu0 0
  %3697 = vmatpush1.bf16.msra.mxu0 0
  %3698 = vmatprep.subr.bf16.mxu0 0
  %3699 = vmatpush1.bf16.msra.mxu0 0
  %3700 = vmatprep.subr.bf16.mxu0 0
  %3701 = vmatpush1.bf16.msra.mxu0 0
  %3702 = vmatprep.subr.bf16.mxu0 0
  %3703 = vmatpush1.bf16.msra.mxu0 0
  %3704 = vmatprep.subr.bf16.mxu0 0
  %3705 = vmatpush1.bf16.msra.mxu0 0
  %3706 = vmatprep.subr.bf16.mxu0 0
  %3707 = vmatpush1.bf16.msra.mxu0 0
  %3708 = vmatprep.subr.bf16.mxu0 0
  %3709 = vmatpush1.bf16.msra.mxu0 0
  %3710 = vmatprep.subr.bf16.mxu0 0
  %3711 = vmatpush1.bf16.msra.mxu0 0
  %3712 = vmatprep.subr.bf16.mxu0 0
  %3713 = vmatpush1.bf16.msra.mxu0 0
  %3714 = vmatprep.subr.bf16.mxu0 0
  %3715 = vmatpush1.bf16.msra.mxu0 0
  %3716 = vmatprep.subr.bf16.mxu0 0
  %3717 = vmatpush1.bf16.msra.mxu0 0
  %3718 = vmatprep.subr.bf16.mxu0 0
  %3719 = vmatpush1.bf16.msra.mxu0 0
  %3720 = vmatprep.subr.bf16.mxu0 0
  %3721 = vmatpush1.bf16.msra.mxu0 0
  %3722 = vmatprep.subr.bf16.mxu0 0
  %3723 = vmatpush1.bf16.msra.mxu0 0
  %3724 = vmatprep.mubr.bf16.mxu0 0
  %3725 = vmatmul.mubr.bf16.gmra.mrb[0].mxu0 %v3690
  %v3726 = vpop.f32.mrb[0].mxu0
  %v3727 = vadd.f32 0.0, %v3726
  %v3728 = vpop.f32.mrb[0].mxu0
  %v3729 = vadd.f32 0.0, %v3728
  %v3730 = vpop.f32.mrb[0].mxu0
  %v3731 = vpop.f32.mrb[0].mxu0
  %3732 = vdwg.mxu0
  %3733 = vmatprep.subr.bf16.mxu0 0
  %3734 = vmatpush1.bf16.msra.mxu0 %v2993
  %3735 = vmatprep.subr.bf16.mxu0 0
  %3736 = vmatpush1.bf16.msra.mxu0 %v2996
  %3737 = vmatprep.subr.bf16.mxu0 0
  %3738 = vmatpush1.bf16.msra.mxu0 0
  %3739 = vmatprep.subr.bf16.mxu0 0
  %3740 = vmatpush1.bf16.msra.mxu0 0
  %3741 = vmatprep.subr.bf16.mxu0 0
  %3742 = vmatpush1.bf16.msra.mxu0 0
  %3743 = vmatprep.subr.bf16.mxu0 0
  %3744 = vmatpush1.bf16.msra.mxu0 0
  %3745 = vmatprep.subr.bf16.mxu0 0
  %3746 = vmatpush1.bf16.msra.mxu0 0
  %3747 = vmatprep.subr.bf16.mxu0 0
  %3748 = vmatpush1.bf16.msra.mxu0 0
  %3749 = vmatprep.subr.bf16.mxu0 0
  %3750 = vmatpush1.bf16.msra.mxu0 0
  %3751 = vmatprep.subr.bf16.mxu0 0
  %3752 = vmatpush1.bf16.msra.mxu0 0
  %3753 = vmatprep.subr.bf16.mxu0 0
  %3754 = vmatpush1.bf16.msra.mxu0 0
  %3755 = vmatprep.subr.bf16.mxu0 0
  %3756 = vmatpush1.bf16.msra.mxu0 0
  %3757 = vmatprep.subr.bf16.mxu0 0
  %3758 = vmatpush1.bf16.msra.mxu0 0
  %3759 = vmatprep.subr.bf16.mxu0 0
  %3760 = vmatpush1.bf16.msra.mxu0 0
  %3761 = vmatprep.subr.bf16.mxu0 0
  %3762 = vmatpush1.bf16.msra.mxu0 0
  %3763 = vmatprep.subr.bf16.mxu0 0
  %3764 = vmatpush1.bf16.msra.mxu0 0
  %3765 = vmatprep.mubr.bf16.mxu0 0
  %3766 = vmatmul.mubr.bf16.gmra.mrb[0].mxu0 %v3690
  %v3767 = vpop.f32.mrb[0].mxu0
  %v3768 = vadd.f32 0.0, %v3767
  %v3769 = vpop.f32.mrb[0].mxu0
  %v3770 = vpop.f32.mrb[0].mxu0
  %v3771 = vpop.f32.mrb[0].mxu0
  %3772 = vdwg.mxu0
  %v3774 = vrot.slane %v3727, 6
  %v3776 = vadd.f32 %v3053, %v3774
  %v3777 = vxor.u32 %v3776, 2147483648
  %v3778 = vmul.f32 %v3777, 1.442695
  %v3779 = vpow.pop %v3778
  %v3780 = vadd.f32 %v3779, 1.0
  %v3781 = vrcp.pop %v3780
  %v3782 = vmul.f32 1.0, %v3781
  %v3784 = vrot.slane %v3729, 6
  %v3786 = vadd.f32 %v3055, %v3784
  %v3787 = vxor.u32 %v3786, 2147483648
  %v3788 = vmul.f32 %v3787, 1.442695
  %v3789 = vpow.pop %v3788
  %v3790 = vadd.f32 %v3789, 1.0
  %v3791 = vrcp.pop %v3790
  %v3792 = vmul.f32 1.0, %v3791
  %v3793 = vadd.f32 %v3768, %v3103
  %v3795 = vrot.slane %v3793, 6
  %v3797 = vmul.f32 %v3782, %v3795
  %v3798 = vadd.f32 %v3095, %v3797
  %v3799 = vtanh.pop %v3798
  %v3801 = vrot.slane %v3799, 2
  %v3803 = vsub.f32 %v3687, %v3801
  %v3805 = vrot.slane %v3803, 6
  %v3807 = vmul.f32 %v3792, %v3805
  %v3808 = vadd.f32 %v3799, %v3807
  %v3809 = vpack.c.bf16 %v3808, %v3808
  %v3811 = vrot.slane %v3809, 1
  %v3813 = vsel %vm891, %v3811, 0
  %3815 = vmatprep.subr.bf16.mxu0 %v2992
  %3816 = vmatpush1.bf16.msra.mxu0 %v2991
  %3817 = vmatprep.subr.bf16.mxu0 %v2995
  %3818 = vmatpush1.bf16.msra.mxu0 %v2994
  %3819 = vmatprep.subr.bf16.mxu0 0
  %3820 = vmatpush1.bf16.msra.mxu0 0
  %3821 = vmatprep.subr.bf16.mxu0 0
  %3822 = vmatpush1.bf16.msra.mxu0 0
  %3823 = vmatprep.subr.bf16.mxu0 0
  %3824 = vmatpush1.bf16.msra.mxu0 0
  %3825 = vmatprep.subr.bf16.mxu0 0
  %3826 = vmatpush1.bf16.msra.mxu0 0
  %3827 = vmatprep.subr.bf16.mxu0 0
  %3828 = vmatpush1.bf16.msra.mxu0 0
  %3829 = vmatprep.subr.bf16.mxu0 0
  %3830 = vmatpush1.bf16.msra.mxu0 0
  %3831 = vmatprep.subr.bf16.mxu0 0
  %3832 = vmatpush1.bf16.msra.mxu0 0
  %3833 = vmatprep.subr.bf16.mxu0 0
  %3834 = vmatpush1.bf16.msra.mxu0 0
  %3835 = vmatprep.subr.bf16.mxu0 0
  %3836 = vmatpush1.bf16.msra.mxu0 0
  %3837 = vmatprep.subr.bf16.mxu0 0
  %3838 = vmatpush1.bf16.msra.mxu0 0
  %3839 = vmatprep.subr.bf16.mxu0 0
  %3840 = vmatpush1.bf16.msra.mxu0 0
  %3841 = vmatprep.subr.bf16.mxu0 0
  %3842 = vmatpush1.bf16.msra.mxu0 0
  %3843 = vmatprep.subr.bf16.mxu0 0
  %3844 = vmatpush1.bf16.msra.mxu0 0
  %3845 = vmatprep.subr.bf16.mxu0 0
  %3846 = vmatpush1.bf16.msra.mxu0 0
  %3847 = vmatprep.mubr.bf16.mxu0 0
  %3848 = vmatmul.mubr.bf16.gmra.mrb[0].mxu0 %v3813
  %v3849 = vpop.f32.mrb[0].mxu0
  %v3850 = vadd.f32 0.0, %v3849
  %v3851 = vpop.f32.mrb[0].mxu0
  %v3852 = vadd.f32 0.0, %v3851
  %v3853 = vpop.f32.mrb[0].mxu0
  %v3854 = vpop.f32.mrb[0].mxu0
  %3855 = vdwg.mxu0
  %3856 = vmatprep.subr.bf16.mxu0 0
  %3857 = vmatpush1.bf16.msra.mxu0 %v2993
  %3858 = vmatprep.subr.bf16.mxu0 0
  %3859 = vmatpush1.bf16.msra.mxu0 %v2996
  %3860 = vmatprep.subr.bf16.mxu0 0
  %3861 = vmatpush1.bf16.msra.mxu0 0
  %3862 = vmatprep.subr.bf16.mxu0 0
  %3863 = vmatpush1.bf16.msra.mxu0 0
  %3864 = vmatprep.subr.bf16.mxu0 0
  %3865 = vmatpush1.bf16.msra.mxu0 0
  %3866 = vmatprep.subr.bf16.mxu0 0
  %3867 = vmatpush1.bf16.msra.mxu0 0
  %3868 = vmatprep.subr.bf16.mxu0 0
  %3869 = vmatpush1.bf16.msra.mxu0 0
  %3870 = vmatprep.subr.bf16.mxu0 0
  %3871 = vmatpush1.bf16.msra.mxu0 0
  %3872 = vmatprep.subr.bf16.mxu0 0
  %3873 = vmatpush1.bf16.msra.mxu0 0
  %3874 = vmatprep.subr.bf16.mxu0 0
  %3875 = vmatpush1.bf16.msra.mxu0 0
  %3876 = vmatprep.subr.bf16.mxu0 0
  %3877 = vmatpush1.bf16.msra.mxu0 0
  %3878 = vmatprep.subr.bf16.mxu0 0
  %3879 = vmatpush1.bf16.msra.mxu0 0
  %3880 = vmatprep.subr.bf16.mxu0 0
  %3881 = vmatpush1.bf16.msra.mxu0 0
  %3882 = vmatprep.subr.bf16.mxu0 0
  %3883 = vmatpush1.bf16.msra.mxu0 0
  %3884 = vmatprep.subr.bf16.mxu0 0
  %3885 = vmatpush1.bf16.msra.mxu0 0
  %3886 = vmatprep.subr.bf16.mxu0 0
  %3887 = vmatpush1.bf16.msra.mxu0 0
  %3888 = vmatprep.mubr.bf16.mxu0 0
  %3889 = vmatmul.mubr.bf16.gmra.mrb[0].mxu0 %v3813
  %v3890 = vpop.f32.mrb[0].mxu0
  %v3891 = vadd.f32 0.0, %v3890
  %v3892 = vpop.f32.mrb[0].mxu0
  %v3893 = vpop.f32.mrb[0].mxu0
  %v3894 = vpop.f32.mrb[0].mxu0
  %3895 = vdwg.mxu0
  %v3897 = vrot.slane %v3850, 4
  %v3899 = vadd.f32 %v3053, %v3897
  %v3900 = vxor.u32 %v3899, 2147483648
  %v3901 = vmul.f32 %v3900, 1.442695
  %v3902 = vpow.pop %v3901
  %v3903 = vadd.f32 %v3902, 1.0
  %v3904 = vrcp.pop %v3903
  %v3905 = vmul.f32 1.0, %v3904
  %v3907 = vrot.slane %v3852, 4
  %v3909 = vadd.f32 %v3055, %v3907
  %v3910 = vxor.u32 %v3909, 2147483648
  %v3911 = vmul.f32 %v3910, 1.442695
  %v3912 = vpow.pop %v3911
  %v3913 = vadd.f32 %v3912, 1.0
  %v3914 = vrcp.pop %v3913
  %v3915 = vmul.f32 1.0, %v3914
  %v3916 = vadd.f32 %v3891, %v3103
  %v3918 = vrot.slane %v3916, 4
  %v3920 = vmul.f32 %v3905, %v3918
  %v3921 = vadd.f32 %v3095, %v3920
  %v3922 = vtanh.pop %v3921
  %v3924 = vrot.slane %v3922, 2
  %v3926 = vsub.f32 %v3808, %v3924
  %v3928 = vrot.slane %v3926, 6
  %v3930 = vmul.f32 %v3915, %v3928
  %v3931 = vadd.f32 %v3922, %v3930
  %v3932 = vpack.c.bf16 %v3931, %v3931
  %v3934 = vrot.slane %v3932, 2
  %v3936 = vsel %vm891, %v3934, 0
  %3938 = vmatprep.subr.bf16.mxu0 %v2992
  %3939 = vmatpush1.bf16.msra.mxu0 %v2991
  %3940 = vmatprep.subr.bf16.mxu0 %v2995
  %3941 = vmatpush1.bf16.msra.mxu0 %v2994
  %3942 = vmatprep.subr.bf16.mxu0 0
  %3943 = vmatpush1.bf16.msra.mxu0 0
  %3944 = vmatprep.subr.bf16.mxu0 0
  %3945 = vmatpush1.bf16.msra.mxu0 0
  %3946 = vmatprep.subr.bf16.mxu0 0
  %3947 = vmatpush1.bf16.msra.mxu0 0
  %3948 = vmatprep.subr.bf16.mxu0 0
  %3949 = vmatpush1.bf16.msra.mxu0 0
  %3950 = vmatprep.subr.bf16.mxu0 0
  %3951 = vmatpush1.bf16.msra.mxu0 0
  %3952 = vmatprep.subr.bf16.mxu0 0
  %3953 = vmatpush1.bf16.msra.mxu0 0
  %3954 = vmatprep.subr.bf16.mxu0 0
  %3955 = vmatpush1.bf16.msra.mxu0 0
  %3956 = vmatprep.subr.bf16.mxu0 0
  %3957 = vmatpush1.bf16.msra.mxu0 0
  %3958 = vmatprep.subr.bf16.mxu0 0
  %3959 = vmatpush1.bf16.msra.mxu0 0
  %3960 = vmatprep.subr.bf16.mxu0 0
  %3961 = vmatpush1.bf16.msra.mxu0 0
  %3962 = vmatprep.subr.bf16.mxu0 0
  %3963 = vmatpush1.bf16.msra.mxu0 0
  %3964 = vmatprep.subr.bf16.mxu0 0
  %3965 = vmatpush1.bf16.msra.mxu0 0
  %3966 = vmatprep.subr.bf16.mxu0 0
  %3967 = vmatpush1.bf16.msra.mxu0 0
  %3968 = vmatprep.subr.bf16.mxu0 0
  %3969 = vmatpush1.bf16.msra.mxu0 0
  %3970 = vmatprep.mubr.bf16.mxu0 0
  %3971 = vmatmul.mubr.bf16.gmra.mrb[0].mxu0 %v3936
  %v3972 = vpop.f32.mrb[0].mxu0
  %v3973 = vadd.f32 0.0, %v3972
  %v3974 = vpop.f32.mrb[0].mxu0
  %v3975 = vadd.f32 0.0, %v3974
  %v3976 = vpop.f32.mrb[0].mxu0
  %v3977 = vpop.f32.mrb[0].mxu0
  %3978 = vdwg.mxu0
  %3979 = vmatprep.subr.bf16.mxu0 0
  %3980 = vmatpush1.bf16.msra.mxu0 %v2993
  %3981 = vmatprep.subr.bf16.mxu0 0
  %3982 = vmatpush1.bf16.msra.mxu0 %v2996
  %3983 = vmatprep.subr.bf16.mxu0 0
  %3984 = vmatpush1.bf16.msra.mxu0 0
  %3985 = vmatprep.subr.bf16.mxu0 0
  %3986 = vmatpush1.bf16.msra.mxu0 0
  %3987 = vmatprep.subr.bf16.mxu0 0
  %3988 = vmatpush1.bf16.msra.mxu0 0
  %3989 = vmatprep.subr.bf16.mxu0 0
  %3990 = vmatpush1.bf16.msra.mxu0 0
  %3991 = vmatprep.subr.bf16.mxu0 0
  %3992 = vmatpush1.bf16.msra.mxu0 0
  %3993 = vmatprep.subr.bf16.mxu0 0
  %3994 = vmatpush1.bf16.msra.mxu0 0
  %3995 = vmatprep.subr.bf16.mxu0 0
  %3996 = vmatpush1.bf16.msra.mxu0 0
  %3997 = vmatprep.subr.bf16.mxu0 0
  %3998 = vmatpush1.bf16.msra.mxu0 0
  %3999 = vmatprep.subr.bf16.mxu0 0
  %4000 = vmatpush1.bf16.msra.mxu0 0
  %4001 = vmatprep.subr.bf16.mxu0 0
  %4002 = vmatpush1.bf16.msra.mxu0 0
  %4003 = vmatprep.subr.bf16.mxu0 0
  %4004 = vmatpush1.bf16.msra.mxu0 0
  %4005 = vmatprep.subr.bf16.mxu0 0
  %4006 = vmatpush1.bf16.msra.mxu0 0
  %4007 = vmatprep.subr.bf16.mxu0 0
  %4008 = vmatpush1.bf16.msra.mxu0 0
  %4009 = vmatprep.subr.bf16.mxu0 0
  %4010 = vmatpush1.bf16.msra.mxu0 0
  %4011 = vmatprep.mubr.bf16.mxu0 0
  %4012 = vmatmul.mubr.bf16.gmra.mrb[0].mxu0 %v3936
  %v4013 = vpop.f32.mrb[0].mxu0
  %v4014 = vadd.f32 0.0, %v4013
  %v4015 = vpop.f32.mrb[0].mxu0
  %v4016 = vpop.f32.mrb[0].mxu0
  %v4017 = vpop.f32.mrb[0].mxu0
  %4018 = vdwg.mxu0
  %v4020 = vrot.slane %v3973, 2
  %v4022 = vadd.f32 %v3053, %v4020
  %v4023 = vxor.u32 %v4022, 2147483648
  %v4024 = vmul.f32 %v4023, 1.442695
  %v4025 = vpow.pop %v4024
  %v4026 = vadd.f32 %v4025, 1.0
  %v4027 = vrcp.pop %v4026
  %v4028 = vmul.f32 1.0, %v4027
  %v4030 = vrot.slane %v3975, 2
  %v4032 = vadd.f32 %v3055, %v4030
  %v4033 = vxor.u32 %v4032, 2147483648
  %v4034 = vmul.f32 %v4033, 1.442695
  %v4035 = vpow.pop %v4034
  %v4036 = vadd.f32 %v4035, 1.0
  %v4037 = vrcp.pop %v4036
  %v4038 = vmul.f32 1.0, %v4037
  %v4039 = vadd.f32 %v4014, %v3103
  %v4041 = vrot.slane %v4039, 2
  %v4043 = vmul.f32 %v4028, %v4041
  %v4044 = vadd.f32 %v3095, %v4043
  %v4045 = vtanh.pop %v4044
  %v4047 = vrot.slane %v4045, 2
  %v4049 = vsub.f32 %v3931, %v4047
  %v4051 = vrot.slane %v4049, 6
  %v4053 = vmul.f32 %v4038, %v4051
  %v4054 = vadd.f32 %v4045, %v4053
  %v4055 = vsel %vm1845, %v3206, %v3327
  %v4056 = vsel %vm1847, %v4055, %v3450
  %v4057 = vsel %vm1849, %v4056, %v3573
  %v4058 = vsel %vm1845, %v3687, %v3808
  %v4059 = vsel %vm1847, %v4058, %v3931
  %v4060 = vsel %vm1849, %v4059, %v4054
  %s4061 = scalar_lea.vmem %s13, 32
  %4062 = vst [vmem:[%s4061] sm:$0xff] %v4057
  %4063 = vst [vmem:[%s4061 + $0x8] sm:$0xff] %v4060
  // Predicated region
  $region186: #{gru_stack_forward.1} parent=0 // pred_check
    _
  $region187: #{gru_stack_forward.1} parent=0 // pred_check_branch
    %4065 = sbr.rel (0) target = $region189
  $region188: #{gru_stack_forward.1} parent=0 // pred_region
    _
  $region189: #{gru_stack_forward.1} parent=0 // pred_fallthru
    _
  // Predicated region
  $region190: #{gru_stack_forward.1} parent=0 // pred_check
    _
  $region191: #{gru_stack_forward.1} parent=0 // pred_check_branch
    %4067 = sbr.rel (0) target = $region193
  $region192: #{gru_stack_forward.1} parent=0 // pred_region
    _
  $region193: #{gru_stack_forward.1} parent=0 // pred_fallthru
    _
  %4068 = vsyncmov [#allocation6]
  %s4069 = vpop.sfrf %4068
  %p4070 = scmp.eq.s32.totalorder %s4069, 0
  %p4071 = pneg %p4070
  %4073 = shalt.err (%p4071)
  %s4074 = scalar_lea.sflag [#allocation6], 1
  %4075 = vsyncmov %s4074
  %s4076 = vpop.sfrf %4075
  %p4077 = scmp.eq.s32.totalorder %s4076, 0
  %p4078 = pneg %p4077
  %4080 = shalt.err (%p4078)
  %s4081 = scalar_lea.sflag [#allocation6], 2
  %4082 = vsyncmov %s4081
  %s4083 = vpop.sfrf %4082
  %p4084 = scmp.eq.s32.totalorder %s4083, 0
  %p4085 = pneg %p4084
  %4087 = shalt.err (%p4085)
  %s4088 = scalar_lea.sflag [#allocation6], 3
  %4089 = vsyncmov %s4088
  %s4090 = vpop.sfrf %4089
  %p4091 = scmp.eq.s32.totalorder %s4090, 0
  %p4092 = pneg %p4091
  %4094 = shalt.err (%p4092)

</llo_original>
